<compile_context>
chip_gen: v6e
topology: v6e:2x2x1
jax: 0.10.0
libtpu: 0.0.40
codegen_flags: <defaults>
</compile_context>

<pallas_src>
import jax
import jax.numpy as jnp
from jax import lax
from jax.experimental import pallas as pl
from jax.experimental.pallas import tpu as pltpu


# ----------------------------- kernel side -----------------------------

def make_seq2seq_kernel(n_layers, t_in, t_tgt, batch, hidden, f_in, f_out):
    H = hidden
    GW = 4 * H
    S3 = 3 * H

    def kernel(*refs):
        idx = 0
        x_ref = refs[idx]; idx += 1           # (T_in*B, F_in) time-major, flattened
        dec_in0_ref = refs[idx]; idx += 1     # (B, F_out)     targets[:, 0, :]
        enc_refs = []                         # per layer: (W_ih_t, W_hh_t, b)
        for _ in range(n_layers):
            enc_refs.append((refs[idx], refs[idx + 1], refs[idx + 2])); idx += 3
        dec_refs = []
        for _ in range(n_layers):
            dec_refs.append((refs[idx], refs[idx + 1], refs[idx + 2])); idx += 3
        fc_w_ref = refs[idx]; idx += 1        # (H, F_out)
        fc_b_ref = refs[idx]; idx += 1        # (1, F_out)
        out_ref = refs[idx]                   # (T_tgt, B, F_out)

        # Pre-broadcast biases ONCE (JAX does not CSE broadcast_in_dim, so a
        # plain `+ b_ref[...]` inside the recurrence would re-broadcast every
        # cell).  Encoder layer-0 bias is folded into x_proj below, so skip it.
        enc_b = [None] + [jnp.broadcast_to(enc_refs[l][2][...], (batch, GW))
                          for l in range(1, n_layers)]
        dec_b = [jnp.broadcast_to(b[...], (batch, GW)) for (_, _, b) in dec_refs]
        fc_b = jnp.broadcast_to(fc_b_ref[...], (batch, f_out))

        def cell_from_gates(gates, c):
            # Gate lanes were permuted to [i, f, o, g] in the wrapper, so one
            # sigmoid covers [:, :3H] and tanh touches only the g slice.
            ifo = jax.nn.sigmoid(gates[:, :S3])
            g = jnp.tanh(gates[:, S3:])
            i = ifo[:, 0 * H:1 * H]
            f = ifo[:, 1 * H:2 * H]
            o = ifo[:, 2 * H:3 * H]
            c_new = f * c + i * g
            h_new = o * jnp.tanh(c_new)
            return h_new, c_new

        def lstm_cell(x, h, c, w_ih_ref, w_hh_ref, b_full):
            # Two independent MXU pushes (no per-cell lane concat); weights are
            # loaded at the use site to keep vreg live ranges short.
            gates = (jnp.dot(x, w_ih_ref[...],
                             preferred_element_type=jnp.float32)
                     + jnp.dot(h, w_hh_ref[...],
                               preferred_element_type=jnp.float32)
                     + b_full)
            return cell_from_gates(gates, c)

        hs = [jnp.zeros((batch, H), jnp.float32) for _ in range(n_layers)]
        cs = [jnp.zeros((batch, H), jnp.float32) for _ in range(n_layers)]

        # Hoisted encoder layer-0 input projection for ALL timesteps at once
        # (one (T_in*B, F_in) @ (F_in, 4H) matmul instead of T_in tiny ones),
        # bias folded in.
        enc0_wih_ref, enc0_whh_ref, enc0_b_ref = enc_refs[0]
        x_proj = (jnp.dot(x_ref[...], enc0_wih_ref[...],
                          preferred_element_type=jnp.float32)
                  + jnp.broadcast_to(enc0_b_ref[...], (t_in * batch, GW)))

        # ------------------- encoder (fully unrolled) -------------------
        for t in range(t_in):
            gates0 = x_proj[t * batch:(t + 1) * batch] + jnp.dot(
                hs[0], enc0_whh_ref[...], preferred_element_type=jnp.float32)
            hs[0], cs[0] = cell_from_gates(gates0, cs[0])
            for l in range(1, n_layers):
                w_ih_ref, w_hh_ref, _ = enc_refs[l]
                hs[l], cs[l] = lstm_cell(hs[l - 1], hs[l], cs[l],
                                         w_ih_ref, w_hh_ref, enc_b[l])

        # ------------------- decoder (fully unrolled) -------------------
        out_ref[0] = jnp.zeros((batch, f_out), jnp.float32)  # outputs[:,0,:] = 0
        dec_in = dec_in0_ref[...]
        for t in range(1, t_tgt):
            inp = dec_in
            for l in range(n_layers):
                w_ih_ref, w_hh_ref, _ = dec_refs[l]
                hs[l], cs[l] = lstm_cell(inp, hs[l], cs[l],
                                         w_ih_ref, w_hh_ref, dec_b[l])
                inp = hs[l]
            pred = jnp.dot(inp, fc_w_ref[...],
                           preferred_element_type=jnp.float32) + fc_b
            out_ref[t] = pred
            dec_in = pred  # eval mode: teacher forcing never fires
        # TODO(synk): training-mode teacher forcing / inter-layer dropout not
        # implemented (the module's forward disables both when not training).
        # TODO(synk): at larger batch add a leading batch grid axis with
        # "parallel" semantics (v7x: 2 TCs); at larger T_in stream x via a
        # time-grid BlockSpec instead of keeping everything VMEM-resident.

    return kernel


# ----------------------------- wrapper side -----------------------------

def _reorder_ifog(a):
    # PyTorch LSTM gate order along the 4H axis is [i, f, g, o]; permute to
    # [i, f, o, g] so sigmoid / tanh each cover one contiguous lane range.
    H = a.shape[0] // 4
    return jnp.concatenate([a[:2 * H], a[3 * H:], a[2 * H:3 * H]], axis=0)


def seq2seq_forward(inputs, targets, params, *, hidden_size, n_layers):
    """inputs: (B, T_in, F_in), targets: (B, T_tgt, F_out) -> (B, T_tgt, F_out)."""
    B, T_in, F_in = inputs.shape
    _, T_tgt, F_out = targets.shape
    H = hidden_size

    # Pad batch to a multiple of 8 (vreg sublane count); padded rows are dropped.
    B_pad = ((B + 7) // 8) * 8
    pad = B_pad - B

    x = inputs.astype(jnp.float32)
    if pad:
        x = jnp.pad(x, ((0, pad), (0, 0), (0, 0)))
    x_tm = jnp.transpose(x, (1, 0, 2)).reshape(T_in * B_pad, F_in)

    dec_in0 = targets[:, 0, :].astype(jnp.float32)
    if pad:
        dec_in0 = jnp.pad(dec_in0, ((0, pad), (0, 0)))

    args = [x_tm, dec_in0]
    for which in ("enc", "dec"):
        for l in range(n_layers):
            w_ih, w_hh, b_ih, b_hh = params[which][l]
            args += [_reorder_ifog(w_ih).T,               # (f_in_l, 4H)
                     _reorder_ifog(w_hh).T,               # (H, 4H)
                     _reorder_ifog(b_ih + b_hh)[None, :]]  # (1, 4H)
    args += [params["fc_w"].T, params["fc_b"][None, :]]

    kernel = make_seq2seq_kernel(n_layers, T_in, T_tgt, B_pad, H, F_in, F_out)
    out_tm = pl.pallas_call(
        kernel,
        out_shape=jax.ShapeDtypeStruct((T_tgt, B_pad, F_out), jnp.float32),
        in_specs=[pl.BlockSpec(memory_space=pltpu.MemorySpace.VMEM)] * len(args),
        out_specs=pl.BlockSpec(memory_space=pltpu.MemorySpace.VMEM),
    )(*args)
    out = jnp.transpose(out_tm, (1, 0, 2))
    return out[:B]


# ----------------------------- pure-JAX reference -----------------------------
# Ground-truth reference kept at HIGHEST (accurate f32) precision; the kernel
# uses DEFAULT matmul precision, so the comparison tolerance is relaxed.

_REF_PREC = lax.Precision.HIGHEST


def _cell_ref(x, h, c, w_ih, w_hh, b_ih, b_hh):
    H = h.shape[-1]
    g = (jnp.dot(x, w_ih.T, precision=_REF_PREC) + b_ih
         + jnp.dot(h, w_hh.T, precision=_REF_PREC) + b_hh)
    i = jax.nn.sigmoid(g[:, :H])
    f = jax.nn.sigmoid(g[:, H:2 * H])
    gg = jnp.tanh(g[:, 2 * H:3 * H])
    o = jax.nn.sigmoid(g[:, 3 * H:])
    c_new = f * c + i * gg
    return o * jnp.tanh(c_new), c_new


def seq2seq_reference(inputs, targets, params, *, hidden_size, n_layers):
    B, T_in, _ = inputs.shape
    _, T_tgt, F_out = targets.shape
    H, L = hidden_size, n_layers
    hs = [jnp.zeros((B, H), jnp.float32) for _ in range(L)]
    cs = [jnp.zeros((B, H), jnp.float32) for _ in range(L)]
    for t in range(T_in):
        inp = inputs[:, t, :]
        for l in range(L):
            hs[l], cs[l] = _cell_ref(inp, hs[l], cs[l], *params["enc"][l])
            inp = hs[l]
    outs = [jnp.zeros((B, F_out), jnp.float32)]
    dec_in = targets[:, 0, :]
    for t in range(1, T_tgt):
        inp = dec_in
        for l in range(L):
            hs[l], cs[l] = _cell_ref(inp, hs[l], cs[l], *params["dec"][l])
            inp = hs[l]
        pred = jnp.dot(inp, params["fc_w"].T, precision=_REF_PREC) + params["fc_b"]
        outs.append(pred)
        dec_in = pred
    return jnp.stack(outs, axis=1)


# ----------------------------- parameter init -----------------------------

def init_params(key, input_size, output_size, hidden_size, n_layers):
    """Deterministic uniform(-1/sqrt(H), 1/sqrt(H)) init, same shapes as nn.LSTM/Linear."""
    bound = 1.0 / (hidden_size ** 0.5)

    def uni(k, shape):
        return jax.random.uniform(k, shape, jnp.float32, -bound, bound)

    params = {"enc": [], "dec": []}
    keys = iter(jax.random.split(key, 8 * n_layers + 2))
    for which, in_sz in (("enc", input_size), ("dec", output_size)):
        for l in range(n_layers):
            f_in = in_sz if l == 0 else hidden_size
            w_ih = uni(next(keys), (4 * hidden_size, f_in))
            w_hh = uni(next(keys), (4 * hidden_size, hidden_size))
            b_ih = uni(next(keys), (4 * hidden_size,))
            b_hh = uni(next(keys), (4 * hidden_size,))
            params[which].append((w_ih, w_hh, b_ih, b_hh))
    params["fc_w"] = uni(next(keys), (output_size, hidden_size))
    params["fc_b"] = uni(next(keys), (output_size,))
    return params


if __name__ == "__main__":
    B, T_in, T_tgt = 4, 8, 6
    input_size, output_size, hidden_size, n_layers = 8, 8, 32, 2

    key = jax.random.PRNGKey(0)
    k_p, k_x, k_y = jax.random.split(key, 3)
    params = init_params(k_p, input_size, output_size, hidden_size, n_layers)
    inputs = jax.random.normal(k_x, (B, T_in, input_size), jnp.float32)
    targets = jax.random.normal(k_y, (B, T_tgt, output_size), jnp.float32)

    fwd = jax.jit(seq2seq_forward, static_argnames=("hidden_size", "n_layers"))
    out = fwd(inputs, targets, params, hidden_size=hidden_size, n_layers=n_layers)
    out = jax.block_until_ready(out)

    ref = seq2seq_reference(inputs, targets, params,
                            hidden_size=hidden_size, n_layers=n_layers)
    assert out.shape == (B, T_tgt, output_size)
    max_err = jnp.max(jnp.abs(out - ref))
    # Kernel runs its matmuls at DEFAULT precision (single bf16 MXU pass);
    # reference is accurate f32, so allow bf16-rounding-scale differences.
    assert jnp.allclose(out, ref, atol=3e-2, rtol=3e-2), f"max abs err {max_err}"

    print("KERNEL_OK")
</pallas_src>

<mosaic_0001>
module attributes {stable_mosaic.version = 11 : i64} {
  func.func @kernel(%arg0: memref<64x8xf32, #tpu.memory_space<vmem>>, %arg1: memref<8x8xf32, #tpu.memory_space<vmem>>, %arg2: memref<8x128xf32, #tpu.memory_space<vmem>>, %arg3: memref<32x128xf32, #tpu.memory_space<vmem>>, %arg4: memref<1x128xf32, #tpu.memory_space<vmem>>, %arg5: memref<32x128xf32, #tpu.memory_space<vmem>>, %arg6: memref<32x128xf32, #tpu.memory_space<vmem>>, %arg7: memref<1x128xf32, #tpu.memory_space<vmem>>, %arg8: memref<8x128xf32, #tpu.memory_space<vmem>>, %arg9: memref<32x128xf32, #tpu.memory_space<vmem>>, %arg10: memref<1x128xf32, #tpu.memory_space<vmem>>, %arg11: memref<32x128xf32, #tpu.memory_space<vmem>>, %arg12: memref<32x128xf32, #tpu.memory_space<vmem>>, %arg13: memref<1x128xf32, #tpu.memory_space<vmem>>, %arg14: memref<32x8xf32, #tpu.memory_space<vmem>>, %arg15: memref<1x8xf32, #tpu.memory_space<vmem>>, %arg16: memref<6x8x8xf32, #tpu.memory_space<vmem>>) attributes {dimension_semantics = [], scalar_prefetch = 0 : i64, scratch_operands = 0 : i64, tpu.core_type = #tpu.core_type<tc>} {
    %c0 = arith.constant 0 : index
    %c0_0 = arith.constant 0 : index
    %0 = vector.load %arg7[%c0, %c0_0] : memref<1x128xf32, #tpu.memory_space<vmem>>, vector<1x128xf32>
    %1 = vector.shape_cast %0 : vector<1x128xf32> to vector<1x128xf32>
    %2 = vector.broadcast %1 : vector<1x128xf32> to vector<8x128xf32>
    %c0_1 = arith.constant 0 : index
    %c0_2 = arith.constant 0 : index
    %3 = vector.load %arg10[%c0_1, %c0_2] : memref<1x128xf32, #tpu.memory_space<vmem>>, vector<1x128xf32>
    %4 = vector.shape_cast %3 : vector<1x128xf32> to vector<1x128xf32>
    %5 = vector.broadcast %4 : vector<1x128xf32> to vector<8x128xf32>
    %c0_3 = arith.constant 0 : index
    %c0_4 = arith.constant 0 : index
    %6 = vector.load %arg13[%c0_3, %c0_4] : memref<1x128xf32, #tpu.memory_space<vmem>>, vector<1x128xf32>
    %7 = vector.shape_cast %6 : vector<1x128xf32> to vector<1x128xf32>
    %8 = vector.broadcast %7 : vector<1x128xf32> to vector<8x128xf32>
    %c0_5 = arith.constant 0 : index
    %c0_6 = arith.constant 0 : index
    %9 = vector.load %arg15[%c0_5, %c0_6] : memref<1x8xf32, #tpu.memory_space<vmem>>, vector<1x8xf32>
    %10 = vector.shape_cast %9 : vector<1x8xf32> to vector<1x8xf32>
    %11 = vector.broadcast %10 : vector<1x8xf32> to vector<8x8xf32>
    %cst = arith.constant 0.000000e+00 : f32
    %12 = vector.broadcast %cst : f32 to vector<8x32xf32>
    %cst_7 = arith.constant 0.000000e+00 : f32
    %13 = vector.broadcast %cst_7 : f32 to vector<8x32xf32>
    %cst_8 = arith.constant 0.000000e+00 : f32
    %14 = vector.broadcast %cst_8 : f32 to vector<8x32xf32>
    %cst_9 = arith.constant 0.000000e+00 : f32
    %15 = vector.broadcast %cst_9 : f32 to vector<8x32xf32>
    %c0_10 = arith.constant 0 : index
    %c0_11 = arith.constant 0 : index
    %16 = vector.load %arg0[%c0_10, %c0_11] : memref<64x8xf32, #tpu.memory_space<vmem>>, vector<64x8xf32>
    %c0_12 = arith.constant 0 : index
    %c0_13 = arith.constant 0 : index
    %17 = vector.load %arg2[%c0_12, %c0_13] : memref<8x128xf32, #tpu.memory_space<vmem>>, vector<8x128xf32>
    %cst_14 = arith.constant dense<0.000000e+00> : vector<64x128xf32>
    %18 = tpu.matmul %16, %17, %cst_14 {dimension_numbers = #tpu.dot_dimension_numbers<[1], [0], [0], [1], [0, 0, 1, 1], [], []>} : vector<64x8xf32>, vector<8x128xf32>, vector<64x128xf32> -> vector<64x128xf32>
    %c0_15 = arith.constant 0 : index
    %c0_16 = arith.constant 0 : index
    %19 = vector.load %arg4[%c0_15, %c0_16] : memref<1x128xf32, #tpu.memory_space<vmem>>, vector<1x128xf32>
    %20 = vector.shape_cast %19 : vector<1x128xf32> to vector<1x128xf32>
    %21 = vector.broadcast %20 : vector<1x128xf32> to vector<64x128xf32>
    %22 = arith.addf %18, %21 : vector<64x128xf32>
    %23 = vector.extract_strided_slice %22 {offsets = [0, 0], sizes = [8, 128], strides = [1, 1]} : vector<64x128xf32> to vector<8x128xf32>
    %c0_17 = arith.constant 0 : index
    %c0_18 = arith.constant 0 : index
    %24 = vector.load %arg3[%c0_17, %c0_18] : memref<32x128xf32, #tpu.memory_space<vmem>>, vector<32x128xf32>
    %cst_19 = arith.constant dense<0.000000e+00> : vector<8x128xf32>
    %25 = tpu.matmul %12, %24, %cst_19 {dimension_numbers = #tpu.dot_dimension_numbers<[1], [0], [0], [1], [0, 0, 1, 1], [], []>} : vector<8x32xf32>, vector<32x128xf32>, vector<8x128xf32> -> vector<8x128xf32>
    %26 = arith.addf %23, %25 : vector<8x128xf32>
    %27 = vector.extract_strided_slice %26 {offsets = [0, 0], sizes = [8, 96], strides = [1, 1]} : vector<8x128xf32> to vector<8x96xf32>
    %28 = arith.negf %27 : vector<8x96xf32>
    %29 = math.exp %28 : vector<8x96xf32>
    %cst_20 = arith.constant 1.000000e+00 : f32
    %30 = vector.broadcast %cst_20 : f32 to vector<8x96xf32>
    %31 = arith.addf %30, %29 : vector<8x96xf32>
    %32 = arith.divf %30, %31 : vector<8x96xf32>
    %33 = vector.extract_strided_slice %26 {offsets = [0, 96], sizes = [8, 32], strides = [1, 1]} : vector<8x128xf32> to vector<8x32xf32>
    %34 = math.tanh %33 : vector<8x32xf32>
    %35 = vector.extract_strided_slice %32 {offsets = [0, 0], sizes = [8, 32], strides = [1, 1]} : vector<8x96xf32> to vector<8x32xf32>
    %36 = vector.extract_strided_slice %32 {offsets = [0, 32], sizes = [8, 32], strides = [1, 1]} : vector<8x96xf32> to vector<8x32xf32>
    %37 = vector.extract_strided_slice %32 {offsets = [0, 64], sizes = [8, 32], strides = [1, 1]} : vector<8x96xf32> to vector<8x32xf32>
    %38 = arith.mulf %36, %14 : vector<8x32xf32>
    %39 = arith.mulf %35, %34 : vector<8x32xf32>
    %40 = arith.addf %38, %39 : vector<8x32xf32>
    %41 = math.tanh %40 : vector<8x32xf32>
    %42 = arith.mulf %37, %41 : vector<8x32xf32>
    %c0_21 = arith.constant 0 : index
    %c0_22 = arith.constant 0 : index
    %43 = vector.load %arg5[%c0_21, %c0_22] : memref<32x128xf32, #tpu.memory_space<vmem>>, vector<32x128xf32>
    %cst_23 = arith.constant dense<0.000000e+00> : vector<8x128xf32>
    %44 = tpu.matmul %42, %43, %cst_23 {dimension_numbers = #tpu.dot_dimension_numbers<[1], [0], [0], [1], [0, 0, 1, 1], [], []>} : vector<8x32xf32>, vector<32x128xf32>, vector<8x128xf32> -> vector<8x128xf32>
    %c0_24 = arith.constant 0 : index
    %c0_25 = arith.constant 0 : index
    %45 = vector.load %arg6[%c0_24, %c0_25] : memref<32x128xf32, #tpu.memory_space<vmem>>, vector<32x128xf32>
    %cst_26 = arith.constant dense<0.000000e+00> : vector<8x128xf32>
    %46 = tpu.matmul %13, %45, %cst_26 {dimension_numbers = #tpu.dot_dimension_numbers<[1], [0], [0], [1], [0, 0, 1, 1], [], []>} : vector<8x32xf32>, vector<32x128xf32>, vector<8x128xf32> -> vector<8x128xf32>
    %47 = arith.addf %44, %46 : vector<8x128xf32>
    %48 = arith.addf %47, %2 : vector<8x128xf32>
    %49 = vector.extract_strided_slice %48 {offsets = [0, 0], sizes = [8, 96], strides = [1, 1]} : vector<8x128xf32> to vector<8x96xf32>
    %50 = arith.negf %49 : vector<8x96xf32>
    %51 = math.exp %50 : vector<8x96xf32>
    %cst_27 = arith.constant 1.000000e+00 : f32
    %52 = vector.broadcast %cst_27 : f32 to vector<8x96xf32>
    %53 = arith.addf %52, %51 : vector<8x96xf32>
    %54 = arith.divf %52, %53 : vector<8x96xf32>
    %55 = vector.extract_strided_slice %48 {offsets = [0, 96], sizes = [8, 32], strides = [1, 1]} : vector<8x128xf32> to vector<8x32xf32>
    %56 = math.tanh %55 : vector<8x32xf32>
    %57 = vector.extract_strided_slice %54 {offsets = [0, 0], sizes = [8, 32], strides = [1, 1]} : vector<8x96xf32> to vector<8x32xf32>
    %58 = vector.extract_strided_slice %54 {offsets = [0, 32], sizes = [8, 32], strides = [1, 1]} : vector<8x96xf32> to vector<8x32xf32>
    %59 = vector.extract_strided_slice %54 {offsets = [0, 64], sizes = [8, 32], strides = [1, 1]} : vector<8x96xf32> to vector<8x32xf32>
    %60 = arith.mulf %58, %15 : vector<8x32xf32>
    %61 = arith.mulf %57, %56 : vector<8x32xf32>
    %62 = arith.addf %60, %61 : vector<8x32xf32>
    %63 = math.tanh %62 : vector<8x32xf32>
    %64 = arith.mulf %59, %63 : vector<8x32xf32>
    %65 = vector.extract_strided_slice %22 {offsets = [8, 0], sizes = [8, 128], strides = [1, 1]} : vector<64x128xf32> to vector<8x128xf32>
    %c0_28 = arith.constant 0 : index
    %c0_29 = arith.constant 0 : index
    %66 = vector.load %arg3[%c0_28, %c0_29] : memref<32x128xf32, #tpu.memory_space<vmem>>, vector<32x128xf32>
    %cst_30 = arith.constant dense<0.000000e+00> : vector<8x128xf32>
    %67 = tpu.matmul %42, %66, %cst_30 {dimension_numbers = #tpu.dot_dimension_numbers<[1], [0], [0], [1], [0, 0, 1, 1], [], []>} : vector<8x32xf32>, vector<32x128xf32>, vector<8x128xf32> -> vector<8x128xf32>
    %68 = arith.addf %65, %67 : vector<8x128xf32>
    %69 = vector.extract_strided_slice %68 {offsets = [0, 0], sizes = [8, 96], strides = [1, 1]} : vector<8x128xf32> to vector<8x96xf32>
    %70 = arith.negf %69 : vector<8x96xf32>
    %71 = math.exp %70 : vector<8x96xf32>
    %cst_31 = arith.constant 1.000000e+00 : f32
    %72 = vector.broadcast %cst_31 : f32 to vector<8x96xf32>
    %73 = arith.addf %72, %71 : vector<8x96xf32>
    %74 = arith.divf %72, %73 : vector<8x96xf32>
    %75 = vector.extract_strided_slice %68 {offsets = [0, 96], sizes = [8, 32], strides = [1, 1]} : vector<8x128xf32> to vector<8x32xf32>
    %76 = math.tanh %75 : vector<8x32xf32>
    %77 = vector.extract_strided_slice %74 {offsets = [0, 0], sizes = [8, 32], strides = [1, 1]} : vector<8x96xf32> to vector<8x32xf32>
    %78 = vector.extract_strided_slice %74 {offsets = [0, 32], sizes = [8, 32], strides = [1, 1]} : vector<8x96xf32> to vector<8x32xf32>
    %79 = vector.extract_strided_slice %74 {offsets = [0, 64], sizes = [8, 32], strides = [1, 1]} : vector<8x96xf32> to vector<8x32xf32>
    %80 = arith.mulf %78, %40 : vector<8x32xf32>
    %81 = arith.mulf %77, %76 : vector<8x32xf32>
    %82 = arith.addf %80, %81 : vector<8x32xf32>
    %83 = math.tanh %82 : vector<8x32xf32>
    %84 = arith.mulf %79, %83 : vector<8x32xf32>
    %c0_32 = arith.constant 0 : index
    %c0_33 = arith.constant 0 : index
    %85 = vector.load %arg5[%c0_32, %c0_33] : memref<32x128xf32, #tpu.memory_space<vmem>>, vector<32x128xf32>
    %cst_34 = arith.constant dense<0.000000e+00> : vector<8x128xf32>
    %86 = tpu.matmul %84, %85, %cst_34 {dimension_numbers = #tpu.dot_dimension_numbers<[1], [0], [0], [1], [0, 0, 1, 1], [], []>} : vector<8x32xf32>, vector<32x128xf32>, vector<8x128xf32> -> vector<8x128xf32>
    %c0_35 = arith.constant 0 : index
    %c0_36 = arith.constant 0 : index
    %87 = vector.load %arg6[%c0_35, %c0_36] : memref<32x128xf32, #tpu.memory_space<vmem>>, vector<32x128xf32>
    %cst_37 = arith.constant dense<0.000000e+00> : vector<8x128xf32>
    %88 = tpu.matmul %64, %87, %cst_37 {dimension_numbers = #tpu.dot_dimension_numbers<[1], [0], [0], [1], [0, 0, 1, 1], [], []>} : vector<8x32xf32>, vector<32x128xf32>, vector<8x128xf32> -> vector<8x128xf32>
    %89 = arith.addf %86, %88 : vector<8x128xf32>
    %90 = arith.addf %89, %2 : vector<8x128xf32>
    %91 = vector.extract_strided_slice %90 {offsets = [0, 0], sizes = [8, 96], strides = [1, 1]} : vector<8x128xf32> to vector<8x96xf32>
    %92 = arith.negf %91 : vector<8x96xf32>
    %93 = math.exp %92 : vector<8x96xf32>
    %cst_38 = arith.constant 1.000000e+00 : f32
    %94 = vector.broadcast %cst_38 : f32 to vector<8x96xf32>
    %95 = arith.addf %94, %93 : vector<8x96xf32>
    %96 = arith.divf %94, %95 : vector<8x96xf32>
    %97 = vector.extract_strided_slice %90 {offsets = [0, 96], sizes = [8, 32], strides = [1, 1]} : vector<8x128xf32> to vector<8x32xf32>
    %98 = math.tanh %97 : vector<8x32xf32>
    %99 = vector.extract_strided_slice %96 {offsets = [0, 0], sizes = [8, 32], strides = [1, 1]} : vector<8x96xf32> to vector<8x32xf32>
    %100 = vector.extract_strided_slice %96 {offsets = [0, 32], sizes = [8, 32], strides = [1, 1]} : vector<8x96xf32> to vector<8x32xf32>
    %101 = vector.extract_strided_slice %96 {offsets = [0, 64], sizes = [8, 32], strides = [1, 1]} : vector<8x96xf32> to vector<8x32xf32>
    %102 = arith.mulf %100, %62 : vector<8x32xf32>
    %103 = arith.mulf %99, %98 : vector<8x32xf32>
    %104 = arith.addf %102, %103 : vector<8x32xf32>
    %105 = math.tanh %104 : vector<8x32xf32>
    %106 = arith.mulf %101, %105 : vector<8x32xf32>
    %107 = vector.extract_strided_slice %22 {offsets = [16, 0], sizes = [8, 128], strides = [1, 1]} : vector<64x128xf32> to vector<8x128xf32>
    %c0_39 = arith.constant 0 : index
    %c0_40 = arith.constant 0 : index
    %108 = vector.load %arg3[%c0_39, %c0_40] : memref<32x128xf32, #tpu.memory_space<vmem>>, vector<32x128xf32>
    %cst_41 = arith.constant dense<0.000000e+00> : vector<8x128xf32>
    %109 = tpu.matmul %84, %108, %cst_41 {dimension_numbers = #tpu.dot_dimension_numbers<[1], [0], [0], [1], [0, 0, 1, 1], [], []>} : vector<8x32xf32>, vector<32x128xf32>, vector<8x128xf32> -> vector<8x128xf32>
    %110 = arith.addf %107, %109 : vector<8x128xf32>
    %111 = vector.extract_strided_slice %110 {offsets = [0, 0], sizes = [8, 96], strides = [1, 1]} : vector<8x128xf32> to vector<8x96xf32>
    %112 = arith.negf %111 : vector<8x96xf32>
    %113 = math.exp %112 : vector<8x96xf32>
    %cst_42 = arith.constant 1.000000e+00 : f32
    %114 = vector.broadcast %cst_42 : f32 to vector<8x96xf32>
    %115 = arith.addf %114, %113 : vector<8x96xf32>
    %116 = arith.divf %114, %115 : vector<8x96xf32>
    %117 = vector.extract_strided_slice %110 {offsets = [0, 96], sizes = [8, 32], strides = [1, 1]} : vector<8x128xf32> to vector<8x32xf32>
    %118 = math.tanh %117 : vector<8x32xf32>
    %119 = vector.extract_strided_slice %116 {offsets = [0, 0], sizes = [8, 32], strides = [1, 1]} : vector<8x96xf32> to vector<8x32xf32>
    %120 = vector.extract_strided_slice %116 {offsets = [0, 32], sizes = [8, 32], strides = [1, 1]} : vector<8x96xf32> to vector<8x32xf32>
    %121 = vector.extract_strided_slice %116 {offsets = [0, 64], sizes = [8, 32], strides = [1, 1]} : vector<8x96xf32> to vector<8x32xf32>
    %122 = arith.mulf %120, %82 : vector<8x32xf32>
    %123 = arith.mulf %119, %118 : vector<8x32xf32>
    %124 = arith.addf %122, %123 : vector<8x32xf32>
    %125 = math.tanh %124 : vector<8x32xf32>
    %126 = arith.mulf %121, %125 : vector<8x32xf32>
    %c0_43 = arith.constant 0 : index
    %c0_44 = arith.constant 0 : index
    %127 = vector.load %arg5[%c0_43, %c0_44] : memref<32x128xf32, #tpu.memory_space<vmem>>, vector<32x128xf32>
    %cst_45 = arith.constant dense<0.000000e+00> : vector<8x128xf32>
    %128 = tpu.matmul %126, %127, %cst_45 {dimension_numbers = #tpu.dot_dimension_numbers<[1], [0], [0], [1], [0, 0, 1, 1], [], []>} : vector<8x32xf32>, vector<32x128xf32>, vector<8x128xf32> -> vector<8x128xf32>
    %c0_46 = arith.constant 0 : index
    %c0_47 = arith.constant 0 : index
    %129 = vector.load %arg6[%c0_46, %c0_47] : memref<32x128xf32, #tpu.memory_space<vmem>>, vector<32x128xf32>
    %cst_48 = arith.constant dense<0.000000e+00> : vector<8x128xf32>
    %130 = tpu.matmul %106, %129, %cst_48 {dimension_numbers = #tpu.dot_dimension_numbers<[1], [0], [0], [1], [0, 0, 1, 1], [], []>} : vector<8x32xf32>, vector<32x128xf32>, vector<8x128xf32> -> vector<8x128xf32>
    %131 = arith.addf %128, %130 : vector<8x128xf32>
    %132 = arith.addf %131, %2 : vector<8x128xf32>
    %133 = vector.extract_strided_slice %132 {offsets = [0, 0], sizes = [8, 96], strides = [1, 1]} : vector<8x128xf32> to vector<8x96xf32>
    %134 = arith.negf %133 : vector<8x96xf32>
    %135 = math.exp %134 : vector<8x96xf32>
    %cst_49 = arith.constant 1.000000e+00 : f32
    %136 = vector.broadcast %cst_49 : f32 to vector<8x96xf32>
    %137 = arith.addf %136, %135 : vector<8x96xf32>
    %138 = arith.divf %136, %137 : vector<8x96xf32>
    %139 = vector.extract_strided_slice %132 {offsets = [0, 96], sizes = [8, 32], strides = [1, 1]} : vector<8x128xf32> to vector<8x32xf32>
    %140 = math.tanh %139 : vector<8x32xf32>
    %141 = vector.extract_strided_slice %138 {offsets = [0, 0], sizes = [8, 32], strides = [1, 1]} : vector<8x96xf32> to vector<8x32xf32>
    %142 = vector.extract_strided_slice %138 {offsets = [0, 32], sizes = [8, 32], strides = [1, 1]} : vector<8x96xf32> to vector<8x32xf32>
    %143 = vector.extract_strided_slice %138 {offsets = [0, 64], sizes = [8, 32], strides = [1, 1]} : vector<8x96xf32> to vector<8x32xf32>
    %144 = arith.mulf %142, %104 : vector<8x32xf32>
    %145 = arith.mulf %141, %140 : vector<8x32xf32>
    %146 = arith.addf %144, %145 : vector<8x32xf32>
    %147 = math.tanh %146 : vector<8x32xf32>
    %148 = arith.mulf %143, %147 : vector<8x32xf32>
    %149 = vector.extract_strided_slice %22 {offsets = [24, 0], sizes = [8, 128], strides = [1, 1]} : vector<64x128xf32> to vector<8x128xf32>
    %c0_50 = arith.constant 0 : index
    %c0_51 = arith.constant 0 : index
    %150 = vector.load %arg3[%c0_50, %c0_51] : memref<32x128xf32, #tpu.memory_space<vmem>>, vector<32x128xf32>
    %cst_52 = arith.constant dense<0.000000e+00> : vector<8x128xf32>
    %151 = tpu.matmul %126, %150, %cst_52 {dimension_numbers = #tpu.dot_dimension_numbers<[1], [0], [0], [1], [0, 0, 1, 1], [], []>} : vector<8x32xf32>, vector<32x128xf32>, vector<8x128xf32> -> vector<8x128xf32>
    %152 = arith.addf %149, %151 : vector<8x128xf32>
    %153 = vector.extract_strided_slice %152 {offsets = [0, 0], sizes = [8, 96], strides = [1, 1]} : vector<8x128xf32> to vector<8x96xf32>
    %154 = arith.negf %153 : vector<8x96xf32>
    %155 = math.exp %154 : vector<8x96xf32>
    %cst_53 = arith.constant 1.000000e+00 : f32
    %156 = vector.broadcast %cst_53 : f32 to vector<8x96xf32>
    %157 = arith.addf %156, %155 : vector<8x96xf32>
    %158 = arith.divf %156, %157 : vector<8x96xf32>
    %159 = vector.extract_strided_slice %152 {offsets = [0, 96], sizes = [8, 32], strides = [1, 1]} : vector<8x128xf32> to vector<8x32xf32>
    %160 = math.tanh %159 : vector<8x32xf32>
    %161 = vector.extract_strided_slice %158 {offsets = [0, 0], sizes = [8, 32], strides = [1, 1]} : vector<8x96xf32> to vector<8x32xf32>
    %162 = vector.extract_strided_slice %158 {offsets = [0, 32], sizes = [8, 32], strides = [1, 1]} : vector<8x96xf32> to vector<8x32xf32>
    %163 = vector.extract_strided_slice %158 {offsets = [0, 64], sizes = [8, 32], strides = [1, 1]} : vector<8x96xf32> to vector<8x32xf32>
    %164 = arith.mulf %162, %124 : vector<8x32xf32>
    %165 = arith.mulf %161, %160 : vector<8x32xf32>
    %166 = arith.addf %164, %165 : vector<8x32xf32>
    %167 = math.tanh %166 : vector<8x32xf32>
    %168 = arith.mulf %163, %167 : vector<8x32xf32>
    %c0_54 = arith.constant 0 : index
    %c0_55 = arith.constant 0 : index
    %169 = vector.load %arg5[%c0_54, %c0_55] : memref<32x128xf32, #tpu.memory_space<vmem>>, vector<32x128xf32>
    %cst_56 = arith.constant dense<0.000000e+00> : vector<8x128xf32>
    %170 = tpu.matmul %168, %169, %cst_56 {dimension_numbers = #tpu.dot_dimension_numbers<[1], [0], [0], [1], [0, 0, 1, 1], [], []>} : vector<8x32xf32>, vector<32x128xf32>, vector<8x128xf32> -> vector<8x128xf32>
    %c0_57 = arith.constant 0 : index
    %c0_58 = arith.constant 0 : index
    %171 = vector.load %arg6[%c0_57, %c0_58] : memref<32x128xf32, #tpu.memory_space<vmem>>, vector<32x128xf32>
    %cst_59 = arith.constant dense<0.000000e+00> : vector<8x128xf32>
    %172 = tpu.matmul %148, %171, %cst_59 {dimension_numbers = #tpu.dot_dimension_numbers<[1], [0], [0], [1], [0, 0, 1, 1], [], []>} : vector<8x32xf32>, vector<32x128xf32>, vector<8x128xf32> -> vector<8x128xf32>
    %173 = arith.addf %170, %172 : vector<8x128xf32>
    %174 = arith.addf %173, %2 : vector<8x128xf32>
    %175 = vector.extract_strided_slice %174 {offsets = [0, 0], sizes = [8, 96], strides = [1, 1]} : vector<8x128xf32> to vector<8x96xf32>
    %176 = arith.negf %175 : vector<8x96xf32>
    %177 = math.exp %176 : vector<8x96xf32>
    %cst_60 = arith.constant 1.000000e+00 : f32
    %178 = vector.broadcast %cst_60 : f32 to vector<8x96xf32>
    %179 = arith.addf %178, %177 : vector<8x96xf32>
    %180 = arith.divf %178, %179 : vector<8x96xf32>
    %181 = vector.extract_strided_slice %174 {offsets = [0, 96], sizes = [8, 32], strides = [1, 1]} : vector<8x128xf32> to vector<8x32xf32>
    %182 = math.tanh %181 : vector<8x32xf32>
    %183 = vector.extract_strided_slice %180 {offsets = [0, 0], sizes = [8, 32], strides = [1, 1]} : vector<8x96xf32> to vector<8x32xf32>
    %184 = vector.extract_strided_slice %180 {offsets = [0, 32], sizes = [8, 32], strides = [1, 1]} : vector<8x96xf32> to vector<8x32xf32>
    %185 = vector.extract_strided_slice %180 {offsets = [0, 64], sizes = [8, 32], strides = [1, 1]} : vector<8x96xf32> to vector<8x32xf32>
    %186 = arith.mulf %184, %146 : vector<8x32xf32>
    %187 = arith.mulf %183, %182 : vector<8x32xf32>
    %188 = arith.addf %186, %187 : vector<8x32xf32>
    %189 = math.tanh %188 : vector<8x32xf32>
    %190 = arith.mulf %185, %189 : vector<8x32xf32>
    %191 = vector.extract_strided_slice %22 {offsets = [32, 0], sizes = [8, 128], strides = [1, 1]} : vector<64x128xf32> to vector<8x128xf32>
    %c0_61 = arith.constant 0 : index
    %c0_62 = arith.constant 0 : index
    %192 = vector.load %arg3[%c0_61, %c0_62] : memref<32x128xf32, #tpu.memory_space<vmem>>, vector<32x128xf32>
    %cst_63 = arith.constant dense<0.000000e+00> : vector<8x128xf32>
    %193 = tpu.matmul %168, %192, %cst_63 {dimension_numbers = #tpu.dot_dimension_numbers<[1], [0], [0], [1], [0, 0, 1, 1], [], []>} : vector<8x32xf32>, vector<32x128xf32>, vector<8x128xf32> -> vector<8x128xf32>
    %194 = arith.addf %191, %193 : vector<8x128xf32>
    %195 = vector.extract_strided_slice %194 {offsets = [0, 0], sizes = [8, 96], strides = [1, 1]} : vector<8x128xf32> to vector<8x96xf32>
    %196 = arith.negf %195 : vector<8x96xf32>
    %197 = math.exp %196 : vector<8x96xf32>
    %cst_64 = arith.constant 1.000000e+00 : f32
    %198 = vector.broadcast %cst_64 : f32 to vector<8x96xf32>
    %199 = arith.addf %198, %197 : vector<8x96xf32>
    %200 = arith.divf %198, %199 : vector<8x96xf32>
    %201 = vector.extract_strided_slice %194 {offsets = [0, 96], sizes = [8, 32], strides = [1, 1]} : vector<8x128xf32> to vector<8x32xf32>
    %202 = math.tanh %201 : vector<8x32xf32>
    %203 = vector.extract_strided_slice %200 {offsets = [0, 0], sizes = [8, 32], strides = [1, 1]} : vector<8x96xf32> to vector<8x32xf32>
    %204 = vector.extract_strided_slice %200 {offsets = [0, 32], sizes = [8, 32], strides = [1, 1]} : vector<8x96xf32> to vector<8x32xf32>
    %205 = vector.extract_strided_slice %200 {offsets = [0, 64], sizes = [8, 32], strides = [1, 1]} : vector<8x96xf32> to vector<8x32xf32>
    %206 = arith.mulf %204, %166 : vector<8x32xf32>
    %207 = arith.mulf %203, %202 : vector<8x32xf32>
    %208 = arith.addf %206, %207 : vector<8x32xf32>
    %209 = math.tanh %208 : vector<8x32xf32>
    %210 = arith.mulf %205, %209 : vector<8x32xf32>
    %c0_65 = arith.constant 0 : index
    %c0_66 = arith.constant 0 : index
    %211 = vector.load %arg5[%c0_65, %c0_66] : memref<32x128xf32, #tpu.memory_space<vmem>>, vector<32x128xf32>
    %cst_67 = arith.constant dense<0.000000e+00> : vector<8x128xf32>
    %212 = tpu.matmul %210, %211, %cst_67 {dimension_numbers = #tpu.dot_dimension_numbers<[1], [0], [0], [1], [0, 0, 1, 1], [], []>} : vector<8x32xf32>, vector<32x128xf32>, vector<8x128xf32> -> vector<8x128xf32>
    %c0_68 = arith.constant 0 : index
    %c0_69 = arith.constant 0 : index
    %213 = vector.load %arg6[%c0_68, %c0_69] : memref<32x128xf32, #tpu.memory_space<vmem>>, vector<32x128xf32>
    %cst_70 = arith.constant dense<0.000000e+00> : vector<8x128xf32>
    %214 = tpu.matmul %190, %213, %cst_70 {dimension_numbers = #tpu.dot_dimension_numbers<[1], [0], [0], [1], [0, 0, 1, 1], [], []>} : vector<8x32xf32>, vector<32x128xf32>, vector<8x128xf32> -> vector<8x128xf32>
    %215 = arith.addf %212, %214 : vector<8x128xf32>
    %216 = arith.addf %215, %2 : vector<8x128xf32>
    %217 = vector.extract_strided_slice %216 {offsets = [0, 0], sizes = [8, 96], strides = [1, 1]} : vector<8x128xf32> to vector<8x96xf32>
    %218 = arith.negf %217 : vector<8x96xf32>
    %219 = math.exp %218 : vector<8x96xf32>
    %cst_71 = arith.constant 1.000000e+00 : f32
    %220 = vector.broadcast %cst_71 : f32 to vector<8x96xf32>
    %221 = arith.addf %220, %219 : vector<8x96xf32>
    %222 = arith.divf %220, %221 : vector<8x96xf32>
    %223 = vector.extract_strided_slice %216 {offsets = [0, 96], sizes = [8, 32], strides = [1, 1]} : vector<8x128xf32> to vector<8x32xf32>
    %224 = math.tanh %223 : vector<8x32xf32>
    %225 = vector.extract_strided_slice %222 {offsets = [0, 0], sizes = [8, 32], strides = [1, 1]} : vector<8x96xf32> to vector<8x32xf32>
    %226 = vector.extract_strided_slice %222 {offsets = [0, 32], sizes = [8, 32], strides = [1, 1]} : vector<8x96xf32> to vector<8x32xf32>
    %227 = vector.extract_strided_slice %222 {offsets = [0, 64], sizes = [8, 32], strides = [1, 1]} : vector<8x96xf32> to vector<8x32xf32>
    %228 = arith.mulf %226, %188 : vector<8x32xf32>
    %229 = arith.mulf %225, %224 : vector<8x32xf32>
    %230 = arith.addf %228, %229 : vector<8x32xf32>
    %231 = math.tanh %230 : vector<8x32xf32>
    %232 = arith.mulf %227, %231 : vector<8x32xf32>
    %233 = vector.extract_strided_slice %22 {offsets = [40, 0], sizes = [8, 128], strides = [1, 1]} : vector<64x128xf32> to vector<8x128xf32>
    %c0_72 = arith.constant 0 : index
    %c0_73 = arith.constant 0 : index
    %234 = vector.load %arg3[%c0_72, %c0_73] : memref<32x128xf32, #tpu.memory_space<vmem>>, vector<32x128xf32>
    %cst_74 = arith.constant dense<0.000000e+00> : vector<8x128xf32>
    %235 = tpu.matmul %210, %234, %cst_74 {dimension_numbers = #tpu.dot_dimension_numbers<[1], [0], [0], [1], [0, 0, 1, 1], [], []>} : vector<8x32xf32>, vector<32x128xf32>, vector<8x128xf32> -> vector<8x128xf32>
    %236 = arith.addf %233, %235 : vector<8x128xf32>
    %237 = vector.extract_strided_slice %236 {offsets = [0, 0], sizes = [8, 96], strides = [1, 1]} : vector<8x128xf32> to vector<8x96xf32>
    %238 = arith.negf %237 : vector<8x96xf32>
    %239 = math.exp %238 : vector<8x96xf32>
    %cst_75 = arith.constant 1.000000e+00 : f32
    %240 = vector.broadcast %cst_75 : f32 to vector<8x96xf32>
    %241 = arith.addf %240, %239 : vector<8x96xf32>
    %242 = arith.divf %240, %241 : vector<8x96xf32>
    %243 = vector.extract_strided_slice %236 {offsets = [0, 96], sizes = [8, 32], strides = [1, 1]} : vector<8x128xf32> to vector<8x32xf32>
    %244 = math.tanh %243 : vector<8x32xf32>
    %245 = vector.extract_strided_slice %242 {offsets = [0, 0], sizes = [8, 32], strides = [1, 1]} : vector<8x96xf32> to vector<8x32xf32>
    %246 = vector.extract_strided_slice %242 {offsets = [0, 32], sizes = [8, 32], strides = [1, 1]} : vector<8x96xf32> to vector<8x32xf32>
    %247 = vector.extract_strided_slice %242 {offsets = [0, 64], sizes = [8, 32], strides = [1, 1]} : vector<8x96xf32> to vector<8x32xf32>
    %248 = arith.mulf %246, %208 : vector<8x32xf32>
    %249 = arith.mulf %245, %244 : vector<8x32xf32>
    %250 = arith.addf %248, %249 : vector<8x32xf32>
    %251 = math.tanh %250 : vector<8x32xf32>
    %252 = arith.mulf %247, %251 : vector<8x32xf32>
    %c0_76 = arith.constant 0 : index
    %c0_77 = arith.constant 0 : index
    %253 = vector.load %arg5[%c0_76, %c0_77] : memref<32x128xf32, #tpu.memory_space<vmem>>, vector<32x128xf32>
    %cst_78 = arith.constant dense<0.000000e+00> : vector<8x128xf32>
    %254 = tpu.matmul %252, %253, %cst_78 {dimension_numbers = #tpu.dot_dimension_numbers<[1], [0], [0], [1], [0, 0, 1, 1], [], []>} : vector<8x32xf32>, vector<32x128xf32>, vector<8x128xf32> -> vector<8x128xf32>
    %c0_79 = arith.constant 0 : index
    %c0_80 = arith.constant 0 : index
    %255 = vector.load %arg6[%c0_79, %c0_80] : memref<32x128xf32, #tpu.memory_space<vmem>>, vector<32x128xf32>
    %cst_81 = arith.constant dense<0.000000e+00> : vector<8x128xf32>
    %256 = tpu.matmul %232, %255, %cst_81 {dimension_numbers = #tpu.dot_dimension_numbers<[1], [0], [0], [1], [0, 0, 1, 1], [], []>} : vector<8x32xf32>, vector<32x128xf32>, vector<8x128xf32> -> vector<8x128xf32>
    %257 = arith.addf %254, %256 : vector<8x128xf32>
    %258 = arith.addf %257, %2 : vector<8x128xf32>
    %259 = vector.extract_strided_slice %258 {offsets = [0, 0], sizes = [8, 96], strides = [1, 1]} : vector<8x128xf32> to vector<8x96xf32>
    %260 = arith.negf %259 : vector<8x96xf32>
    %261 = math.exp %260 : vector<8x96xf32>
    %cst_82 = arith.constant 1.000000e+00 : f32
    %262 = vector.broadcast %cst_82 : f32 to vector<8x96xf32>
    %263 = arith.addf %262, %261 : vector<8x96xf32>
    %264 = arith.divf %262, %263 : vector<8x96xf32>
    %265 = vector.extract_strided_slice %258 {offsets = [0, 96], sizes = [8, 32], strides = [1, 1]} : vector<8x128xf32> to vector<8x32xf32>
    %266 = math.tanh %265 : vector<8x32xf32>
    %267 = vector.extract_strided_slice %264 {offsets = [0, 0], sizes = [8, 32], strides = [1, 1]} : vector<8x96xf32> to vector<8x32xf32>
    %268 = vector.extract_strided_slice %264 {offsets = [0, 32], sizes = [8, 32], strides = [1, 1]} : vector<8x96xf32> to vector<8x32xf32>
    %269 = vector.extract_strided_slice %264 {offsets = [0, 64], sizes = [8, 32], strides = [1, 1]} : vector<8x96xf32> to vector<8x32xf32>
    %270 = arith.mulf %268, %230 : vector<8x32xf32>
    %271 = arith.mulf %267, %266 : vector<8x32xf32>
    %272 = arith.addf %270, %271 : vector<8x32xf32>
    %273 = math.tanh %272 : vector<8x32xf32>
    %274 = arith.mulf %269, %273 : vector<8x32xf32>
    %275 = vector.extract_strided_slice %22 {offsets = [48, 0], sizes = [8, 128], strides = [1, 1]} : vector<64x128xf32> to vector<8x128xf32>
    %c0_83 = arith.constant 0 : index
    %c0_84 = arith.constant 0 : index
    %276 = vector.load %arg3[%c0_83, %c0_84] : memref<32x128xf32, #tpu.memory_space<vmem>>, vector<32x128xf32>
    %cst_85 = arith.constant dense<0.000000e+00> : vector<8x128xf32>
    %277 = tpu.matmul %252, %276, %cst_85 {dimension_numbers = #tpu.dot_dimension_numbers<[1], [0], [0], [1], [0, 0, 1, 1], [], []>} : vector<8x32xf32>, vector<32x128xf32>, vector<8x128xf32> -> vector<8x128xf32>
    %278 = arith.addf %275, %277 : vector<8x128xf32>
    %279 = vector.extract_strided_slice %278 {offsets = [0, 0], sizes = [8, 96], strides = [1, 1]} : vector<8x128xf32> to vector<8x96xf32>
    %280 = arith.negf %279 : vector<8x96xf32>
    %281 = math.exp %280 : vector<8x96xf32>
    %cst_86 = arith.constant 1.000000e+00 : f32
    %282 = vector.broadcast %cst_86 : f32 to vector<8x96xf32>
    %283 = arith.addf %282, %281 : vector<8x96xf32>
    %284 = arith.divf %282, %283 : vector<8x96xf32>
    %285 = vector.extract_strided_slice %278 {offsets = [0, 96], sizes = [8, 32], strides = [1, 1]} : vector<8x128xf32> to vector<8x32xf32>
    %286 = math.tanh %285 : vector<8x32xf32>
    %287 = vector.extract_strided_slice %284 {offsets = [0, 0], sizes = [8, 32], strides = [1, 1]} : vector<8x96xf32> to vector<8x32xf32>
    %288 = vector.extract_strided_slice %284 {offsets = [0, 32], sizes = [8, 32], strides = [1, 1]} : vector<8x96xf32> to vector<8x32xf32>
    %289 = vector.extract_strided_slice %284 {offsets = [0, 64], sizes = [8, 32], strides = [1, 1]} : vector<8x96xf32> to vector<8x32xf32>
    %290 = arith.mulf %288, %250 : vector<8x32xf32>
    %291 = arith.mulf %287, %286 : vector<8x32xf32>
    %292 = arith.addf %290, %291 : vector<8x32xf32>
    %293 = math.tanh %292 : vector<8x32xf32>
    %294 = arith.mulf %289, %293 : vector<8x32xf32>
    %c0_87 = arith.constant 0 : index
    %c0_88 = arith.constant 0 : index
    %295 = vector.load %arg5[%c0_87, %c0_88] : memref<32x128xf32, #tpu.memory_space<vmem>>, vector<32x128xf32>
    %cst_89 = arith.constant dense<0.000000e+00> : vector<8x128xf32>
    %296 = tpu.matmul %294, %295, %cst_89 {dimension_numbers = #tpu.dot_dimension_numbers<[1], [0], [0], [1], [0, 0, 1, 1], [], []>} : vector<8x32xf32>, vector<32x128xf32>, vector<8x128xf32> -> vector<8x128xf32>
    %c0_90 = arith.constant 0 : index
    %c0_91 = arith.constant 0 : index
    %297 = vector.load %arg6[%c0_90, %c0_91] : memref<32x128xf32, #tpu.memory_space<vmem>>, vector<32x128xf32>
    %cst_92 = arith.constant dense<0.000000e+00> : vector<8x128xf32>
    %298 = tpu.matmul %274, %297, %cst_92 {dimension_numbers = #tpu.dot_dimension_numbers<[1], [0], [0], [1], [0, 0, 1, 1], [], []>} : vector<8x32xf32>, vector<32x128xf32>, vector<8x128xf32> -> vector<8x128xf32>
    %299 = arith.addf %296, %298 : vector<8x128xf32>
    %300 = arith.addf %299, %2 : vector<8x128xf32>
    %301 = vector.extract_strided_slice %300 {offsets = [0, 0], sizes = [8, 96], strides = [1, 1]} : vector<8x128xf32> to vector<8x96xf32>
    %302 = arith.negf %301 : vector<8x96xf32>
    %303 = math.exp %302 : vector<8x96xf32>
    %cst_93 = arith.constant 1.000000e+00 : f32
    %304 = vector.broadcast %cst_93 : f32 to vector<8x96xf32>
    %305 = arith.addf %304, %303 : vector<8x96xf32>
    %306 = arith.divf %304, %305 : vector<8x96xf32>
    %307 = vector.extract_strided_slice %300 {offsets = [0, 96], sizes = [8, 32], strides = [1, 1]} : vector<8x128xf32> to vector<8x32xf32>
    %308 = math.tanh %307 : vector<8x32xf32>
    %309 = vector.extract_strided_slice %306 {offsets = [0, 0], sizes = [8, 32], strides = [1, 1]} : vector<8x96xf32> to vector<8x32xf32>
    %310 = vector.extract_strided_slice %306 {offsets = [0, 32], sizes = [8, 32], strides = [1, 1]} : vector<8x96xf32> to vector<8x32xf32>
    %311 = vector.extract_strided_slice %306 {offsets = [0, 64], sizes = [8, 32], strides = [1, 1]} : vector<8x96xf32> to vector<8x32xf32>
    %312 = arith.mulf %310, %272 : vector<8x32xf32>
    %313 = arith.mulf %309, %308 : vector<8x32xf32>
    %314 = arith.addf %312, %313 : vector<8x32xf32>
    %315 = math.tanh %314 : vector<8x32xf32>
    %316 = arith.mulf %311, %315 : vector<8x32xf32>
    %317 = vector.extract_strided_slice %22 {offsets = [56, 0], sizes = [8, 128], strides = [1, 1]} : vector<64x128xf32> to vector<8x128xf32>
    %c0_94 = arith.constant 0 : index
    %c0_95 = arith.constant 0 : index
    %318 = vector.load %arg3[%c0_94, %c0_95] : memref<32x128xf32, #tpu.memory_space<vmem>>, vector<32x128xf32>
    %cst_96 = arith.constant dense<0.000000e+00> : vector<8x128xf32>
    %319 = tpu.matmul %294, %318, %cst_96 {dimension_numbers = #tpu.dot_dimension_numbers<[1], [0], [0], [1], [0, 0, 1, 1], [], []>} : vector<8x32xf32>, vector<32x128xf32>, vector<8x128xf32> -> vector<8x128xf32>
    %320 = arith.addf %317, %319 : vector<8x128xf32>
    %321 = vector.extract_strided_slice %320 {offsets = [0, 0], sizes = [8, 96], strides = [1, 1]} : vector<8x128xf32> to vector<8x96xf32>
    %322 = arith.negf %321 : vector<8x96xf32>
    %323 = math.exp %322 : vector<8x96xf32>
    %cst_97 = arith.constant 1.000000e+00 : f32
    %324 = vector.broadcast %cst_97 : f32 to vector<8x96xf32>
    %325 = arith.addf %324, %323 : vector<8x96xf32>
    %326 = arith.divf %324, %325 : vector<8x96xf32>
    %327 = vector.extract_strided_slice %320 {offsets = [0, 96], sizes = [8, 32], strides = [1, 1]} : vector<8x128xf32> to vector<8x32xf32>
    %328 = math.tanh %327 : vector<8x32xf32>
    %329 = vector.extract_strided_slice %326 {offsets = [0, 0], sizes = [8, 32], strides = [1, 1]} : vector<8x96xf32> to vector<8x32xf32>
    %330 = vector.extract_strided_slice %326 {offsets = [0, 32], sizes = [8, 32], strides = [1, 1]} : vector<8x96xf32> to vector<8x32xf32>
    %331 = vector.extract_strided_slice %326 {offsets = [0, 64], sizes = [8, 32], strides = [1, 1]} : vector<8x96xf32> to vector<8x32xf32>
    %332 = arith.mulf %330, %292 : vector<8x32xf32>
    %333 = arith.mulf %329, %328 : vector<8x32xf32>
    %334 = arith.addf %332, %333 : vector<8x32xf32>
    %335 = math.tanh %334 : vector<8x32xf32>
    %336 = arith.mulf %331, %335 : vector<8x32xf32>
    %c0_98 = arith.constant 0 : index
    %c0_99 = arith.constant 0 : index
    %337 = vector.load %arg5[%c0_98, %c0_99] : memref<32x128xf32, #tpu.memory_space<vmem>>, vector<32x128xf32>
    %cst_100 = arith.constant dense<0.000000e+00> : vector<8x128xf32>
    %338 = tpu.matmul %336, %337, %cst_100 {dimension_numbers = #tpu.dot_dimension_numbers<[1], [0], [0], [1], [0, 0, 1, 1], [], []>} : vector<8x32xf32>, vector<32x128xf32>, vector<8x128xf32> -> vector<8x128xf32>
    %c0_101 = arith.constant 0 : index
    %c0_102 = arith.constant 0 : index
    %339 = vector.load %arg6[%c0_101, %c0_102] : memref<32x128xf32, #tpu.memory_space<vmem>>, vector<32x128xf32>
    %cst_103 = arith.constant dense<0.000000e+00> : vector<8x128xf32>
    %340 = tpu.matmul %316, %339, %cst_103 {dimension_numbers = #tpu.dot_dimension_numbers<[1], [0], [0], [1], [0, 0, 1, 1], [], []>} : vector<8x32xf32>, vector<32x128xf32>, vector<8x128xf32> -> vector<8x128xf32>
    %341 = arith.addf %338, %340 : vector<8x128xf32>
    %342 = arith.addf %341, %2 : vector<8x128xf32>
    %343 = vector.extract_strided_slice %342 {offsets = [0, 0], sizes = [8, 96], strides = [1, 1]} : vector<8x128xf32> to vector<8x96xf32>
    %344 = arith.negf %343 : vector<8x96xf32>
    %345 = math.exp %344 : vector<8x96xf32>
    %cst_104 = arith.constant 1.000000e+00 : f32
    %346 = vector.broadcast %cst_104 : f32 to vector<8x96xf32>
    %347 = arith.addf %346, %345 : vector<8x96xf32>
    %348 = arith.divf %346, %347 : vector<8x96xf32>
    %349 = vector.extract_strided_slice %342 {offsets = [0, 96], sizes = [8, 32], strides = [1, 1]} : vector<8x128xf32> to vector<8x32xf32>
    %350 = math.tanh %349 : vector<8x32xf32>
    %351 = vector.extract_strided_slice %348 {offsets = [0, 0], sizes = [8, 32], strides = [1, 1]} : vector<8x96xf32> to vector<8x32xf32>
    %352 = vector.extract_strided_slice %348 {offsets = [0, 32], sizes = [8, 32], strides = [1, 1]} : vector<8x96xf32> to vector<8x32xf32>
    %353 = vector.extract_strided_slice %348 {offsets = [0, 64], sizes = [8, 32], strides = [1, 1]} : vector<8x96xf32> to vector<8x32xf32>
    %354 = arith.mulf %352, %314 : vector<8x32xf32>
    %355 = arith.mulf %351, %350 : vector<8x32xf32>
    %356 = arith.addf %354, %355 : vector<8x32xf32>
    %357 = math.tanh %356 : vector<8x32xf32>
    %358 = arith.mulf %353, %357 : vector<8x32xf32>
    %cst_105 = arith.constant 0.000000e+00 : f32
    %359 = vector.broadcast %cst_105 : f32 to vector<8x8xf32>
    %c0_106 = arith.constant 0 : index
    %c0_107 = arith.constant 0 : index
    %c0_108 = arith.constant 0 : index
    %360 = vector.load %arg16[%c0_106, %c0_107, %c0_108] : memref<6x8x8xf32, #tpu.memory_space<vmem>>, vector<1x8x8xf32>
    %361 = vector.shape_cast %360 : vector<1x8x8xf32> to vector<8x8xf32>
    %362 = vector.shape_cast %359 : vector<8x8xf32> to vector<1x8x8xf32>
    tpu.vector_store %arg16[%c0_106, %c0_107, %c0_108], %362 {strides = array<i32>} : memref<6x8x8xf32, #tpu.memory_space<vmem>>, vector<1x8x8xf32>,
    %c0_109 = arith.constant 0 : index
    %c0_110 = arith.constant 0 : index
    %363 = vector.load %arg1[%c0_109, %c0_110] : memref<8x8xf32, #tpu.memory_space<vmem>>, vector<8x8xf32>
    %c0_111 = arith.constant 0 : index
    %c0_112 = arith.constant 0 : index
    %364 = vector.load %arg8[%c0_111, %c0_112] : memref<8x128xf32, #tpu.memory_space<vmem>>, vector<8x128xf32>
    %cst_113 = arith.constant dense<0.000000e+00> : vector<8x128xf32>
    %365 = tpu.matmul %363, %364, %cst_113 {dimension_numbers = #tpu.dot_dimension_numbers<[1], [0], [0], [1], [0, 0, 1, 1], [], []>} : vector<8x8xf32>, vector<8x128xf32>, vector<8x128xf32> -> vector<8x128xf32>
    %c0_114 = arith.constant 0 : index
    %c0_115 = arith.constant 0 : index
    %366 = vector.load %arg9[%c0_114, %c0_115] : memref<32x128xf32, #tpu.memory_space<vmem>>, vector<32x128xf32>
    %cst_116 = arith.constant dense<0.000000e+00> : vector<8x128xf32>
    %367 = tpu.matmul %336, %366, %cst_116 {dimension_numbers = #tpu.dot_dimension_numbers<[1], [0], [0], [1], [0, 0, 1, 1], [], []>} : vector<8x32xf32>, vector<32x128xf32>, vector<8x128xf32> -> vector<8x128xf32>
    %368 = arith.addf %365, %367 : vector<8x128xf32>
    %369 = arith.addf %368, %5 : vector<8x128xf32>
    %370 = vector.extract_strided_slice %369 {offsets = [0, 0], sizes = [8, 96], strides = [1, 1]} : vector<8x128xf32> to vector<8x96xf32>
    %371 = arith.negf %370 : vector<8x96xf32>
    %372 = math.exp %371 : vector<8x96xf32>
    %cst_117 = arith.constant 1.000000e+00 : f32
    %373 = vector.broadcast %cst_117 : f32 to vector<8x96xf32>
    %374 = arith.addf %373, %372 : vector<8x96xf32>
    %375 = arith.divf %373, %374 : vector<8x96xf32>
    %376 = vector.extract_strided_slice %369 {offsets = [0, 96], sizes = [8, 32], strides = [1, 1]} : vector<8x128xf32> to vector<8x32xf32>
    %377 = math.tanh %376 : vector<8x32xf32>
    %378 = vector.extract_strided_slice %375 {offsets = [0, 0], sizes = [8, 32], strides = [1, 1]} : vector<8x96xf32> to vector<8x32xf32>
    %379 = vector.extract_strided_slice %375 {offsets = [0, 32], sizes = [8, 32], strides = [1, 1]} : vector<8x96xf32> to vector<8x32xf32>
    %380 = vector.extract_strided_slice %375 {offsets = [0, 64], sizes = [8, 32], strides = [1, 1]} : vector<8x96xf32> to vector<8x32xf32>
    %381 = arith.mulf %379, %334 : vector<8x32xf32>
    %382 = arith.mulf %378, %377 : vector<8x32xf32>
    %383 = arith.addf %381, %382 : vector<8x32xf32>
    %384 = math.tanh %383 : vector<8x32xf32>
    %385 = arith.mulf %380, %384 : vector<8x32xf32>
    %c0_118 = arith.constant 0 : index
    %c0_119 = arith.constant 0 : index
    %386 = vector.load %arg11[%c0_118, %c0_119] : memref<32x128xf32, #tpu.memory_space<vmem>>, vector<32x128xf32>
    %cst_120 = arith.constant dense<0.000000e+00> : vector<8x128xf32>
    %387 = tpu.matmul %385, %386, %cst_120 {dimension_numbers = #tpu.dot_dimension_numbers<[1], [0], [0], [1], [0, 0, 1, 1], [], []>} : vector<8x32xf32>, vector<32x128xf32>, vector<8x128xf32> -> vector<8x128xf32>
    %c0_121 = arith.constant 0 : index
    %c0_122 = arith.constant 0 : index
    %388 = vector.load %arg12[%c0_121, %c0_122] : memref<32x128xf32, #tpu.memory_space<vmem>>, vector<32x128xf32>
    %cst_123 = arith.constant dense<0.000000e+00> : vector<8x128xf32>
    %389 = tpu.matmul %358, %388, %cst_123 {dimension_numbers = #tpu.dot_dimension_numbers<[1], [0], [0], [1], [0, 0, 1, 1], [], []>} : vector<8x32xf32>, vector<32x128xf32>, vector<8x128xf32> -> vector<8x128xf32>
    %390 = arith.addf %387, %389 : vector<8x128xf32>
    %391 = arith.addf %390, %8 : vector<8x128xf32>
    %392 = vector.extract_strided_slice %391 {offsets = [0, 0], sizes = [8, 96], strides = [1, 1]} : vector<8x128xf32> to vector<8x96xf32>
    %393 = arith.negf %392 : vector<8x96xf32>
    %394 = math.exp %393 : vector<8x96xf32>
    %cst_124 = arith.constant 1.000000e+00 : f32
    %395 = vector.broadcast %cst_124 : f32 to vector<8x96xf32>
    %396 = arith.addf %395, %394 : vector<8x96xf32>
    %397 = arith.divf %395, %396 : vector<8x96xf32>
    %398 = vector.extract_strided_slice %391 {offsets = [0, 96], sizes = [8, 32], strides = [1, 1]} : vector<8x128xf32> to vector<8x32xf32>
    %399 = math.tanh %398 : vector<8x32xf32>
    %400 = vector.extract_strided_slice %397 {offsets = [0, 0], sizes = [8, 32], strides = [1, 1]} : vector<8x96xf32> to vector<8x32xf32>
    %401 = vector.extract_strided_slice %397 {offsets = [0, 32], sizes = [8, 32], strides = [1, 1]} : vector<8x96xf32> to vector<8x32xf32>
    %402 = vector.extract_strided_slice %397 {offsets = [0, 64], sizes = [8, 32], strides = [1, 1]} : vector<8x96xf32> to vector<8x32xf32>
    %403 = arith.mulf %401, %356 : vector<8x32xf32>
    %404 = arith.mulf %400, %399 : vector<8x32xf32>
    %405 = arith.addf %403, %404 : vector<8x32xf32>
    %406 = math.tanh %405 : vector<8x32xf32>
    %407 = arith.mulf %402, %406 : vector<8x32xf32>
    %c0_125 = arith.constant 0 : index
    %c0_126 = arith.constant 0 : index
    %408 = vector.load %arg14[%c0_125, %c0_126] : memref<32x8xf32, #tpu.memory_space<vmem>>, vector<32x8xf32>
    %cst_127 = arith.constant dense<0.000000e+00> : vector<8x8xf32>
    %409 = tpu.matmul %407, %408, %cst_127 {dimension_numbers = #tpu.dot_dimension_numbers<[1], [0], [0], [1], [0, 0, 1, 1], [], []>} : vector<8x32xf32>, vector<32x8xf32>, vector<8x8xf32> -> vector<8x8xf32>
    %410 = arith.addf %409, %11 : vector<8x8xf32>
    %c1 = arith.constant 1 : index
    %c0_128 = arith.constant 0 : index
    %c0_129 = arith.constant 0 : index
    %411 = vector.load %arg16[%c1, %c0_128, %c0_129] : memref<6x8x8xf32, #tpu.memory_space<vmem>>, vector<1x8x8xf32>
    %412 = vector.shape_cast %411 : vector<1x8x8xf32> to vector<8x8xf32>
    %413 = vector.shape_cast %410 : vector<8x8xf32> to vector<1x8x8xf32>
    tpu.vector_store %arg16[%c1, %c0_128, %c0_129], %413 {strides = array<i32>} : memref<6x8x8xf32, #tpu.memory_space<vmem>>, vector<1x8x8xf32>,
    %c0_130 = arith.constant 0 : index
    %c0_131 = arith.constant 0 : index
    %414 = vector.load %arg8[%c0_130, %c0_131] : memref<8x128xf32, #tpu.memory_space<vmem>>, vector<8x128xf32>
    %cst_132 = arith.constant dense<0.000000e+00> : vector<8x128xf32>
    %415 = tpu.matmul %410, %414, %cst_132 {dimension_numbers = #tpu.dot_dimension_numbers<[1], [0], [0], [1], [0, 0, 1, 1], [], []>} : vector<8x8xf32>, vector<8x128xf32>, vector<8x128xf32> -> vector<8x128xf32>
    %c0_133 = arith.constant 0 : index
    %c0_134 = arith.constant 0 : index
    %416 = vector.load %arg9[%c0_133, %c0_134] : memref<32x128xf32, #tpu.memory_space<vmem>>, vector<32x128xf32>
    %cst_135 = arith.constant dense<0.000000e+00> : vector<8x128xf32>
    %417 = tpu.matmul %385, %416, %cst_135 {dimension_numbers = #tpu.dot_dimension_numbers<[1], [0], [0], [1], [0, 0, 1, 1], [], []>} : vector<8x32xf32>, vector<32x128xf32>, vector<8x128xf32> -> vector<8x128xf32>
    %418 = arith.addf %415, %417 : vector<8x128xf32>
    %419 = arith.addf %418, %5 : vector<8x128xf32>
    %420 = vector.extract_strided_slice %419 {offsets = [0, 0], sizes = [8, 96], strides = [1, 1]} : vector<8x128xf32> to vector<8x96xf32>
    %421 = arith.negf %420 : vector<8x96xf32>
    %422 = math.exp %421 : vector<8x96xf32>
    %cst_136 = arith.constant 1.000000e+00 : f32
    %423 = vector.broadcast %cst_136 : f32 to vector<8x96xf32>
    %424 = arith.addf %423, %422 : vector<8x96xf32>
    %425 = arith.divf %423, %424 : vector<8x96xf32>
    %426 = vector.extract_strided_slice %419 {offsets = [0, 96], sizes = [8, 32], strides = [1, 1]} : vector<8x128xf32> to vector<8x32xf32>
    %427 = math.tanh %426 : vector<8x32xf32>
    %428 = vector.extract_strided_slice %425 {offsets = [0, 0], sizes = [8, 32], strides = [1, 1]} : vector<8x96xf32> to vector<8x32xf32>
    %429 = vector.extract_strided_slice %425 {offsets = [0, 32], sizes = [8, 32], strides = [1, 1]} : vector<8x96xf32> to vector<8x32xf32>
    %430 = vector.extract_strided_slice %425 {offsets = [0, 64], sizes = [8, 32], strides = [1, 1]} : vector<8x96xf32> to vector<8x32xf32>
    %431 = arith.mulf %429, %383 : vector<8x32xf32>
    %432 = arith.mulf %428, %427 : vector<8x32xf32>
    %433 = arith.addf %431, %432 : vector<8x32xf32>
    %434 = math.tanh %433 : vector<8x32xf32>
    %435 = arith.mulf %430, %434 : vector<8x32xf32>
    %c0_137 = arith.constant 0 : index
    %c0_138 = arith.constant 0 : index
    %436 = vector.load %arg11[%c0_137, %c0_138] : memref<32x128xf32, #tpu.memory_space<vmem>>, vector<32x128xf32>
    %cst_139 = arith.constant dense<0.000000e+00> : vector<8x128xf32>
    %437 = tpu.matmul %435, %436, %cst_139 {dimension_numbers = #tpu.dot_dimension_numbers<[1], [0], [0], [1], [0, 0, 1, 1], [], []>} : vector<8x32xf32>, vector<32x128xf32>, vector<8x128xf32> -> vector<8x128xf32>
    %c0_140 = arith.constant 0 : index
    %c0_141 = arith.constant 0 : index
    %438 = vector.load %arg12[%c0_140, %c0_141] : memref<32x128xf32, #tpu.memory_space<vmem>>, vector<32x128xf32>
    %cst_142 = arith.constant dense<0.000000e+00> : vector<8x128xf32>
    %439 = tpu.matmul %407, %438, %cst_142 {dimension_numbers = #tpu.dot_dimension_numbers<[1], [0], [0], [1], [0, 0, 1, 1], [], []>} : vector<8x32xf32>, vector<32x128xf32>, vector<8x128xf32> -> vector<8x128xf32>
    %440 = arith.addf %437, %439 : vector<8x128xf32>
    %441 = arith.addf %440, %8 : vector<8x128xf32>
    %442 = vector.extract_strided_slice %441 {offsets = [0, 0], sizes = [8, 96], strides = [1, 1]} : vector<8x128xf32> to vector<8x96xf32>
    %443 = arith.negf %442 : vector<8x96xf32>
    %444 = math.exp %443 : vector<8x96xf32>
    %cst_143 = arith.constant 1.000000e+00 : f32
    %445 = vector.broadcast %cst_143 : f32 to vector<8x96xf32>
    %446 = arith.addf %445, %444 : vector<8x96xf32>
    %447 = arith.divf %445, %446 : vector<8x96xf32>
    %448 = vector.extract_strided_slice %441 {offsets = [0, 96], sizes = [8, 32], strides = [1, 1]} : vector<8x128xf32> to vector<8x32xf32>
    %449 = math.tanh %448 : vector<8x32xf32>
    %450 = vector.extract_strided_slice %447 {offsets = [0, 0], sizes = [8, 32], strides = [1, 1]} : vector<8x96xf32> to vector<8x32xf32>
    %451 = vector.extract_strided_slice %447 {offsets = [0, 32], sizes = [8, 32], strides = [1, 1]} : vector<8x96xf32> to vector<8x32xf32>
    %452 = vector.extract_strided_slice %447 {offsets = [0, 64], sizes = [8, 32], strides = [1, 1]} : vector<8x96xf32> to vector<8x32xf32>
    %453 = arith.mulf %451, %405 : vector<8x32xf32>
    %454 = arith.mulf %450, %449 : vector<8x32xf32>
    %455 = arith.addf %453, %454 : vector<8x32xf32>
    %456 = math.tanh %455 : vector<8x32xf32>
    %457 = arith.mulf %452, %456 : vector<8x32xf32>
    %c0_144 = arith.constant 0 : index
    %c0_145 = arith.constant 0 : index
    %458 = vector.load %arg14[%c0_144, %c0_145] : memref<32x8xf32, #tpu.memory_space<vmem>>, vector<32x8xf32>
    %cst_146 = arith.constant dense<0.000000e+00> : vector<8x8xf32>
    %459 = tpu.matmul %457, %458, %cst_146 {dimension_numbers = #tpu.dot_dimension_numbers<[1], [0], [0], [1], [0, 0, 1, 1], [], []>} : vector<8x32xf32>, vector<32x8xf32>, vector<8x8xf32> -> vector<8x8xf32>
    %460 = arith.addf %459, %11 : vector<8x8xf32>
    %c2 = arith.constant 2 : index
    %c0_147 = arith.constant 0 : index
    %c0_148 = arith.constant 0 : index
    %461 = vector.load %arg16[%c2, %c0_147, %c0_148] : memref<6x8x8xf32, #tpu.memory_space<vmem>>, vector<1x8x8xf32>
    %462 = vector.shape_cast %461 : vector<1x8x8xf32> to vector<8x8xf32>
    %463 = vector.shape_cast %460 : vector<8x8xf32> to vector<1x8x8xf32>
    tpu.vector_store %arg16[%c2, %c0_147, %c0_148], %463 {strides = array<i32>} : memref<6x8x8xf32, #tpu.memory_space<vmem>>, vector<1x8x8xf32>,
    %c0_149 = arith.constant 0 : index
    %c0_150 = arith.constant 0 : index
    %464 = vector.load %arg8[%c0_149, %c0_150] : memref<8x128xf32, #tpu.memory_space<vmem>>, vector<8x128xf32>
    %cst_151 = arith.constant dense<0.000000e+00> : vector<8x128xf32>
    %465 = tpu.matmul %460, %464, %cst_151 {dimension_numbers = #tpu.dot_dimension_numbers<[1], [0], [0], [1], [0, 0, 1, 1], [], []>} : vector<8x8xf32>, vector<8x128xf32>, vector<8x128xf32> -> vector<8x128xf32>
    %c0_152 = arith.constant 0 : index
    %c0_153 = arith.constant 0 : index
    %466 = vector.load %arg9[%c0_152, %c0_153] : memref<32x128xf32, #tpu.memory_space<vmem>>, vector<32x128xf32>
    %cst_154 = arith.constant dense<0.000000e+00> : vector<8x128xf32>
    %467 = tpu.matmul %435, %466, %cst_154 {dimension_numbers = #tpu.dot_dimension_numbers<[1], [0], [0], [1], [0, 0, 1, 1], [], []>} : vector<8x32xf32>, vector<32x128xf32>, vector<8x128xf32> -> vector<8x128xf32>
    %468 = arith.addf %465, %467 : vector<8x128xf32>
    %469 = arith.addf %468, %5 : vector<8x128xf32>
    %470 = vector.extract_strided_slice %469 {offsets = [0, 0], sizes = [8, 96], strides = [1, 1]} : vector<8x128xf32> to vector<8x96xf32>
    %471 = arith.negf %470 : vector<8x96xf32>
    %472 = math.exp %471 : vector<8x96xf32>
    %cst_155 = arith.constant 1.000000e+00 : f32
    %473 = vector.broadcast %cst_155 : f32 to vector<8x96xf32>
    %474 = arith.addf %473, %472 : vector<8x96xf32>
    %475 = arith.divf %473, %474 : vector<8x96xf32>
    %476 = vector.extract_strided_slice %469 {offsets = [0, 96], sizes = [8, 32], strides = [1, 1]} : vector<8x128xf32> to vector<8x32xf32>
    %477 = math.tanh %476 : vector<8x32xf32>
    %478 = vector.extract_strided_slice %475 {offsets = [0, 0], sizes = [8, 32], strides = [1, 1]} : vector<8x96xf32> to vector<8x32xf32>
    %479 = vector.extract_strided_slice %475 {offsets = [0, 32], sizes = [8, 32], strides = [1, 1]} : vector<8x96xf32> to vector<8x32xf32>
    %480 = vector.extract_strided_slice %475 {offsets = [0, 64], sizes = [8, 32], strides = [1, 1]} : vector<8x96xf32> to vector<8x32xf32>
    %481 = arith.mulf %479, %433 : vector<8x32xf32>
    %482 = arith.mulf %478, %477 : vector<8x32xf32>
    %483 = arith.addf %481, %482 : vector<8x32xf32>
    %484 = math.tanh %483 : vector<8x32xf32>
    %485 = arith.mulf %480, %484 : vector<8x32xf32>
    %c0_156 = arith.constant 0 : index
    %c0_157 = arith.constant 0 : index
    %486 = vector.load %arg11[%c0_156, %c0_157] : memref<32x128xf32, #tpu.memory_space<vmem>>, vector<32x128xf32>
    %cst_158 = arith.constant dense<0.000000e+00> : vector<8x128xf32>
    %487 = tpu.matmul %485, %486, %cst_158 {dimension_numbers = #tpu.dot_dimension_numbers<[1], [0], [0], [1], [0, 0, 1, 1], [], []>} : vector<8x32xf32>, vector<32x128xf32>, vector<8x128xf32> -> vector<8x128xf32>
    %c0_159 = arith.constant 0 : index
    %c0_160 = arith.constant 0 : index
    %488 = vector.load %arg12[%c0_159, %c0_160] : memref<32x128xf32, #tpu.memory_space<vmem>>, vector<32x128xf32>
    %cst_161 = arith.constant dense<0.000000e+00> : vector<8x128xf32>
    %489 = tpu.matmul %457, %488, %cst_161 {dimension_numbers = #tpu.dot_dimension_numbers<[1], [0], [0], [1], [0, 0, 1, 1], [], []>} : vector<8x32xf32>, vector<32x128xf32>, vector<8x128xf32> -> vector<8x128xf32>
    %490 = arith.addf %487, %489 : vector<8x128xf32>
    %491 = arith.addf %490, %8 : vector<8x128xf32>
    %492 = vector.extract_strided_slice %491 {offsets = [0, 0], sizes = [8, 96], strides = [1, 1]} : vector<8x128xf32> to vector<8x96xf32>
    %493 = arith.negf %492 : vector<8x96xf32>
    %494 = math.exp %493 : vector<8x96xf32>
    %cst_162 = arith.constant 1.000000e+00 : f32
    %495 = vector.broadcast %cst_162 : f32 to vector<8x96xf32>
    %496 = arith.addf %495, %494 : vector<8x96xf32>
    %497 = arith.divf %495, %496 : vector<8x96xf32>
    %498 = vector.extract_strided_slice %491 {offsets = [0, 96], sizes = [8, 32], strides = [1, 1]} : vector<8x128xf32> to vector<8x32xf32>
    %499 = math.tanh %498 : vector<8x32xf32>
    %500 = vector.extract_strided_slice %497 {offsets = [0, 0], sizes = [8, 32], strides = [1, 1]} : vector<8x96xf32> to vector<8x32xf32>
    %501 = vector.extract_strided_slice %497 {offsets = [0, 32], sizes = [8, 32], strides = [1, 1]} : vector<8x96xf32> to vector<8x32xf32>
    %502 = vector.extract_strided_slice %497 {offsets = [0, 64], sizes = [8, 32], strides = [1, 1]} : vector<8x96xf32> to vector<8x32xf32>
    %503 = arith.mulf %501, %455 : vector<8x32xf32>
    %504 = arith.mulf %500, %499 : vector<8x32xf32>
    %505 = arith.addf %503, %504 : vector<8x32xf32>
    %506 = math.tanh %505 : vector<8x32xf32>
    %507 = arith.mulf %502, %506 : vector<8x32xf32>
    %c0_163 = arith.constant 0 : index
    %c0_164 = arith.constant 0 : index
    %508 = vector.load %arg14[%c0_163, %c0_164] : memref<32x8xf32, #tpu.memory_space<vmem>>, vector<32x8xf32>
    %cst_165 = arith.constant dense<0.000000e+00> : vector<8x8xf32>
    %509 = tpu.matmul %507, %508, %cst_165 {dimension_numbers = #tpu.dot_dimension_numbers<[1], [0], [0], [1], [0, 0, 1, 1], [], []>} : vector<8x32xf32>, vector<32x8xf32>, vector<8x8xf32> -> vector<8x8xf32>
    %510 = arith.addf %509, %11 : vector<8x8xf32>
    %c3 = arith.constant 3 : index
    %c0_166 = arith.constant 0 : index
    %c0_167 = arith.constant 0 : index
    %511 = vector.load %arg16[%c3, %c0_166, %c0_167] : memref<6x8x8xf32, #tpu.memory_space<vmem>>, vector<1x8x8xf32>
    %512 = vector.shape_cast %511 : vector<1x8x8xf32> to vector<8x8xf32>
    %513 = vector.shape_cast %510 : vector<8x8xf32> to vector<1x8x8xf32>
    tpu.vector_store %arg16[%c3, %c0_166, %c0_167], %513 {strides = array<i32>} : memref<6x8x8xf32, #tpu.memory_space<vmem>>, vector<1x8x8xf32>,
    %c0_168 = arith.constant 0 : index
    %c0_169 = arith.constant 0 : index
    %514 = vector.load %arg8[%c0_168, %c0_169] : memref<8x128xf32, #tpu.memory_space<vmem>>, vector<8x128xf32>
    %cst_170 = arith.constant dense<0.000000e+00> : vector<8x128xf32>
    %515 = tpu.matmul %510, %514, %cst_170 {dimension_numbers = #tpu.dot_dimension_numbers<[1], [0], [0], [1], [0, 0, 1, 1], [], []>} : vector<8x8xf32>, vector<8x128xf32>, vector<8x128xf32> -> vector<8x128xf32>
    %c0_171 = arith.constant 0 : index
    %c0_172 = arith.constant 0 : index
    %516 = vector.load %arg9[%c0_171, %c0_172] : memref<32x128xf32, #tpu.memory_space<vmem>>, vector<32x128xf32>
    %cst_173 = arith.constant dense<0.000000e+00> : vector<8x128xf32>
    %517 = tpu.matmul %485, %516, %cst_173 {dimension_numbers = #tpu.dot_dimension_numbers<[1], [0], [0], [1], [0, 0, 1, 1], [], []>} : vector<8x32xf32>, vector<32x128xf32>, vector<8x128xf32> -> vector<8x128xf32>
    %518 = arith.addf %515, %517 : vector<8x128xf32>
    %519 = arith.addf %518, %5 : vector<8x128xf32>
    %520 = vector.extract_strided_slice %519 {offsets = [0, 0], sizes = [8, 96], strides = [1, 1]} : vector<8x128xf32> to vector<8x96xf32>
    %521 = arith.negf %520 : vector<8x96xf32>
    %522 = math.exp %521 : vector<8x96xf32>
    %cst_174 = arith.constant 1.000000e+00 : f32
    %523 = vector.broadcast %cst_174 : f32 to vector<8x96xf32>
    %524 = arith.addf %523, %522 : vector<8x96xf32>
    %525 = arith.divf %523, %524 : vector<8x96xf32>
    %526 = vector.extract_strided_slice %519 {offsets = [0, 96], sizes = [8, 32], strides = [1, 1]} : vector<8x128xf32> to vector<8x32xf32>
    %527 = math.tanh %526 : vector<8x32xf32>
    %528 = vector.extract_strided_slice %525 {offsets = [0, 0], sizes = [8, 32], strides = [1, 1]} : vector<8x96xf32> to vector<8x32xf32>
    %529 = vector.extract_strided_slice %525 {offsets = [0, 32], sizes = [8, 32], strides = [1, 1]} : vector<8x96xf32> to vector<8x32xf32>
    %530 = vector.extract_strided_slice %525 {offsets = [0, 64], sizes = [8, 32], strides = [1, 1]} : vector<8x96xf32> to vector<8x32xf32>
    %531 = arith.mulf %529, %483 : vector<8x32xf32>
    %532 = arith.mulf %528, %527 : vector<8x32xf32>
    %533 = arith.addf %531, %532 : vector<8x32xf32>
    %534 = math.tanh %533 : vector<8x32xf32>
    %535 = arith.mulf %530, %534 : vector<8x32xf32>
    %c0_175 = arith.constant 0 : index
    %c0_176 = arith.constant 0 : index
    %536 = vector.load %arg11[%c0_175, %c0_176] : memref<32x128xf32, #tpu.memory_space<vmem>>, vector<32x128xf32>
    %cst_177 = arith.constant dense<0.000000e+00> : vector<8x128xf32>
    %537 = tpu.matmul %535, %536, %cst_177 {dimension_numbers = #tpu.dot_dimension_numbers<[1], [0], [0], [1], [0, 0, 1, 1], [], []>} : vector<8x32xf32>, vector<32x128xf32>, vector<8x128xf32> -> vector<8x128xf32>
    %c0_178 = arith.constant 0 : index
    %c0_179 = arith.constant 0 : index
    %538 = vector.load %arg12[%c0_178, %c0_179] : memref<32x128xf32, #tpu.memory_space<vmem>>, vector<32x128xf32>
    %cst_180 = arith.constant dense<0.000000e+00> : vector<8x128xf32>
    %539 = tpu.matmul %507, %538, %cst_180 {dimension_numbers = #tpu.dot_dimension_numbers<[1], [0], [0], [1], [0, 0, 1, 1], [], []>} : vector<8x32xf32>, vector<32x128xf32>, vector<8x128xf32> -> vector<8x128xf32>
    %540 = arith.addf %537, %539 : vector<8x128xf32>
    %541 = arith.addf %540, %8 : vector<8x128xf32>
    %542 = vector.extract_strided_slice %541 {offsets = [0, 0], sizes = [8, 96], strides = [1, 1]} : vector<8x128xf32> to vector<8x96xf32>
    %543 = arith.negf %542 : vector<8x96xf32>
    %544 = math.exp %543 : vector<8x96xf32>
    %cst_181 = arith.constant 1.000000e+00 : f32
    %545 = vector.broadcast %cst_181 : f32 to vector<8x96xf32>
    %546 = arith.addf %545, %544 : vector<8x96xf32>
    %547 = arith.divf %545, %546 : vector<8x96xf32>
    %548 = vector.extract_strided_slice %541 {offsets = [0, 96], sizes = [8, 32], strides = [1, 1]} : vector<8x128xf32> to vector<8x32xf32>
    %549 = math.tanh %548 : vector<8x32xf32>
    %550 = vector.extract_strided_slice %547 {offsets = [0, 0], sizes = [8, 32], strides = [1, 1]} : vector<8x96xf32> to vector<8x32xf32>
    %551 = vector.extract_strided_slice %547 {offsets = [0, 32], sizes = [8, 32], strides = [1, 1]} : vector<8x96xf32> to vector<8x32xf32>
    %552 = vector.extract_strided_slice %547 {offsets = [0, 64], sizes = [8, 32], strides = [1, 1]} : vector<8x96xf32> to vector<8x32xf32>
    %553 = arith.mulf %551, %505 : vector<8x32xf32>
    %554 = arith.mulf %550, %549 : vector<8x32xf32>
    %555 = arith.addf %553, %554 : vector<8x32xf32>
    %556 = math.tanh %555 : vector<8x32xf32>
    %557 = arith.mulf %552, %556 : vector<8x32xf32>
    %c0_182 = arith.constant 0 : index
    %c0_183 = arith.constant 0 : index
    %558 = vector.load %arg14[%c0_182, %c0_183] : memref<32x8xf32, #tpu.memory_space<vmem>>, vector<32x8xf32>
    %cst_184 = arith.constant dense<0.000000e+00> : vector<8x8xf32>
    %559 = tpu.matmul %557, %558, %cst_184 {dimension_numbers = #tpu.dot_dimension_numbers<[1], [0], [0], [1], [0, 0, 1, 1], [], []>} : vector<8x32xf32>, vector<32x8xf32>, vector<8x8xf32> -> vector<8x8xf32>
    %560 = arith.addf %559, %11 : vector<8x8xf32>
    %c4 = arith.constant 4 : index
    %c0_185 = arith.constant 0 : index
    %c0_186 = arith.constant 0 : index
    %561 = vector.load %arg16[%c4, %c0_185, %c0_186] : memref<6x8x8xf32, #tpu.memory_space<vmem>>, vector<1x8x8xf32>
    %562 = vector.shape_cast %561 : vector<1x8x8xf32> to vector<8x8xf32>
    %563 = vector.shape_cast %560 : vector<8x8xf32> to vector<1x8x8xf32>
    tpu.vector_store %arg16[%c4, %c0_185, %c0_186], %563 {strides = array<i32>} : memref<6x8x8xf32, #tpu.memory_space<vmem>>, vector<1x8x8xf32>,
    %c0_187 = arith.constant 0 : index
    %c0_188 = arith.constant 0 : index
    %564 = vector.load %arg8[%c0_187, %c0_188] : memref<8x128xf32, #tpu.memory_space<vmem>>, vector<8x128xf32>
    %cst_189 = arith.constant dense<0.000000e+00> : vector<8x128xf32>
    %565 = tpu.matmul %560, %564, %cst_189 {dimension_numbers = #tpu.dot_dimension_numbers<[1], [0], [0], [1], [0, 0, 1, 1], [], []>} : vector<8x8xf32>, vector<8x128xf32>, vector<8x128xf32> -> vector<8x128xf32>
    %c0_190 = arith.constant 0 : index
    %c0_191 = arith.constant 0 : index
    %566 = vector.load %arg9[%c0_190, %c0_191] : memref<32x128xf32, #tpu.memory_space<vmem>>, vector<32x128xf32>
    %cst_192 = arith.constant dense<0.000000e+00> : vector<8x128xf32>
    %567 = tpu.matmul %535, %566, %cst_192 {dimension_numbers = #tpu.dot_dimension_numbers<[1], [0], [0], [1], [0, 0, 1, 1], [], []>} : vector<8x32xf32>, vector<32x128xf32>, vector<8x128xf32> -> vector<8x128xf32>
    %568 = arith.addf %565, %567 : vector<8x128xf32>
    %569 = arith.addf %568, %5 : vector<8x128xf32>
    %570 = vector.extract_strided_slice %569 {offsets = [0, 0], sizes = [8, 96], strides = [1, 1]} : vector<8x128xf32> to vector<8x96xf32>
    %571 = arith.negf %570 : vector<8x96xf32>
    %572 = math.exp %571 : vector<8x96xf32>
    %cst_193 = arith.constant 1.000000e+00 : f32
    %573 = vector.broadcast %cst_193 : f32 to vector<8x96xf32>
    %574 = arith.addf %573, %572 : vector<8x96xf32>
    %575 = arith.divf %573, %574 : vector<8x96xf32>
    %576 = vector.extract_strided_slice %569 {offsets = [0, 96], sizes = [8, 32], strides = [1, 1]} : vector<8x128xf32> to vector<8x32xf32>
    %577 = math.tanh %576 : vector<8x32xf32>
    %578 = vector.extract_strided_slice %575 {offsets = [0, 0], sizes = [8, 32], strides = [1, 1]} : vector<8x96xf32> to vector<8x32xf32>
    %579 = vector.extract_strided_slice %575 {offsets = [0, 32], sizes = [8, 32], strides = [1, 1]} : vector<8x96xf32> to vector<8x32xf32>
    %580 = vector.extract_strided_slice %575 {offsets = [0, 64], sizes = [8, 32], strides = [1, 1]} : vector<8x96xf32> to vector<8x32xf32>
    %581 = arith.mulf %579, %533 : vector<8x32xf32>
    %582 = arith.mulf %578, %577 : vector<8x32xf32>
    %583 = arith.addf %581, %582 : vector<8x32xf32>
    %584 = math.tanh %583 : vector<8x32xf32>
    %585 = arith.mulf %580, %584 : vector<8x32xf32>
    %c0_194 = arith.constant 0 : index
    %c0_195 = arith.constant 0 : index
    %586 = vector.load %arg11[%c0_194, %c0_195] : memref<32x128xf32, #tpu.memory_space<vmem>>, vector<32x128xf32>
    %cst_196 = arith.constant dense<0.000000e+00> : vector<8x128xf32>
    %587 = tpu.matmul %585, %586, %cst_196 {dimension_numbers = #tpu.dot_dimension_numbers<[1], [0], [0], [1], [0, 0, 1, 1], [], []>} : vector<8x32xf32>, vector<32x128xf32>, vector<8x128xf32> -> vector<8x128xf32>
    %c0_197 = arith.constant 0 : index
    %c0_198 = arith.constant 0 : index
    %588 = vector.load %arg12[%c0_197, %c0_198] : memref<32x128xf32, #tpu.memory_space<vmem>>, vector<32x128xf32>
    %cst_199 = arith.constant dense<0.000000e+00> : vector<8x128xf32>
    %589 = tpu.matmul %557, %588, %cst_199 {dimension_numbers = #tpu.dot_dimension_numbers<[1], [0], [0], [1], [0, 0, 1, 1], [], []>} : vector<8x32xf32>, vector<32x128xf32>, vector<8x128xf32> -> vector<8x128xf32>
    %590 = arith.addf %587, %589 : vector<8x128xf32>
    %591 = arith.addf %590, %8 : vector<8x128xf32>
    %592 = vector.extract_strided_slice %591 {offsets = [0, 0], sizes = [8, 96], strides = [1, 1]} : vector<8x128xf32> to vector<8x96xf32>
    %593 = arith.negf %592 : vector<8x96xf32>
    %594 = math.exp %593 : vector<8x96xf32>
    %cst_200 = arith.constant 1.000000e+00 : f32
    %595 = vector.broadcast %cst_200 : f32 to vector<8x96xf32>
    %596 = arith.addf %595, %594 : vector<8x96xf32>
    %597 = arith.divf %595, %596 : vector<8x96xf32>
    %598 = vector.extract_strided_slice %591 {offsets = [0, 96], sizes = [8, 32], strides = [1, 1]} : vector<8x128xf32> to vector<8x32xf32>
    %599 = math.tanh %598 : vector<8x32xf32>
    %600 = vector.extract_strided_slice %597 {offsets = [0, 0], sizes = [8, 32], strides = [1, 1]} : vector<8x96xf32> to vector<8x32xf32>
    %601 = vector.extract_strided_slice %597 {offsets = [0, 32], sizes = [8, 32], strides = [1, 1]} : vector<8x96xf32> to vector<8x32xf32>
    %602 = vector.extract_strided_slice %597 {offsets = [0, 64], sizes = [8, 32], strides = [1, 1]} : vector<8x96xf32> to vector<8x32xf32>
    %603 = arith.mulf %601, %555 : vector<8x32xf32>
    %604 = arith.mulf %600, %599 : vector<8x32xf32>
    %605 = arith.addf %603, %604 : vector<8x32xf32>
    %606 = math.tanh %605 : vector<8x32xf32>
    %607 = arith.mulf %602, %606 : vector<8x32xf32>
    %c0_201 = arith.constant 0 : index
    %c0_202 = arith.constant 0 : index
    %608 = vector.load %arg14[%c0_201, %c0_202] : memref<32x8xf32, #tpu.memory_space<vmem>>, vector<32x8xf32>
    %cst_203 = arith.constant dense<0.000000e+00> : vector<8x8xf32>
    %609 = tpu.matmul %607, %608, %cst_203 {dimension_numbers = #tpu.dot_dimension_numbers<[1], [0], [0], [1], [0, 0, 1, 1], [], []>} : vector<8x32xf32>, vector<32x8xf32>, vector<8x8xf32> -> vector<8x8xf32>
    %610 = arith.addf %609, %11 : vector<8x8xf32>
    %c5 = arith.constant 5 : index
    %c0_204 = arith.constant 0 : index
    %c0_205 = arith.constant 0 : index
    %611 = vector.load %arg16[%c5, %c0_204, %c0_205] : memref<6x8x8xf32, #tpu.memory_space<vmem>>, vector<1x8x8xf32>
    %612 = vector.shape_cast %611 : vector<1x8x8xf32> to vector<8x8xf32>
    %613 = vector.shape_cast %610 : vector<8x8xf32> to vector<1x8x8xf32>
    tpu.vector_store %arg16[%c5, %c0_204, %c0_205], %613 {strides = array<i32>} : memref<6x8x8xf32, #tpu.memory_space<vmem>>, vector<1x8x8xf32>,
    return
  }
}

</mosaic_0001>

<llo_original>
// kernel: seq2seq_forward.1
$region0: #{seq2seq_forward.1}
  #allocation0 [shape = 'u32[]', space=smem, size = 0x4, offset = 0x4, fixed_abs, tag = 'smem constant byte address 0x4 - core index']
  #allocation1 [shape = 'u32[144,128]{1,0:T(1,128)}', space=vmem, size = 0x12000, scoped, tag = 'internal scratch']
  %s0 = inlined_call_operand.vmem [shape: f32[64,8], index: 0, kind: input, shape index: {}]
  %s1 = inlined_call_operand.vmem [shape: f32[8,8], index: 1, kind: input, shape index: {}]
  %s2 = inlined_call_operand.vmem [shape: f32[8,128], index: 2, kind: input, shape index: {}]
  %s3 = inlined_call_operand.vmem [shape: f32[32,128], index: 3, kind: input, shape index: {}]
  %s4 = inlined_call_operand.vmem [shape: f32[1,128], index: 4, kind: input, shape index: {}]
  %s5 = inlined_call_operand.vmem [shape: f32[32,128], index: 5, kind: input, shape index: {}]
  %s6 = inlined_call_operand.vmem [shape: f32[32,128], index: 6, kind: input, shape index: {}]
  %s7 = inlined_call_operand.vmem [shape: f32[1,128], index: 7, kind: input, shape index: {}]
  %s8 = inlined_call_operand.vmem [shape: f32[8,128], index: 8, kind: input, shape index: {}]
  %s9 = inlined_call_operand.vmem [shape: f32[32,128], index: 9, kind: input, shape index: {}]
  %s10 = inlined_call_operand.vmem [shape: f32[1,128], index: 10, kind: input, shape index: {}]
  %s11 = inlined_call_operand.vmem [shape: f32[32,128], index: 11, kind: input, shape index: {}]
  %s12 = inlined_call_operand.vmem [shape: f32[32,128], index: 12, kind: input, shape index: {}]
  %s13 = inlined_call_operand.vmem [shape: f32[1,128], index: 13, kind: input, shape index: {}]
  %s14 = inlined_call_operand.vmem [shape: f32[32,8], index: 14, kind: input, shape index: {}]
  %s15 = inlined_call_operand.vmem [shape: f32[1,8], index: 15, kind: input, shape index: {}]
  %s16 = inlined_call_operand.vmem [shape: f32[6,8,8], index: 16, kind: output, shape index: {}]
  %s17 = sld [smem:[#allocation0]]
  $region74: #{seq2seq_forward.1} parent=0
    _
  %s19 = ssub.s32 1, %s17
  %s20 = scalar_select 0, %s19, %s17
  // Predicated region
  $region2: #{seq2seq_forward.1} parent=0 // pred_check
    _
  $region3: #{seq2seq_forward.1} parent=0 // pred_check_branch
    %22 = sbr.rel (0) target = $region5
  $region4: #{seq2seq_forward.1} parent=0 // pred_region
    _
  $region5: #{seq2seq_forward.1} parent=0 // pred_fallthru
    _
  // Predicated region
  $region6: #{seq2seq_forward.1} parent=0 // pred_check
    _
  $region7: #{seq2seq_forward.1} parent=0 // pred_check_branch
    %24 = sbr.rel (0) target = $region9
  $region8: #{seq2seq_forward.1} parent=0 // pred_region
    _
  $region9: #{seq2seq_forward.1} parent=0 // pred_fallthru
    _
  // Predicated region
  $region10: #{seq2seq_forward.1} parent=0 // pred_check
    _
  $region11: #{seq2seq_forward.1} parent=0 // pred_check_branch
    %26 = sbr.rel (0) target = $region13
  $region12: #{seq2seq_forward.1} parent=0 // pred_region
    _
  $region13: #{seq2seq_forward.1} parent=0 // pred_fallthru
    _
  // Predicated region
  $region14: #{seq2seq_forward.1} parent=0 // pred_check
    _
  $region15: #{seq2seq_forward.1} parent=0 // pred_check_branch
    %28 = sbr.rel (0) target = $region17
  $region16: #{seq2seq_forward.1} parent=0 // pred_region
    _
  $region17: #{seq2seq_forward.1} parent=0 // pred_fallthru
    _
  // Predicated region
  $region18: #{seq2seq_forward.1} parent=0 // pred_check
    _
  $region19: #{seq2seq_forward.1} parent=0 // pred_check_branch
    %30 = sbr.rel (0) target = $region21
  $region20: #{seq2seq_forward.1} parent=0 // pred_region
    _
  $region21: #{seq2seq_forward.1} parent=0 // pred_fallthru
    _
  // Predicated region
  $region22: #{seq2seq_forward.1} parent=0 // pred_check
    _
  $region23: #{seq2seq_forward.1} parent=0 // pred_check_branch
    %32 = sbr.rel (0) target = $region25
  $region24: #{seq2seq_forward.1} parent=0 // pred_region
    _
  $region25: #{seq2seq_forward.1} parent=0 // pred_fallthru
    _
  // Predicated region
  $region26: #{seq2seq_forward.1} parent=0 // pred_check
    _
  $region27: #{seq2seq_forward.1} parent=0 // pred_check_branch
    %34 = sbr.rel (0) target = $region29
  $region28: #{seq2seq_forward.1} parent=0 // pred_region
    _
  $region29: #{seq2seq_forward.1} parent=0 // pred_fallthru
    _
  // Predicated region
  $region30: #{seq2seq_forward.1} parent=0 // pred_check
    _
  $region31: #{seq2seq_forward.1} parent=0 // pred_check_branch
    %36 = sbr.rel (0) target = $region33
  $region32: #{seq2seq_forward.1} parent=0 // pred_region
    _
  $region33: #{seq2seq_forward.1} parent=0 // pred_fallthru
    _
  // Predicated region
  $region34: #{seq2seq_forward.1} parent=0 // pred_check
    _
  $region35: #{seq2seq_forward.1} parent=0 // pred_check_branch
    %38 = sbr.rel (0) target = $region37
  $region36: #{seq2seq_forward.1} parent=0 // pred_region
    _
  $region37: #{seq2seq_forward.1} parent=0 // pred_fallthru
    _
  // Predicated region
  $region38: #{seq2seq_forward.1} parent=0 // pred_check
    _
  $region39: #{seq2seq_forward.1} parent=0 // pred_check_branch
    %40 = sbr.rel (0) target = $region41
  $region40: #{seq2seq_forward.1} parent=0 // pred_region
    _
  $region41: #{seq2seq_forward.1} parent=0 // pred_fallthru
    _
  // Predicated region
  $region42: #{seq2seq_forward.1} parent=0 // pred_check
    _
  $region43: #{seq2seq_forward.1} parent=0 // pred_check_branch
    %42 = sbr.rel (0) target = $region45
  $region44: #{seq2seq_forward.1} parent=0 // pred_region
    _
  $region45: #{seq2seq_forward.1} parent=0 // pred_fallthru
    _
  // Predicated region
  $region46: #{seq2seq_forward.1} parent=0 // pred_check
    _
  $region47: #{seq2seq_forward.1} parent=0 // pred_check_branch
    %44 = sbr.rel (0) target = $region49
  $region48: #{seq2seq_forward.1} parent=0 // pred_region
    _
  $region49: #{seq2seq_forward.1} parent=0 // pred_fallthru
    _
  // Predicated region
  $region50: #{seq2seq_forward.1} parent=0 // pred_check
    _
  $region51: #{seq2seq_forward.1} parent=0 // pred_check_branch
    %46 = sbr.rel (0) target = $region53
  $region52: #{seq2seq_forward.1} parent=0 // pred_region
    _
  $region53: #{seq2seq_forward.1} parent=0 // pred_fallthru
    _
  // Predicated region
  $region54: #{seq2seq_forward.1} parent=0 // pred_check
    _
  $region55: #{seq2seq_forward.1} parent=0 // pred_check_branch
    %48 = sbr.rel (0) target = $region57
  $region56: #{seq2seq_forward.1} parent=0 // pred_region
    _
  $region57: #{seq2seq_forward.1} parent=0 // pred_fallthru
    _
  // Predicated region
  $region58: #{seq2seq_forward.1} parent=0 // pred_check
    _
  $region59: #{seq2seq_forward.1} parent=0 // pred_check_branch
    %50 = sbr.rel (0) target = $region61
  $region60: #{seq2seq_forward.1} parent=0 // pred_region
    _
  $region61: #{seq2seq_forward.1} parent=0 // pred_fallthru
    _
  // Predicated region
  $region62: #{seq2seq_forward.1} parent=0 // pred_check
    _
  $region63: #{seq2seq_forward.1} parent=0 // pred_check_branch
    %52 = sbr.rel (0) target = $region65
  $region64: #{seq2seq_forward.1} parent=0 // pred_region
    _
  $region65: #{seq2seq_forward.1} parent=0 // pred_fallthru
    _
  %v53 = vld [vmem:[%s7] sm:$0x1]
  %v55 = vlaneseq
  %v56 = vshrl.u32 %v55, 7
  %v57 = vsub.s32 0, %v56
  %v58 = vrot.slane %v53, %v57
  %v60 = vld [vmem:[%s10] sm:$0x1]
  %v62 = vlaneseq
  %v63 = vshrl.u32 %v62, 7
  %v64 = vsub.s32 0, %v63
  %v65 = vrot.slane %v60, %v64
  %v67 = vld [vmem:[%s13] sm:$0x1]
  %v69 = vlaneseq
  %v70 = vshrl.u32 %v69, 7
  %v71 = vsub.s32 0, %v70
  %v72 = vrot.slane %v67, %v71
  %v74 = vld [vmem:[%s15] sm:$0x1]
  %v76 = vlaneseq
  %v77 = vshrl.u32 %v76, 7
  %v78 = vsub.s32 0, %v77
  %v79 = vrot.slane %v74, %v78
  %v81 = vld [vmem:[%s0] sm:$0xff]
  %v82 = vld [vmem:[%s0 + $0x8] sm:$0xff]
  %v83 = vld [vmem:[%s0 + $0x10] sm:$0xff]
  %v84 = vld [vmem:[%s0 + $0x18] sm:$0xff]
  %v85 = vld [vmem:[%s0 + $0x20] sm:$0xff]
  %v86 = vld [vmem:[%s0 + $0x28] sm:$0xff]
  %v87 = vld [vmem:[%s0 + $0x30] sm:$0xff]
  %v88 = vld [vmem:[%s0 + $0x38] sm:$0xff]
  %v89 = vld [vmem:[%s2] sm:$0xff]
  %v90 = vld [vmem:[%s4] sm:$0x1]
  %v92 = vlaneseq
  %v93 = vshrl.u32 %v92, 7
  %v94 = vsub.s32 0, %v93
  %v95 = vrot.slane %v90, %v94
  %vm97 = vcmask 64512
  %v99 = vsel %vm97, %v81, 0
  %v102 = vsel %vm97, %v82, 0
  %v105 = vsel %vm97, %v83, 0
  %v108 = vsel %vm97, %v84, 0
  %v111 = vsel %vm97, %v85, 0
  %v114 = vsel %vm97, %v86, 0
  %v117 = vsel %vm97, %v87, 0
  %v120 = vsel %vm97, %v88, 0
  %122 = vmatprep.subr.mxu0 0.0
  %123 = vmatpush1.msra.mxu0 0.0
  %124 = vmatprep.subr.mxu0 0.0
  %125 = vmatpush1.msra.mxu0 0.0
  %126 = vmatprep.subr.mxu0 0.0
  %127 = vmatpush1.msra.mxu0 0.0
  %128 = vmatprep.subr.mxu0 0.0
  %129 = vmatpush1.msra.mxu0 0.0
  %130 = vmatprep.subr.mxu0 0.0
  %131 = vmatpush1.msra.mxu0 0.0
  %132 = vmatprep.subr.mxu0 0.0
  %133 = vmatpush1.msra.mxu0 0.0
  %134 = vmatprep.subr.mxu0 0.0
  %135 = vmatpush1.msra.mxu0 0.0
  %136 = vmatprep.subr.mxu0 0.0
  %137 = vmatpush1.msra.mxu0 0.0
  %138 = vmatprep.subr.mxu0 0.0
  %139 = vmatpush1.msra.mxu0 0.0
  %140 = vmatprep.subr.mxu0 0.0
  %141 = vmatpush1.msra.mxu0 0.0
  %142 = vmatprep.subr.mxu0 0.0
  %143 = vmatpush1.msra.mxu0 0.0
  %144 = vmatprep.subr.mxu0 0.0
  %145 = vmatpush1.msra.mxu0 0.0
  %146 = vmatprep.subr.mxu0 0.0
  %147 = vmatpush1.msra.mxu0 0.0
  %148 = vmatprep.subr.mxu0 0.0
  %149 = vmatpush1.msra.mxu0 0.0
  %150 = vmatprep.subr.mxu0 0.0
  %151 = vmatpush1.msra.mxu0 0.0
  %152 = vmatprep.subr.mxu0 0.0
  %153 = vmatpush1.msra.mxu0 %v89
  %154 = vmatprep.subr.mxu0 0.0
  %155 = vmatpush2.msra.mxu0 0.0
  %156 = vmatprep.subr.mxu0 0.0
  %157 = vmatpush2.msra.mxu0 0.0
  %158 = vmatprep.subr.mxu0 0.0
  %159 = vmatpush2.msra.mxu0 0.0
  %160 = vmatprep.subr.mxu0 0.0
  %161 = vmatpush2.msra.mxu0 0.0
  %162 = vmatprep.subr.mxu0 0.0
  %163 = vmatpush2.msra.mxu0 0.0
  %164 = vmatprep.subr.mxu0 0.0
  %165 = vmatpush2.msra.mxu0 0.0
  %166 = vmatprep.subr.mxu0 0.0
  %167 = vmatpush2.msra.mxu0 0.0
  %168 = vmatprep.subr.mxu0 0.0
  %169 = vmatpush2.msra.mxu0 0.0
  %170 = vmatprep.subr.mxu0 0.0
  %171 = vmatpush2.msra.mxu0 0.0
  %172 = vmatprep.subr.mxu0 0.0
  %173 = vmatpush2.msra.mxu0 0.0
  %174 = vmatprep.subr.mxu0 0.0
  %175 = vmatpush2.msra.mxu0 0.0
  %176 = vmatprep.subr.mxu0 0.0
  %177 = vmatpush2.msra.mxu0 0.0
  %178 = vmatprep.subr.mxu0 0.0
  %179 = vmatpush2.msra.mxu0 0.0
  %180 = vmatprep.subr.mxu0 0.0
  %181 = vmatpush2.msra.mxu0 0.0
  %182 = vmatprep.subr.mxu0 0.0
  %183 = vmatpush2.msra.mxu0 0.0
  %184 = vmatprep.subr.mxu0 0.0
  %185 = vmatpush2.msra.mxu0 0.0
  %186 = vmatprep.mubr.f32.mxu0 0.0
  %187 = vmatmul.mubr.f32.gmra.mxu0 %v99
  %v188 = vpop.f32.mrf.mxu0
  %v189 = vadd.f32 %v95, %v188
  %v190 = vpop.f32.mrf.mxu0
  %191 = vmatprep.mubr.f32.mxu0 0.0
  %192 = vmatmul.mubr.f32.gmra.mxu0 %v102
  %v193 = vpop.f32.mrf.mxu0
  %v194 = vadd.f32 %v95, %v193
  %v195 = vpop.f32.mrf.mxu0
  %196 = vmatprep.mubr.f32.mxu0 0.0
  %197 = vmatmul.mubr.f32.gmra.mxu0 %v105
  %v198 = vpop.f32.mrf.mxu0
  %v199 = vadd.f32 %v95, %v198
  %v200 = vpop.f32.mrf.mxu0
  %201 = vmatprep.mubr.f32.mxu0 0.0
  %202 = vmatmul.mubr.f32.gmra.mxu0 %v108
  %v203 = vpop.f32.mrf.mxu0
  %v204 = vadd.f32 %v95, %v203
  %v205 = vpop.f32.mrf.mxu0
  %206 = vmatprep.mubr.f32.mxu0 0.0
  %207 = vmatmul.mubr.f32.gmra.mxu0 %v111
  %v208 = vpop.f32.mrf.mxu0
  %v209 = vadd.f32 %v95, %v208
  %v210 = vpop.f32.mrf.mxu0
  %211 = vmatprep.mubr.f32.mxu0 0.0
  %212 = vmatmul.mubr.f32.gmra.mxu0 %v114
  %v213 = vpop.f32.mrf.mxu0
  %v214 = vadd.f32 %v95, %v213
  %v215 = vpop.f32.mrf.mxu0
  %216 = vmatprep.mubr.f32.mxu0 0.0
  %217 = vmatmul.mubr.f32.gmra.mxu0 %v117
  %v218 = vpop.f32.mrf.mxu0
  %v219 = vadd.f32 %v95, %v218
  %v220 = vpop.f32.mrf.mxu0
  %221 = vmatprep.mubr.f32.mxu0 0.0
  %222 = vmatmul.mubr.f32.gmra.mxu0 %v120
  %v223 = vpop.f32.mrf.mxu0
  %v224 = vadd.f32 %v95, %v223
  %v225 = vpop.f32.mrf.mxu0
  %226 = vdwg.mxu0
  %v227 = vld [vmem:[%s3] sm:$0xff]
  %v228 = vld [vmem:[%s3 + $0x8] sm:$0xff]
  %v229 = vld [vmem:[%s3 + $0x10] sm:$0xff]
  %v230 = vld [vmem:[%s3 + $0x18] sm:$0xff]
  %vm231 = vcmask 261120
  %v233 = vsel %vm231, 0.0, 0
  %235 = vmatprep.subr.mxu0 0.0
  %236 = vmatpush1.msra.mxu0 0.0
  %237 = vmatprep.subr.mxu0 0.0
  %238 = vmatpush1.msra.mxu0 0.0
  %239 = vmatprep.subr.mxu0 0.0
  %240 = vmatpush1.msra.mxu0 0.0
  %241 = vmatprep.subr.mxu0 0.0
  %242 = vmatpush1.msra.mxu0 0.0
  %243 = vmatprep.subr.mxu0 0.0
  %244 = vmatpush1.msra.mxu0 0.0
  %245 = vmatprep.subr.mxu0 0.0
  %246 = vmatpush1.msra.mxu0 0.0
  %247 = vmatprep.subr.mxu0 0.0
  %248 = vmatpush1.msra.mxu0 0.0
  %249 = vmatprep.subr.mxu0 0.0
  %250 = vmatpush1.msra.mxu0 0.0
  %251 = vmatprep.subr.mxu0 0.0
  %252 = vmatpush1.msra.mxu0 0.0
  %253 = vmatprep.subr.mxu0 0.0
  %254 = vmatpush1.msra.mxu0 0.0
  %255 = vmatprep.subr.mxu0 0.0
  %256 = vmatpush1.msra.mxu0 0.0
  %257 = vmatprep.subr.mxu0 0.0
  %258 = vmatpush1.msra.mxu0 0.0
  %259 = vmatprep.subr.mxu0 0.0
  %260 = vmatpush1.msra.mxu0 %v230
  %261 = vmatprep.subr.mxu0 0.0
  %262 = vmatpush1.msra.mxu0 %v229
  %263 = vmatprep.subr.mxu0 0.0
  %264 = vmatpush1.msra.mxu0 %v228
  %265 = vmatprep.subr.mxu0 0.0
  %266 = vmatpush1.msra.mxu0 %v227
  %267 = vmatprep.subr.mxu0 0.0
  %268 = vmatpush2.msra.mxu0 0.0
  %269 = vmatprep.subr.mxu0 0.0
  %270 = vmatpush2.msra.mxu0 0.0
  %271 = vmatprep.subr.mxu0 0.0
  %272 = vmatpush2.msra.mxu0 0.0
  %273 = vmatprep.subr.mxu0 0.0
  %274 = vmatpush2.msra.mxu0 0.0
  %275 = vmatprep.subr.mxu0 0.0
  %276 = vmatpush2.msra.mxu0 0.0
  %277 = vmatprep.subr.mxu0 0.0
  %278 = vmatpush2.msra.mxu0 0.0
  %279 = vmatprep.subr.mxu0 0.0
  %280 = vmatpush2.msra.mxu0 0.0
  %281 = vmatprep.subr.mxu0 0.0
  %282 = vmatpush2.msra.mxu0 0.0
  %283 = vmatprep.subr.mxu0 0.0
  %284 = vmatpush2.msra.mxu0 0.0
  %285 = vmatprep.subr.mxu0 0.0
  %286 = vmatpush2.msra.mxu0 0.0
  %287 = vmatprep.subr.mxu0 0.0
  %288 = vmatpush2.msra.mxu0 0.0
  %289 = vmatprep.subr.mxu0 0.0
  %290 = vmatpush2.msra.mxu0 0.0
  %291 = vmatprep.subr.mxu0 0.0
  %292 = vmatpush2.msra.mxu0 0.0
  %293 = vmatprep.subr.mxu0 0.0
  %294 = vmatpush2.msra.mxu0 0.0
  %295 = vmatprep.subr.mxu0 0.0
  %296 = vmatpush2.msra.mxu0 0.0
  %297 = vmatprep.subr.mxu0 0.0
  %298 = vmatpush2.msra.mxu0 0.0
  %299 = vmatprep.mubr.f32.mxu0 0.0
  %300 = vmatmul.mubr.f32.gmra.mxu0 %v233
  %v301 = vpop.f32.mrf.mxu0
  %v302 = vadd.f32 0.0, %v301
  %v303 = vpop.f32.mrf.mxu0
  %304 = vdwg.mxu0
  %v305 = vadd.f32 %v189, %v302
  %v306 = vxor.u32 %v305, 2147483648
  %v307 = vmul.f32 %v306, 1.442695
  %v308 = vpow.pop %v307
  %v309 = vadd.f32 %v308, 1.0
  %v310 = vrcp.pop %v309
  %v311 = vmul.f32 1.0, %v310
  %v312 = vtanh.pop %v305
  %v313 = vmul.f32 %v311, 0.0
  %315 = vrot.lane.b32.xlu0 %v312, 32
  %v316 = vpop.permute.xlu0 %315
  %v318 = vmul.f32 %v311, %v316
  %320 = vrot.lane.b32.xlu0 %v318, 32
  %v321 = vpop.permute.xlu0 %320
  %v323 = vadd.f32 %v313, %v321
  %v324 = vtanh.pop %v323
  %326 = vrot.lane.b32.xlu0 %v324, 32
  %v327 = vpop.permute.xlu0 %326
  %v329 = vmul.f32 %v311, %v327
  %v330 = vld [vmem:[%s5] sm:$0xff]
  %v331 = vld [vmem:[%s5 + $0x8] sm:$0xff]
  %v332 = vld [vmem:[%s5 + $0x10] sm:$0xff]
  %v333 = vld [vmem:[%s5 + $0x18] sm:$0xff]
  %v334 = vld [vmem:[%s6] sm:$0xff]
  %v335 = vld [vmem:[%s6 + $0x8] sm:$0xff]
  %v336 = vld [vmem:[%s6 + $0x10] sm:$0xff]
  %v337 = vld [vmem:[%s6 + $0x18] sm:$0xff]
  %338 = vmatprep.subr.mxu0 0.0
  %339 = vmatpush1.msra.mxu0 0.0
  %340 = vmatprep.subr.mxu0 0.0
  %341 = vmatpush1.msra.mxu0 0.0
  %342 = vmatprep.subr.mxu0 0.0
  %343 = vmatpush1.msra.mxu0 0.0
  %344 = vmatprep.subr.mxu0 0.0
  %345 = vmatpush1.msra.mxu0 0.0
  %346 = vmatprep.subr.mxu0 0.0
  %347 = vmatpush1.msra.mxu0 0.0
  %348 = vmatprep.subr.mxu0 0.0
  %349 = vmatpush1.msra.mxu0 0.0
  %350 = vmatprep.subr.mxu0 0.0
  %351 = vmatpush1.msra.mxu0 0.0
  %352 = vmatprep.subr.mxu0 0.0
  %353 = vmatpush1.msra.mxu0 0.0
  %354 = vmatprep.subr.mxu0 0.0
  %355 = vmatpush1.msra.mxu0 0.0
  %356 = vmatprep.subr.mxu0 0.0
  %357 = vmatpush1.msra.mxu0 0.0
  %358 = vmatprep.subr.mxu0 0.0
  %359 = vmatpush1.msra.mxu0 0.0
  %360 = vmatprep.subr.mxu0 0.0
  %361 = vmatpush1.msra.mxu0 0.0
  %362 = vmatprep.subr.mxu0 0.0
  %363 = vmatpush1.msra.mxu0 %v337
  %364 = vmatprep.subr.mxu0 0.0
  %365 = vmatpush1.msra.mxu0 %v336
  %366 = vmatprep.subr.mxu0 0.0
  %367 = vmatpush1.msra.mxu0 %v335
  %368 = vmatprep.subr.mxu0 0.0
  %369 = vmatpush1.msra.mxu0 %v334
  %370 = vmatprep.subr.mxu0 0.0
  %371 = vmatpush2.msra.mxu0 0.0
  %372 = vmatprep.subr.mxu0 0.0
  %373 = vmatpush2.msra.mxu0 0.0
  %374 = vmatprep.subr.mxu0 0.0
  %375 = vmatpush2.msra.mxu0 0.0
  %376 = vmatprep.subr.mxu0 0.0
  %377 = vmatpush2.msra.mxu0 0.0
  %378 = vmatprep.subr.mxu0 0.0
  %379 = vmatpush2.msra.mxu0 0.0
  %380 = vmatprep.subr.mxu0 0.0
  %381 = vmatpush2.msra.mxu0 0.0
  %382 = vmatprep.subr.mxu0 0.0
  %383 = vmatpush2.msra.mxu0 0.0
  %384 = vmatprep.subr.mxu0 0.0
  %385 = vmatpush2.msra.mxu0 0.0
  %386 = vmatprep.subr.mxu0 0.0
  %387 = vmatpush2.msra.mxu0 0.0
  %388 = vmatprep.subr.mxu0 0.0
  %389 = vmatpush2.msra.mxu0 0.0
  %390 = vmatprep.subr.mxu0 0.0
  %391 = vmatpush2.msra.mxu0 0.0
  %392 = vmatprep.subr.mxu0 0.0
  %393 = vmatpush2.msra.mxu0 0.0
  %394 = vmatprep.subr.mxu0 0.0
  %395 = vmatpush2.msra.mxu0 0.0
  %396 = vmatprep.subr.mxu0 0.0
  %397 = vmatpush2.msra.mxu0 0.0
  %398 = vmatprep.subr.mxu0 0.0
  %399 = vmatpush2.msra.mxu0 0.0
  %400 = vmatprep.subr.mxu0 0.0
  %401 = vmatpush2.msra.mxu0 0.0
  %402 = vmatprep.mubr.f32.mxu0 0.0
  %403 = vmatmul.mubr.f32.gmra.mxu0 %v233
  %v404 = vpop.f32.mrf.mxu0
  %v405 = vadd.f32 0.0, %v404
  %v406 = vpop.f32.mrf.mxu0
  %407 = vdwg.mxu0
  %409 = vrot.lane.b32.xlu0 %v329, 64
  %v410 = vpop.permute.xlu0 %409
  %v411 = vsel %vm231, %v410, 0
  %413 = vmatprep.subr.mxu0 0.0
  %414 = vmatpush1.msra.mxu0 0.0
  %415 = vmatprep.subr.mxu0 0.0
  %416 = vmatpush1.msra.mxu0 0.0
  %417 = vmatprep.subr.mxu0 0.0
  %418 = vmatpush1.msra.mxu0 0.0
  %419 = vmatprep.subr.mxu0 0.0
  %420 = vmatpush1.msra.mxu0 0.0
  %421 = vmatprep.subr.mxu0 0.0
  %422 = vmatpush1.msra.mxu0 0.0
  %423 = vmatprep.subr.mxu0 0.0
  %424 = vmatpush1.msra.mxu0 0.0
  %425 = vmatprep.subr.mxu0 0.0
  %426 = vmatpush1.msra.mxu0 0.0
  %427 = vmatprep.subr.mxu0 0.0
  %428 = vmatpush1.msra.mxu0 0.0
  %429 = vmatprep.subr.mxu0 0.0
  %430 = vmatpush1.msra.mxu0 0.0
  %431 = vmatprep.subr.mxu0 0.0
  %432 = vmatpush1.msra.mxu0 0.0
  %433 = vmatprep.subr.mxu0 0.0
  %434 = vmatpush1.msra.mxu0 0.0
  %435 = vmatprep.subr.mxu0 0.0
  %436 = vmatpush1.msra.mxu0 0.0
  %437 = vmatprep.subr.mxu0 0.0
  %438 = vmatpush1.msra.mxu0 %v333
  %439 = vmatprep.subr.mxu0 0.0
  %440 = vmatpush1.msra.mxu0 %v332
  %441 = vmatprep.subr.mxu0 0.0
  %442 = vmatpush1.msra.mxu0 %v331
  %443 = vmatprep.subr.mxu0 0.0
  %444 = vmatpush1.msra.mxu0 %v330
  %445 = vmatprep.subr.mxu0 0.0
  %446 = vmatpush2.msra.mxu0 0.0
  %447 = vmatprep.subr.mxu0 0.0
  %448 = vmatpush2.msra.mxu0 0.0
  %449 = vmatprep.subr.mxu0 0.0
  %450 = vmatpush2.msra.mxu0 0.0
  %451 = vmatprep.subr.mxu0 0.0
  %452 = vmatpush2.msra.mxu0 0.0
  %453 = vmatprep.subr.mxu0 0.0
  %454 = vmatpush2.msra.mxu0 0.0
  %455 = vmatprep.subr.mxu0 0.0
  %456 = vmatpush2.msra.mxu0 0.0
  %457 = vmatprep.subr.mxu0 0.0
  %458 = vmatpush2.msra.mxu0 0.0
  %459 = vmatprep.subr.mxu0 0.0
  %460 = vmatpush2.msra.mxu0 0.0
  %461 = vmatprep.subr.mxu0 0.0
  %462 = vmatpush2.msra.mxu0 0.0
  %463 = vmatprep.subr.mxu0 0.0
  %464 = vmatpush2.msra.mxu0 0.0
  %465 = vmatprep.subr.mxu0 0.0
  %466 = vmatpush2.msra.mxu0 0.0
  %467 = vmatprep.subr.mxu0 0.0
  %468 = vmatpush2.msra.mxu0 0.0
  %469 = vmatprep.subr.mxu0 0.0
  %470 = vmatpush2.msra.mxu0 0.0
  %471 = vmatprep.subr.mxu0 0.0
  %472 = vmatpush2.msra.mxu0 0.0
  %473 = vmatprep.subr.mxu0 0.0
  %474 = vmatpush2.msra.mxu0 0.0
  %475 = vmatprep.subr.mxu0 0.0
  %476 = vmatpush2.msra.mxu0 0.0
  %477 = vmatprep.mubr.f32.mxu0 0.0
  %478 = vmatmul.mubr.f32.gmra.mxu0 %v411
  %v479 = vpop.f32.mrf.mxu0
  %v480 = vadd.f32 %v405, %v479
  %v481 = vpop.f32.mrf.mxu0
  %482 = vdwg.mxu0
  %v483 = vadd.f32 %v480, %v58
  %v484 = vxor.u32 %v483, 2147483648
  %v485 = vmul.f32 %v484, 1.442695
  %v486 = vpow.pop %v485
  %v487 = vadd.f32 %v486, 1.0
  %v488 = vrcp.pop %v487
  %v489 = vmul.f32 1.0, %v488
  %v490 = vtanh.pop %v483
  %v491 = vmul.f32 %v489, 0.0
  %493 = vrot.lane.b32.xlu0 %v490, 32
  %v494 = vpop.permute.xlu0 %493
  %v496 = vmul.f32 %v489, %v494
  %498 = vrot.lane.b32.xlu0 %v496, 32
  %v499 = vpop.permute.xlu0 %498
  %v501 = vadd.f32 %v491, %v499
  %v502 = vtanh.pop %v501
  %504 = vrot.lane.b32.xlu0 %v502, 32
  %v505 = vpop.permute.xlu0 %504
  %v507 = vmul.f32 %v489, %v505
  %508 = vmatprep.subr.mxu0 0.0
  %509 = vmatpush1.msra.mxu0 0.0
  %510 = vmatprep.subr.mxu0 0.0
  %511 = vmatpush1.msra.mxu0 0.0
  %512 = vmatprep.subr.mxu0 0.0
  %513 = vmatpush1.msra.mxu0 0.0
  %514 = vmatprep.subr.mxu0 0.0
  %515 = vmatpush1.msra.mxu0 0.0
  %516 = vmatprep.subr.mxu0 0.0
  %517 = vmatpush1.msra.mxu0 0.0
  %518 = vmatprep.subr.mxu0 0.0
  %519 = vmatpush1.msra.mxu0 0.0
  %520 = vmatprep.subr.mxu0 0.0
  %521 = vmatpush1.msra.mxu0 0.0
  %522 = vmatprep.subr.mxu0 0.0
  %523 = vmatpush1.msra.mxu0 0.0
  %524 = vmatprep.subr.mxu0 0.0
  %525 = vmatpush1.msra.mxu0 0.0
  %526 = vmatprep.subr.mxu0 0.0
  %527 = vmatpush1.msra.mxu0 0.0
  %528 = vmatprep.subr.mxu0 0.0
  %529 = vmatpush1.msra.mxu0 0.0
  %530 = vmatprep.subr.mxu0 0.0
  %531 = vmatpush1.msra.mxu0 0.0
  %532 = vmatprep.subr.mxu0 0.0
  %533 = vmatpush1.msra.mxu0 %v230
  %534 = vmatprep.subr.mxu0 0.0
  %535 = vmatpush1.msra.mxu0 %v229
  %536 = vmatprep.subr.mxu0 0.0
  %537 = vmatpush1.msra.mxu0 %v228
  %538 = vmatprep.subr.mxu0 0.0
  %539 = vmatpush1.msra.mxu0 %v227
  %540 = vmatprep.subr.mxu0 0.0
  %541 = vmatpush2.msra.mxu0 0.0
  %542 = vmatprep.subr.mxu0 0.0
  %543 = vmatpush2.msra.mxu0 0.0
  %544 = vmatprep.subr.mxu0 0.0
  %545 = vmatpush2.msra.mxu0 0.0
  %546 = vmatprep.subr.mxu0 0.0
  %547 = vmatpush2.msra.mxu0 0.0
  %548 = vmatprep.subr.mxu0 0.0
  %549 = vmatpush2.msra.mxu0 0.0
  %550 = vmatprep.subr.mxu0 0.0
  %551 = vmatpush2.msra.mxu0 0.0
  %552 = vmatprep.subr.mxu0 0.0
  %553 = vmatpush2.msra.mxu0 0.0
  %554 = vmatprep.subr.mxu0 0.0
  %555 = vmatpush2.msra.mxu0 0.0
  %556 = vmatprep.subr.mxu0 0.0
  %557 = vmatpush2.msra.mxu0 0.0
  %558 = vmatprep.subr.mxu0 0.0
  %559 = vmatpush2.msra.mxu0 0.0
  %560 = vmatprep.subr.mxu0 0.0
  %561 = vmatpush2.msra.mxu0 0.0
  %562 = vmatprep.subr.mxu0 0.0
  %563 = vmatpush2.msra.mxu0 0.0
  %564 = vmatprep.subr.mxu0 0.0
  %565 = vmatpush2.msra.mxu0 0.0
  %566 = vmatprep.subr.mxu0 0.0
  %567 = vmatpush2.msra.mxu0 0.0
  %568 = vmatprep.subr.mxu0 0.0
  %569 = vmatpush2.msra.mxu0 0.0
  %570 = vmatprep.subr.mxu0 0.0
  %571 = vmatpush2.msra.mxu0 0.0
  %572 = vmatprep.mubr.f32.mxu0 0.0
  %573 = vmatmul.mubr.f32.gmra.mxu0 %v411
  %v574 = vpop.f32.mrf.mxu0
  %v575 = vadd.f32 0.0, %v574
  %v576 = vpop.f32.mrf.mxu0
  %577 = vdwg.mxu0
  %v578 = vadd.f32 %v194, %v575
  %v579 = vxor.u32 %v578, 2147483648
  %v580 = vmul.f32 %v579, 1.442695
  %v581 = vpow.pop %v580
  %v582 = vadd.f32 %v581, 1.0
  %v583 = vrcp.pop %v582
  %v584 = vmul.f32 1.0, %v583
  %v585 = vtanh.pop %v578
  %v586 = vmul.f32 %v584, %v323
  %588 = vrot.lane.b32.xlu0 %v585, 32
  %v589 = vpop.permute.xlu0 %588
  %v591 = vmul.f32 %v584, %v589
  %593 = vrot.lane.b32.xlu0 %v591, 32
  %v594 = vpop.permute.xlu0 %593
  %v596 = vadd.f32 %v586, %v594
  %v597 = vtanh.pop %v596
  %599 = vrot.lane.b32.xlu0 %v597, 32
  %v600 = vpop.permute.xlu0 %599
  %v602 = vmul.f32 %v584, %v600
  %604 = vrot.lane.b32.xlu0 %v507, 64
  %v605 = vpop.permute.xlu0 %604
  %v606 = vsel %vm231, %v605, 0
  %608 = vmatprep.subr.mxu0 0.0
  %609 = vmatpush1.msra.mxu0 0.0
  %610 = vmatprep.subr.mxu0 0.0
  %611 = vmatpush1.msra.mxu0 0.0
  %612 = vmatprep.subr.mxu0 0.0
  %613 = vmatpush1.msra.mxu0 0.0
  %614 = vmatprep.subr.mxu0 0.0
  %615 = vmatpush1.msra.mxu0 0.0
  %616 = vmatprep.subr.mxu0 0.0
  %617 = vmatpush1.msra.mxu0 0.0
  %618 = vmatprep.subr.mxu0 0.0
  %619 = vmatpush1.msra.mxu0 0.0
  %620 = vmatprep.subr.mxu0 0.0
  %621 = vmatpush1.msra.mxu0 0.0
  %622 = vmatprep.subr.mxu0 0.0
  %623 = vmatpush1.msra.mxu0 0.0
  %624 = vmatprep.subr.mxu0 0.0
  %625 = vmatpush1.msra.mxu0 0.0
  %626 = vmatprep.subr.mxu0 0.0
  %627 = vmatpush1.msra.mxu0 0.0
  %628 = vmatprep.subr.mxu0 0.0
  %629 = vmatpush1.msra.mxu0 0.0
  %630 = vmatprep.subr.mxu0 0.0
  %631 = vmatpush1.msra.mxu0 0.0
  %632 = vmatprep.subr.mxu0 0.0
  %633 = vmatpush1.msra.mxu0 %v337
  %634 = vmatprep.subr.mxu0 0.0
  %635 = vmatpush1.msra.mxu0 %v336
  %636 = vmatprep.subr.mxu0 0.0
  %637 = vmatpush1.msra.mxu0 %v335
  %638 = vmatprep.subr.mxu0 0.0
  %639 = vmatpush1.msra.mxu0 %v334
  %640 = vmatprep.subr.mxu0 0.0
  %641 = vmatpush2.msra.mxu0 0.0
  %642 = vmatprep.subr.mxu0 0.0
  %643 = vmatpush2.msra.mxu0 0.0
  %644 = vmatprep.subr.mxu0 0.0
  %645 = vmatpush2.msra.mxu0 0.0
  %646 = vmatprep.subr.mxu0 0.0
  %647 = vmatpush2.msra.mxu0 0.0
  %648 = vmatprep.subr.mxu0 0.0
  %649 = vmatpush2.msra.mxu0 0.0
  %650 = vmatprep.subr.mxu0 0.0
  %651 = vmatpush2.msra.mxu0 0.0
  %652 = vmatprep.subr.mxu0 0.0
  %653 = vmatpush2.msra.mxu0 0.0
  %654 = vmatprep.subr.mxu0 0.0
  %655 = vmatpush2.msra.mxu0 0.0
  %656 = vmatprep.subr.mxu0 0.0
  %657 = vmatpush2.msra.mxu0 0.0
  %658 = vmatprep.subr.mxu0 0.0
  %659 = vmatpush2.msra.mxu0 0.0
  %660 = vmatprep.subr.mxu0 0.0
  %661 = vmatpush2.msra.mxu0 0.0
  %662 = vmatprep.subr.mxu0 0.0
  %663 = vmatpush2.msra.mxu0 0.0
  %664 = vmatprep.subr.mxu0 0.0
  %665 = vmatpush2.msra.mxu0 0.0
  %666 = vmatprep.subr.mxu0 0.0
  %667 = vmatpush2.msra.mxu0 0.0
  %668 = vmatprep.subr.mxu0 0.0
  %669 = vmatpush2.msra.mxu0 0.0
  %670 = vmatprep.subr.mxu0 0.0
  %671 = vmatpush2.msra.mxu0 0.0
  %672 = vmatprep.mubr.f32.mxu0 0.0
  %673 = vmatmul.mubr.f32.gmra.mxu0 %v606
  %v674 = vpop.f32.mrf.mxu0
  %v675 = vadd.f32 0.0, %v674
  %v676 = vpop.f32.mrf.mxu0
  %677 = vdwg.mxu0
  %679 = vrot.lane.b32.xlu0 %v602, 64
  %v680 = vpop.permute.xlu0 %679
  %v681 = vsel %vm231, %v680, 0
  %683 = vmatprep.subr.mxu0 0.0
  %684 = vmatpush1.msra.mxu0 0.0
  %685 = vmatprep.subr.mxu0 0.0
  %686 = vmatpush1.msra.mxu0 0.0
  %687 = vmatprep.subr.mxu0 0.0
  %688 = vmatpush1.msra.mxu0 0.0
  %689 = vmatprep.subr.mxu0 0.0
  %690 = vmatpush1.msra.mxu0 0.0
  %691 = vmatprep.subr.mxu0 0.0
  %692 = vmatpush1.msra.mxu0 0.0
  %693 = vmatprep.subr.mxu0 0.0
  %694 = vmatpush1.msra.mxu0 0.0
  %695 = vmatprep.subr.mxu0 0.0
  %696 = vmatpush1.msra.mxu0 0.0
  %697 = vmatprep.subr.mxu0 0.0
  %698 = vmatpush1.msra.mxu0 0.0
  %699 = vmatprep.subr.mxu0 0.0
  %700 = vmatpush1.msra.mxu0 0.0
  %701 = vmatprep.subr.mxu0 0.0
  %702 = vmatpush1.msra.mxu0 0.0
  %703 = vmatprep.subr.mxu0 0.0
  %704 = vmatpush1.msra.mxu0 0.0
  %705 = vmatprep.subr.mxu0 0.0
  %706 = vmatpush1.msra.mxu0 0.0
  %707 = vmatprep.subr.mxu0 0.0
  %708 = vmatpush1.msra.mxu0 %v333
  %709 = vmatprep.subr.mxu0 0.0
  %710 = vmatpush1.msra.mxu0 %v332
  %711 = vmatprep.subr.mxu0 0.0
  %712 = vmatpush1.msra.mxu0 %v331
  %713 = vmatprep.subr.mxu0 0.0
  %714 = vmatpush1.msra.mxu0 %v330
  %715 = vmatprep.subr.mxu0 0.0
  %716 = vmatpush2.msra.mxu0 0.0
  %717 = vmatprep.subr.mxu0 0.0
  %718 = vmatpush2.msra.mxu0 0.0
  %719 = vmatprep.subr.mxu0 0.0
  %720 = vmatpush2.msra.mxu0 0.0
  %721 = vmatprep.subr.mxu0 0.0
  %722 = vmatpush2.msra.mxu0 0.0
  %723 = vmatprep.subr.mxu0 0.0
  %724 = vmatpush2.msra.mxu0 0.0
  %725 = vmatprep.subr.mxu0 0.0
  %726 = vmatpush2.msra.mxu0 0.0
  %727 = vmatprep.subr.mxu0 0.0
  %728 = vmatpush2.msra.mxu0 0.0
  %729 = vmatprep.subr.mxu0 0.0
  %730 = vmatpush2.msra.mxu0 0.0
  %731 = vmatprep.subr.mxu0 0.0
  %732 = vmatpush2.msra.mxu0 0.0
  %733 = vmatprep.subr.mxu0 0.0
  %734 = vmatpush2.msra.mxu0 0.0
  %735 = vmatprep.subr.mxu0 0.0
  %736 = vmatpush2.msra.mxu0 0.0
  %737 = vmatprep.subr.mxu0 0.0
  %738 = vmatpush2.msra.mxu0 0.0
  %739 = vmatprep.subr.mxu0 0.0
  %740 = vmatpush2.msra.mxu0 0.0
  %741 = vmatprep.subr.mxu0 0.0
  %742 = vmatpush2.msra.mxu0 0.0
  %743 = vmatprep.subr.mxu0 0.0
  %744 = vmatpush2.msra.mxu0 0.0
  %745 = vmatprep.subr.mxu0 0.0
  %746 = vmatpush2.msra.mxu0 0.0
  %747 = vmatprep.mubr.f32.mxu0 0.0
  %748 = vmatmul.mubr.f32.gmra.mxu0 %v681
  %v749 = vpop.f32.mrf.mxu0
  %v750 = vadd.f32 %v675, %v749
  %v751 = vpop.f32.mrf.mxu0
  %752 = vdwg.mxu0
  %v753 = vadd.f32 %v750, %v58
  %v754 = vxor.u32 %v753, 2147483648
  %v755 = vmul.f32 %v754, 1.442695
  %v756 = vpow.pop %v755
  %v757 = vadd.f32 %v756, 1.0
  %v758 = vrcp.pop %v757
  %v759 = vmul.f32 1.0, %v758
  %v760 = vtanh.pop %v753
  %v761 = vmul.f32 %v759, %v501
  %763 = vrot.lane.b32.xlu0 %v760, 32
  %v764 = vpop.permute.xlu0 %763
  %v766 = vmul.f32 %v759, %v764
  %768 = vrot.lane.b32.xlu0 %v766, 32
  %v769 = vpop.permute.xlu0 %768
  %v771 = vadd.f32 %v761, %v769
  %v772 = vtanh.pop %v771
  %774 = vrot.lane.b32.xlu0 %v772, 32
  %v775 = vpop.permute.xlu0 %774
  %v777 = vmul.f32 %v759, %v775
  %778 = vmatprep.subr.mxu0 0.0
  %779 = vmatpush1.msra.mxu0 0.0
  %780 = vmatprep.subr.mxu0 0.0
  %781 = vmatpush1.msra.mxu0 0.0
  %782 = vmatprep.subr.mxu0 0.0
  %783 = vmatpush1.msra.mxu0 0.0
  %784 = vmatprep.subr.mxu0 0.0
  %785 = vmatpush1.msra.mxu0 0.0
  %786 = vmatprep.subr.mxu0 0.0
  %787 = vmatpush1.msra.mxu0 0.0
  %788 = vmatprep.subr.mxu0 0.0
  %789 = vmatpush1.msra.mxu0 0.0
  %790 = vmatprep.subr.mxu0 0.0
  %791 = vmatpush1.msra.mxu0 0.0
  %792 = vmatprep.subr.mxu0 0.0
  %793 = vmatpush1.msra.mxu0 0.0
  %794 = vmatprep.subr.mxu0 0.0
  %795 = vmatpush1.msra.mxu0 0.0
  %796 = vmatprep.subr.mxu0 0.0
  %797 = vmatpush1.msra.mxu0 0.0
  %798 = vmatprep.subr.mxu0 0.0
  %799 = vmatpush1.msra.mxu0 0.0
  %800 = vmatprep.subr.mxu0 0.0
  %801 = vmatpush1.msra.mxu0 0.0
  %802 = vmatprep.subr.mxu0 0.0
  %803 = vmatpush1.msra.mxu0 %v230
  %804 = vmatprep.subr.mxu0 0.0
  %805 = vmatpush1.msra.mxu0 %v229
  %806 = vmatprep.subr.mxu0 0.0
  %807 = vmatpush1.msra.mxu0 %v228
  %808 = vmatprep.subr.mxu0 0.0
  %809 = vmatpush1.msra.mxu0 %v227
  %810 = vmatprep.subr.mxu0 0.0
  %811 = vmatpush2.msra.mxu0 0.0
  %812 = vmatprep.subr.mxu0 0.0
  %813 = vmatpush2.msra.mxu0 0.0
  %814 = vmatprep.subr.mxu0 0.0
  %815 = vmatpush2.msra.mxu0 0.0
  %816 = vmatprep.subr.mxu0 0.0
  %817 = vmatpush2.msra.mxu0 0.0
  %818 = vmatprep.subr.mxu0 0.0
  %819 = vmatpush2.msra.mxu0 0.0
  %820 = vmatprep.subr.mxu0 0.0
  %821 = vmatpush2.msra.mxu0 0.0
  %822 = vmatprep.subr.mxu0 0.0
  %823 = vmatpush2.msra.mxu0 0.0
  %824 = vmatprep.subr.mxu0 0.0
  %825 = vmatpush2.msra.mxu0 0.0
  %826 = vmatprep.subr.mxu0 0.0
  %827 = vmatpush2.msra.mxu0 0.0
  %828 = vmatprep.subr.mxu0 0.0
  %829 = vmatpush2.msra.mxu0 0.0
  %830 = vmatprep.subr.mxu0 0.0
  %831 = vmatpush2.msra.mxu0 0.0
  %832 = vmatprep.subr.mxu0 0.0
  %833 = vmatpush2.msra.mxu0 0.0
  %834 = vmatprep.subr.mxu0 0.0
  %835 = vmatpush2.msra.mxu0 0.0
  %836 = vmatprep.subr.mxu0 0.0
  %837 = vmatpush2.msra.mxu0 0.0
  %838 = vmatprep.subr.mxu0 0.0
  %839 = vmatpush2.msra.mxu0 0.0
  %840 = vmatprep.subr.mxu0 0.0
  %841 = vmatpush2.msra.mxu0 0.0
  %842 = vmatprep.mubr.f32.mxu0 0.0
  %843 = vmatmul.mubr.f32.gmra.mxu0 %v681
  %v844 = vpop.f32.mrf.mxu0
  %v845 = vadd.f32 0.0, %v844
  %v846 = vpop.f32.mrf.mxu0
  %847 = vdwg.mxu0
  %v848 = vadd.f32 %v199, %v845
  %v849 = vxor.u32 %v848, 2147483648
  %v850 = vmul.f32 %v849, 1.442695
  %v851 = vpow.pop %v850
  %v852 = vadd.f32 %v851, 1.0
  %v853 = vrcp.pop %v852
  %v854 = vmul.f32 1.0, %v853
  %v855 = vtanh.pop %v848
  %v856 = vmul.f32 %v854, %v596
  %858 = vrot.lane.b32.xlu0 %v855, 32
  %v859 = vpop.permute.xlu0 %858
  %v861 = vmul.f32 %v854, %v859
  %863 = vrot.lane.b32.xlu0 %v861, 32
  %v864 = vpop.permute.xlu0 %863
  %v866 = vadd.f32 %v856, %v864
  %v867 = vtanh.pop %v866
  %869 = vrot.lane.b32.xlu0 %v867, 32
  %v870 = vpop.permute.xlu0 %869
  %v872 = vmul.f32 %v854, %v870
  %874 = vrot.lane.b32.xlu0 %v777, 64
  %v875 = vpop.permute.xlu0 %874
  %v876 = vsel %vm231, %v875, 0
  %878 = vmatprep.subr.mxu0 0.0
  %879 = vmatpush1.msra.mxu0 0.0
  %880 = vmatprep.subr.mxu0 0.0
  %881 = vmatpush1.msra.mxu0 0.0
  %882 = vmatprep.subr.mxu0 0.0
  %883 = vmatpush1.msra.mxu0 0.0
  %884 = vmatprep.subr.mxu0 0.0
  %885 = vmatpush1.msra.mxu0 0.0
  %886 = vmatprep.subr.mxu0 0.0
  %887 = vmatpush1.msra.mxu0 0.0
  %888 = vmatprep.subr.mxu0 0.0
  %889 = vmatpush1.msra.mxu0 0.0
  %890 = vmatprep.subr.mxu0 0.0
  %891 = vmatpush1.msra.mxu0 0.0
  %892 = vmatprep.subr.mxu0 0.0
  %893 = vmatpush1.msra.mxu0 0.0
  %894 = vmatprep.subr.mxu0 0.0
  %895 = vmatpush1.msra.mxu0 0.0
  %896 = vmatprep.subr.mxu0 0.0
  %897 = vmatpush1.msra.mxu0 0.0
  %898 = vmatprep.subr.mxu0 0.0
  %899 = vmatpush1.msra.mxu0 0.0
  %900 = vmatprep.subr.mxu0 0.0
  %901 = vmatpush1.msra.mxu0 0.0
  %902 = vmatprep.subr.mxu0 0.0
  %903 = vmatpush1.msra.mxu0 %v337
  %904 = vmatprep.subr.mxu0 0.0
  %905 = vmatpush1.msra.mxu0 %v336
  %906 = vmatprep.subr.mxu0 0.0
  %907 = vmatpush1.msra.mxu0 %v335
  %908 = vmatprep.subr.mxu0 0.0
  %909 = vmatpush1.msra.mxu0 %v334
  %910 = vmatprep.subr.mxu0 0.0
  %911 = vmatpush2.msra.mxu0 0.0
  %912 = vmatprep.subr.mxu0 0.0
  %913 = vmatpush2.msra.mxu0 0.0
  %914 = vmatprep.subr.mxu0 0.0
  %915 = vmatpush2.msra.mxu0 0.0
  %916 = vmatprep.subr.mxu0 0.0
  %917 = vmatpush2.msra.mxu0 0.0
  %918 = vmatprep.subr.mxu0 0.0
  %919 = vmatpush2.msra.mxu0 0.0
  %920 = vmatprep.subr.mxu0 0.0
  %921 = vmatpush2.msra.mxu0 0.0
  %922 = vmatprep.subr.mxu0 0.0
  %923 = vmatpush2.msra.mxu0 0.0
  %924 = vmatprep.subr.mxu0 0.0
  %925 = vmatpush2.msra.mxu0 0.0
  %926 = vmatprep.subr.mxu0 0.0
  %927 = vmatpush2.msra.mxu0 0.0
  %928 = vmatprep.subr.mxu0 0.0
  %929 = vmatpush2.msra.mxu0 0.0
  %930 = vmatprep.subr.mxu0 0.0
  %931 = vmatpush2.msra.mxu0 0.0
  %932 = vmatprep.subr.mxu0 0.0
  %933 = vmatpush2.msra.mxu0 0.0
  %934 = vmatprep.subr.mxu0 0.0
  %935 = vmatpush2.msra.mxu0 0.0
  %936 = vmatprep.subr.mxu0 0.0
  %937 = vmatpush2.msra.mxu0 0.0
  %938 = vmatprep.subr.mxu0 0.0
  %939 = vmatpush2.msra.mxu0 0.0
  %940 = vmatprep.subr.mxu0 0.0
  %941 = vmatpush2.msra.mxu0 0.0
  %942 = vmatprep.mubr.f32.mxu0 0.0
  %943 = vmatmul.mubr.f32.gmra.mxu0 %v876
  %v944 = vpop.f32.mrf.mxu0
  %v945 = vadd.f32 0.0, %v944
  %v946 = vpop.f32.mrf.mxu0
  %947 = vdwg.mxu0
  %949 = vrot.lane.b32.xlu0 %v872, 64
  %v950 = vpop.permute.xlu0 %949
  %v951 = vsel %vm231, %v950, 0
  %953 = vmatprep.subr.mxu0 0.0
  %954 = vmatpush1.msra.mxu0 0.0
  %955 = vmatprep.subr.mxu0 0.0
  %956 = vmatpush1.msra.mxu0 0.0
  %957 = vmatprep.subr.mxu0 0.0
  %958 = vmatpush1.msra.mxu0 0.0
  %959 = vmatprep.subr.mxu0 0.0
  %960 = vmatpush1.msra.mxu0 0.0
  %961 = vmatprep.subr.mxu0 0.0
  %962 = vmatpush1.msra.mxu0 0.0
  %963 = vmatprep.subr.mxu0 0.0
  %964 = vmatpush1.msra.mxu0 0.0
  %965 = vmatprep.subr.mxu0 0.0
  %966 = vmatpush1.msra.mxu0 0.0
  %967 = vmatprep.subr.mxu0 0.0
  %968 = vmatpush1.msra.mxu0 0.0
  %969 = vmatprep.subr.mxu0 0.0
  %970 = vmatpush1.msra.mxu0 0.0
  %971 = vmatprep.subr.mxu0 0.0
  %972 = vmatpush1.msra.mxu0 0.0
  %973 = vmatprep.subr.mxu0 0.0
  %974 = vmatpush1.msra.mxu0 0.0
  %975 = vmatprep.subr.mxu0 0.0
  %976 = vmatpush1.msra.mxu0 0.0
  %977 = vmatprep.subr.mxu0 0.0
  %978 = vmatpush1.msra.mxu0 %v333
  %979 = vmatprep.subr.mxu0 0.0
  %980 = vmatpush1.msra.mxu0 %v332
  %981 = vmatprep.subr.mxu0 0.0
  %982 = vmatpush1.msra.mxu0 %v331
  %983 = vmatprep.subr.mxu0 0.0
  %984 = vmatpush1.msra.mxu0 %v330
  %985 = vmatprep.subr.mxu0 0.0
  %986 = vmatpush2.msra.mxu0 0.0
  %987 = vmatprep.subr.mxu0 0.0
  %988 = vmatpush2.msra.mxu0 0.0
  %989 = vmatprep.subr.mxu0 0.0
  %990 = vmatpush2.msra.mxu0 0.0
  %991 = vmatprep.subr.mxu0 0.0
  %992 = vmatpush2.msra.mxu0 0.0
  %993 = vmatprep.subr.mxu0 0.0
  %994 = vmatpush2.msra.mxu0 0.0
  %995 = vmatprep.subr.mxu0 0.0
  %996 = vmatpush2.msra.mxu0 0.0
  %997 = vmatprep.subr.mxu0 0.0
  %998 = vmatpush2.msra.mxu0 0.0
  %999 = vmatprep.subr.mxu0 0.0
  %1000 = vmatpush2.msra.mxu0 0.0
  %1001 = vmatprep.subr.mxu0 0.0
  %1002 = vmatpush2.msra.mxu0 0.0
  %1003 = vmatprep.subr.mxu0 0.0
  %1004 = vmatpush2.msra.mxu0 0.0
  %1005 = vmatprep.subr.mxu0 0.0
  %1006 = vmatpush2.msra.mxu0 0.0
  %1007 = vmatprep.subr.mxu0 0.0
  %1008 = vmatpush2.msra.mxu0 0.0
  %1009 = vmatprep.subr.mxu0 0.0
  %1010 = vmatpush2.msra.mxu0 0.0
  %1011 = vmatprep.subr.mxu0 0.0
  %1012 = vmatpush2.msra.mxu0 0.0
  %1013 = vmatprep.subr.mxu0 0.0
  %1014 = vmatpush2.msra.mxu0 0.0
  %1015 = vmatprep.subr.mxu0 0.0
  %1016 = vmatpush2.msra.mxu0 0.0
  %1017 = vmatprep.mubr.f32.mxu0 0.0
  %1018 = vmatmul.mubr.f32.gmra.mxu0 %v951
  %v1019 = vpop.f32.mrf.mxu0
  %v1020 = vadd.f32 %v945, %v1019
  %v1021 = vpop.f32.mrf.mxu0
  %1022 = vdwg.mxu0
  %v1023 = vadd.f32 %v1020, %v58
  %v1024 = vxor.u32 %v1023, 2147483648
  %v1025 = vmul.f32 %v1024, 1.442695
  %v1026 = vpow.pop %v1025
  %v1027 = vadd.f32 %v1026, 1.0
  %v1028 = vrcp.pop %v1027
  %v1029 = vmul.f32 1.0, %v1028
  %v1030 = vtanh.pop %v1023
  %v1031 = vmul.f32 %v1029, %v771
  %1033 = vrot.lane.b32.xlu0 %v1030, 32
  %v1034 = vpop.permute.xlu0 %1033
  %v1036 = vmul.f32 %v1029, %v1034
  %1038 = vrot.lane.b32.xlu0 %v1036, 32
  %v1039 = vpop.permute.xlu0 %1038
  %v1041 = vadd.f32 %v1031, %v1039
  %v1042 = vtanh.pop %v1041
  %1044 = vrot.lane.b32.xlu0 %v1042, 32
  %v1045 = vpop.permute.xlu0 %1044
  %v1047 = vmul.f32 %v1029, %v1045
  %1048 = vmatprep.subr.mxu0 0.0
  %1049 = vmatpush1.msra.mxu0 0.0
  %1050 = vmatprep.subr.mxu0 0.0
  %1051 = vmatpush1.msra.mxu0 0.0
  %1052 = vmatprep.subr.mxu0 0.0
  %1053 = vmatpush1.msra.mxu0 0.0
  %1054 = vmatprep.subr.mxu0 0.0
  %1055 = vmatpush1.msra.mxu0 0.0
  %1056 = vmatprep.subr.mxu0 0.0
  %1057 = vmatpush1.msra.mxu0 0.0
  %1058 = vmatprep.subr.mxu0 0.0
  %1059 = vmatpush1.msra.mxu0 0.0
  %1060 = vmatprep.subr.mxu0 0.0
  %1061 = vmatpush1.msra.mxu0 0.0
  %1062 = vmatprep.subr.mxu0 0.0
  %1063 = vmatpush1.msra.mxu0 0.0
  %1064 = vmatprep.subr.mxu0 0.0
  %1065 = vmatpush1.msra.mxu0 0.0
  %1066 = vmatprep.subr.mxu0 0.0
  %1067 = vmatpush1.msra.mxu0 0.0
  %1068 = vmatprep.subr.mxu0 0.0
  %1069 = vmatpush1.msra.mxu0 0.0
  %1070 = vmatprep.subr.mxu0 0.0
  %1071 = vmatpush1.msra.mxu0 0.0
  %1072 = vmatprep.subr.mxu0 0.0
  %1073 = vmatpush1.msra.mxu0 %v230
  %1074 = vmatprep.subr.mxu0 0.0
  %1075 = vmatpush1.msra.mxu0 %v229
  %1076 = vmatprep.subr.mxu0 0.0
  %1077 = vmatpush1.msra.mxu0 %v228
  %1078 = vmatprep.subr.mxu0 0.0
  %1079 = vmatpush1.msra.mxu0 %v227
  %1080 = vmatprep.subr.mxu0 0.0
  %1081 = vmatpush2.msra.mxu0 0.0
  %1082 = vmatprep.subr.mxu0 0.0
  %1083 = vmatpush2.msra.mxu0 0.0
  %1084 = vmatprep.subr.mxu0 0.0
  %1085 = vmatpush2.msra.mxu0 0.0
  %1086 = vmatprep.subr.mxu0 0.0
  %1087 = vmatpush2.msra.mxu0 0.0
  %1088 = vmatprep.subr.mxu0 0.0
  %1089 = vmatpush2.msra.mxu0 0.0
  %1090 = vmatprep.subr.mxu0 0.0
  %1091 = vmatpush2.msra.mxu0 0.0
  %1092 = vmatprep.subr.mxu0 0.0
  %1093 = vmatpush2.msra.mxu0 0.0
  %1094 = vmatprep.subr.mxu0 0.0
  %1095 = vmatpush2.msra.mxu0 0.0
  %1096 = vmatprep.subr.mxu0 0.0
  %1097 = vmatpush2.msra.mxu0 0.0
  %1098 = vmatprep.subr.mxu0 0.0
  %1099 = vmatpush2.msra.mxu0 0.0
  %1100 = vmatprep.subr.mxu0 0.0
  %1101 = vmatpush2.msra.mxu0 0.0
  %1102 = vmatprep.subr.mxu0 0.0
  %1103 = vmatpush2.msra.mxu0 0.0
  %1104 = vmatprep.subr.mxu0 0.0
  %1105 = vmatpush2.msra.mxu0 0.0
  %1106 = vmatprep.subr.mxu0 0.0
  %1107 = vmatpush2.msra.mxu0 0.0
  %1108 = vmatprep.subr.mxu0 0.0
  %1109 = vmatpush2.msra.mxu0 0.0
  %1110 = vmatprep.subr.mxu0 0.0
  %1111 = vmatpush2.msra.mxu0 0.0
  %1112 = vmatprep.mubr.f32.mxu0 0.0
  %1113 = vmatmul.mubr.f32.gmra.mxu0 %v951
  %v1114 = vpop.f32.mrf.mxu0
  %v1115 = vadd.f32 0.0, %v1114
  %v1116 = vpop.f32.mrf.mxu0
  %1117 = vdwg.mxu0
  %v1118 = vadd.f32 %v204, %v1115
  %v1119 = vxor.u32 %v1118, 2147483648
  %v1120 = vmul.f32 %v1119, 1.442695
  %v1121 = vpow.pop %v1120
  %v1122 = vadd.f32 %v1121, 1.0
  %v1123 = vrcp.pop %v1122
  %v1124 = vmul.f32 1.0, %v1123
  %v1125 = vtanh.pop %v1118
  %v1126 = vmul.f32 %v1124, %v866
  %1128 = vrot.lane.b32.xlu0 %v1125, 32
  %v1129 = vpop.permute.xlu0 %1128
  %v1131 = vmul.f32 %v1124, %v1129
  %1133 = vrot.lane.b32.xlu0 %v1131, 32
  %v1134 = vpop.permute.xlu0 %1133
  %v1136 = vadd.f32 %v1126, %v1134
  %v1137 = vtanh.pop %v1136
  %1139 = vrot.lane.b32.xlu0 %v1137, 32
  %v1140 = vpop.permute.xlu0 %1139
  %v1142 = vmul.f32 %v1124, %v1140
  %1144 = vrot.lane.b32.xlu0 %v1047, 64
  %v1145 = vpop.permute.xlu0 %1144
  %v1146 = vsel %vm231, %v1145, 0
  %1148 = vmatprep.subr.mxu0 0.0
  %1149 = vmatpush1.msra.mxu0 0.0
  %1150 = vmatprep.subr.mxu0 0.0
  %1151 = vmatpush1.msra.mxu0 0.0
  %1152 = vmatprep.subr.mxu0 0.0
  %1153 = vmatpush1.msra.mxu0 0.0
  %1154 = vmatprep.subr.mxu0 0.0
  %1155 = vmatpush1.msra.mxu0 0.0
  %1156 = vmatprep.subr.mxu0 0.0
  %1157 = vmatpush1.msra.mxu0 0.0
  %1158 = vmatprep.subr.mxu0 0.0
  %1159 = vmatpush1.msra.mxu0 0.0
  %1160 = vmatprep.subr.mxu0 0.0
  %1161 = vmatpush1.msra.mxu0 0.0
  %1162 = vmatprep.subr.mxu0 0.0
  %1163 = vmatpush1.msra.mxu0 0.0
  %1164 = vmatprep.subr.mxu0 0.0
  %1165 = vmatpush1.msra.mxu0 0.0
  %1166 = vmatprep.subr.mxu0 0.0
  %1167 = vmatpush1.msra.mxu0 0.0
  %1168 = vmatprep.subr.mxu0 0.0
  %1169 = vmatpush1.msra.mxu0 0.0
  %1170 = vmatprep.subr.mxu0 0.0
  %1171 = vmatpush1.msra.mxu0 0.0
  %1172 = vmatprep.subr.mxu0 0.0
  %1173 = vmatpush1.msra.mxu0 %v337
  %1174 = vmatprep.subr.mxu0 0.0
  %1175 = vmatpush1.msra.mxu0 %v336
  %1176 = vmatprep.subr.mxu0 0.0
  %1177 = vmatpush1.msra.mxu0 %v335
  %1178 = vmatprep.subr.mxu0 0.0
  %1179 = vmatpush1.msra.mxu0 %v334
  %1180 = vmatprep.subr.mxu0 0.0
  %1181 = vmatpush2.msra.mxu0 0.0
  %1182 = vmatprep.subr.mxu0 0.0
  %1183 = vmatpush2.msra.mxu0 0.0
  %1184 = vmatprep.subr.mxu0 0.0
  %1185 = vmatpush2.msra.mxu0 0.0
  %1186 = vmatprep.subr.mxu0 0.0
  %1187 = vmatpush2.msra.mxu0 0.0
  %1188 = vmatprep.subr.mxu0 0.0
  %1189 = vmatpush2.msra.mxu0 0.0
  %1190 = vmatprep.subr.mxu0 0.0
  %1191 = vmatpush2.msra.mxu0 0.0
  %1192 = vmatprep.subr.mxu0 0.0
  %1193 = vmatpush2.msra.mxu0 0.0
  %1194 = vmatprep.subr.mxu0 0.0
  %1195 = vmatpush2.msra.mxu0 0.0
  %1196 = vmatprep.subr.mxu0 0.0
  %1197 = vmatpush2.msra.mxu0 0.0
  %1198 = vmatprep.subr.mxu0 0.0
  %1199 = vmatpush2.msra.mxu0 0.0
  %1200 = vmatprep.subr.mxu0 0.0
  %1201 = vmatpush2.msra.mxu0 0.0
  %1202 = vmatprep.subr.mxu0 0.0
  %1203 = vmatpush2.msra.mxu0 0.0
  %1204 = vmatprep.subr.mxu0 0.0
  %1205 = vmatpush2.msra.mxu0 0.0
  %1206 = vmatprep.subr.mxu0 0.0
  %1207 = vmatpush2.msra.mxu0 0.0
  %1208 = vmatprep.subr.mxu0 0.0
  %1209 = vmatpush2.msra.mxu0 0.0
  %1210 = vmatprep.subr.mxu0 0.0
  %1211 = vmatpush2.msra.mxu0 0.0
  %1212 = vmatprep.mubr.f32.mxu0 0.0
  %1213 = vmatmul.mubr.f32.gmra.mxu0 %v1146
  %v1214 = vpop.f32.mrf.mxu0
  %v1215 = vadd.f32 0.0, %v1214
  %v1216 = vpop.f32.mrf.mxu0
  %1217 = vdwg.mxu0
  %1219 = vrot.lane.b32.xlu0 %v1142, 64
  %v1220 = vpop.permute.xlu0 %1219
  %v1221 = vsel %vm231, %v1220, 0
  %1223 = vmatprep.subr.mxu0 0.0
  %1224 = vmatpush1.msra.mxu0 0.0
  %1225 = vmatprep.subr.mxu0 0.0
  %1226 = vmatpush1.msra.mxu0 0.0
  %1227 = vmatprep.subr.mxu0 0.0
  %1228 = vmatpush1.msra.mxu0 0.0
  %1229 = vmatprep.subr.mxu0 0.0
  %1230 = vmatpush1.msra.mxu0 0.0
  %1231 = vmatprep.subr.mxu0 0.0
  %1232 = vmatpush1.msra.mxu0 0.0
  %1233 = vmatprep.subr.mxu0 0.0
  %1234 = vmatpush1.msra.mxu0 0.0
  %1235 = vmatprep.subr.mxu0 0.0
  %1236 = vmatpush1.msra.mxu0 0.0
  %1237 = vmatprep.subr.mxu0 0.0
  %1238 = vmatpush1.msra.mxu0 0.0
  %1239 = vmatprep.subr.mxu0 0.0
  %1240 = vmatpush1.msra.mxu0 0.0
  %1241 = vmatprep.subr.mxu0 0.0
  %1242 = vmatpush1.msra.mxu0 0.0
  %1243 = vmatprep.subr.mxu0 0.0
  %1244 = vmatpush1.msra.mxu0 0.0
  %1245 = vmatprep.subr.mxu0 0.0
  %1246 = vmatpush1.msra.mxu0 0.0
  %1247 = vmatprep.subr.mxu0 0.0
  %1248 = vmatpush1.msra.mxu0 %v333
  %1249 = vmatprep.subr.mxu0 0.0
  %1250 = vmatpush1.msra.mxu0 %v332
  %1251 = vmatprep.subr.mxu0 0.0
  %1252 = vmatpush1.msra.mxu0 %v331
  %1253 = vmatprep.subr.mxu0 0.0
  %1254 = vmatpush1.msra.mxu0 %v330
  %1255 = vmatprep.subr.mxu0 0.0
  %1256 = vmatpush2.msra.mxu0 0.0
  %1257 = vmatprep.subr.mxu0 0.0
  %1258 = vmatpush2.msra.mxu0 0.0
  %1259 = vmatprep.subr.mxu0 0.0
  %1260 = vmatpush2.msra.mxu0 0.0
  %1261 = vmatprep.subr.mxu0 0.0
  %1262 = vmatpush2.msra.mxu0 0.0
  %1263 = vmatprep.subr.mxu0 0.0
  %1264 = vmatpush2.msra.mxu0 0.0
  %1265 = vmatprep.subr.mxu0 0.0
  %1266 = vmatpush2.msra.mxu0 0.0
  %1267 = vmatprep.subr.mxu0 0.0
  %1268 = vmatpush2.msra.mxu0 0.0
  %1269 = vmatprep.subr.mxu0 0.0
  %1270 = vmatpush2.msra.mxu0 0.0
  %1271 = vmatprep.subr.mxu0 0.0
  %1272 = vmatpush2.msra.mxu0 0.0
  %1273 = vmatprep.subr.mxu0 0.0
  %1274 = vmatpush2.msra.mxu0 0.0
  %1275 = vmatprep.subr.mxu0 0.0
  %1276 = vmatpush2.msra.mxu0 0.0
  %1277 = vmatprep.subr.mxu0 0.0
  %1278 = vmatpush2.msra.mxu0 0.0
  %1279 = vmatprep.subr.mxu0 0.0
  %1280 = vmatpush2.msra.mxu0 0.0
  %1281 = vmatprep.subr.mxu0 0.0
  %1282 = vmatpush2.msra.mxu0 0.0
  %1283 = vmatprep.subr.mxu0 0.0
  %1284 = vmatpush2.msra.mxu0 0.0
  %1285 = vmatprep.subr.mxu0 0.0
  %1286 = vmatpush2.msra.mxu0 0.0
  %1287 = vmatprep.mubr.f32.mxu0 0.0
  %1288 = vmatmul.mubr.f32.gmra.mxu0 %v1221
  %v1289 = vpop.f32.mrf.mxu0
  %v1290 = vadd.f32 %v1215, %v1289
  %v1291 = vpop.f32.mrf.mxu0
  %1292 = vdwg.mxu0
  %v1293 = vadd.f32 %v1290, %v58
  %v1294 = vxor.u32 %v1293, 2147483648
  %v1295 = vmul.f32 %v1294, 1.442695
  %v1296 = vpow.pop %v1295
  %v1297 = vadd.f32 %v1296, 1.0
  %v1298 = vrcp.pop %v1297
  %v1299 = vmul.f32 1.0, %v1298
  %v1300 = vtanh.pop %v1293
  %v1301 = vmul.f32 %v1299, %v1041
  %1303 = vrot.lane.b32.xlu0 %v1300, 32
  %v1304 = vpop.permute.xlu0 %1303
  %v1306 = vmul.f32 %v1299, %v1304
  %1308 = vrot.lane.b32.xlu0 %v1306, 32
  %v1309 = vpop.permute.xlu0 %1308
  %v1311 = vadd.f32 %v1301, %v1309
  %v1312 = vtanh.pop %v1311
  %1314 = vrot.lane.b32.xlu0 %v1312, 32
  %v1315 = vpop.permute.xlu0 %1314
  %v1317 = vmul.f32 %v1299, %v1315
  %1318 = vmatprep.subr.mxu0 0.0
  %1319 = vmatpush1.msra.mxu0 0.0
  %1320 = vmatprep.subr.mxu0 0.0
  %1321 = vmatpush1.msra.mxu0 0.0
  %1322 = vmatprep.subr.mxu0 0.0
  %1323 = vmatpush1.msra.mxu0 0.0
  %1324 = vmatprep.subr.mxu0 0.0
  %1325 = vmatpush1.msra.mxu0 0.0
  %1326 = vmatprep.subr.mxu0 0.0
  %1327 = vmatpush1.msra.mxu0 0.0
  %1328 = vmatprep.subr.mxu0 0.0
  %1329 = vmatpush1.msra.mxu0 0.0
  %1330 = vmatprep.subr.mxu0 0.0
  %1331 = vmatpush1.msra.mxu0 0.0
  %1332 = vmatprep.subr.mxu0 0.0
  %1333 = vmatpush1.msra.mxu0 0.0
  %1334 = vmatprep.subr.mxu0 0.0
  %1335 = vmatpush1.msra.mxu0 0.0
  %1336 = vmatprep.subr.mxu0 0.0
  %1337 = vmatpush1.msra.mxu0 0.0
  %1338 = vmatprep.subr.mxu0 0.0
  %1339 = vmatpush1.msra.mxu0 0.0
  %1340 = vmatprep.subr.mxu0 0.0
  %1341 = vmatpush1.msra.mxu0 0.0
  %1342 = vmatprep.subr.mxu0 0.0
  %1343 = vmatpush1.msra.mxu0 %v230
  %1344 = vmatprep.subr.mxu0 0.0
  %1345 = vmatpush1.msra.mxu0 %v229
  %1346 = vmatprep.subr.mxu0 0.0
  %1347 = vmatpush1.msra.mxu0 %v228
  %1348 = vmatprep.subr.mxu0 0.0
  %1349 = vmatpush1.msra.mxu0 %v227
  %1350 = vmatprep.subr.mxu0 0.0
  %1351 = vmatpush2.msra.mxu0 0.0
  %1352 = vmatprep.subr.mxu0 0.0
  %1353 = vmatpush2.msra.mxu0 0.0
  %1354 = vmatprep.subr.mxu0 0.0
  %1355 = vmatpush2.msra.mxu0 0.0
  %1356 = vmatprep.subr.mxu0 0.0
  %1357 = vmatpush2.msra.mxu0 0.0
  %1358 = vmatprep.subr.mxu0 0.0
  %1359 = vmatpush2.msra.mxu0 0.0
  %1360 = vmatprep.subr.mxu0 0.0
  %1361 = vmatpush2.msra.mxu0 0.0
  %1362 = vmatprep.subr.mxu0 0.0
  %1363 = vmatpush2.msra.mxu0 0.0
  %1364 = vmatprep.subr.mxu0 0.0
  %1365 = vmatpush2.msra.mxu0 0.0
  %1366 = vmatprep.subr.mxu0 0.0
  %1367 = vmatpush2.msra.mxu0 0.0
  %1368 = vmatprep.subr.mxu0 0.0
  %1369 = vmatpush2.msra.mxu0 0.0
  %1370 = vmatprep.subr.mxu0 0.0
  %1371 = vmatpush2.msra.mxu0 0.0
  %1372 = vmatprep.subr.mxu0 0.0
  %1373 = vmatpush2.msra.mxu0 0.0
  %1374 = vmatprep.subr.mxu0 0.0
  %1375 = vmatpush2.msra.mxu0 0.0
  %1376 = vmatprep.subr.mxu0 0.0
  %1377 = vmatpush2.msra.mxu0 0.0
  %1378 = vmatprep.subr.mxu0 0.0
  %1379 = vmatpush2.msra.mxu0 0.0
  %1380 = vmatprep.subr.mxu0 0.0
  %1381 = vmatpush2.msra.mxu0 0.0
  %1382 = vmatprep.mubr.f32.mxu0 0.0
  %1383 = vmatmul.mubr.f32.gmra.mxu0 %v1221
  %v1384 = vpop.f32.mrf.mxu0
  %v1385 = vadd.f32 0.0, %v1384
  %v1386 = vpop.f32.mrf.mxu0
  %1387 = vdwg.mxu0
  %v1388 = vadd.f32 %v209, %v1385
  %v1389 = vxor.u32 %v1388, 2147483648
  %v1390 = vmul.f32 %v1389, 1.442695
  %v1391 = vpow.pop %v1390
  %v1392 = vadd.f32 %v1391, 1.0
  %v1393 = vrcp.pop %v1392
  %v1394 = vmul.f32 1.0, %v1393
  %v1395 = vtanh.pop %v1388
  %v1396 = vmul.f32 %v1394, %v1136
  %1398 = vrot.lane.b32.xlu0 %v1395, 32
  %v1399 = vpop.permute.xlu0 %1398
  %v1401 = vmul.f32 %v1394, %v1399
  %1403 = vrot.lane.b32.xlu0 %v1401, 32
  %v1404 = vpop.permute.xlu0 %1403
  %v1406 = vadd.f32 %v1396, %v1404
  %v1407 = vtanh.pop %v1406
  %1409 = vrot.lane.b32.xlu0 %v1407, 32
  %v1410 = vpop.permute.xlu0 %1409
  %v1412 = vmul.f32 %v1394, %v1410
  %1414 = vrot.lane.b32.xlu0 %v1317, 64
  %v1415 = vpop.permute.xlu0 %1414
  %v1416 = vsel %vm231, %v1415, 0
  %1418 = vmatprep.subr.mxu0 0.0
  %1419 = vmatpush1.msra.mxu0 0.0
  %1420 = vmatprep.subr.mxu0 0.0
  %1421 = vmatpush1.msra.mxu0 0.0
  %1422 = vmatprep.subr.mxu0 0.0
  %1423 = vmatpush1.msra.mxu0 0.0
  %1424 = vmatprep.subr.mxu0 0.0
  %1425 = vmatpush1.msra.mxu0 0.0
  %1426 = vmatprep.subr.mxu0 0.0
  %1427 = vmatpush1.msra.mxu0 0.0
  %1428 = vmatprep.subr.mxu0 0.0
  %1429 = vmatpush1.msra.mxu0 0.0
  %1430 = vmatprep.subr.mxu0 0.0
  %1431 = vmatpush1.msra.mxu0 0.0
  %1432 = vmatprep.subr.mxu0 0.0
  %1433 = vmatpush1.msra.mxu0 0.0
  %1434 = vmatprep.subr.mxu0 0.0
  %1435 = vmatpush1.msra.mxu0 0.0
  %1436 = vmatprep.subr.mxu0 0.0
  %1437 = vmatpush1.msra.mxu0 0.0
  %1438 = vmatprep.subr.mxu0 0.0
  %1439 = vmatpush1.msra.mxu0 0.0
  %1440 = vmatprep.subr.mxu0 0.0
  %1441 = vmatpush1.msra.mxu0 0.0
  %1442 = vmatprep.subr.mxu0 0.0
  %1443 = vmatpush1.msra.mxu0 %v337
  %1444 = vmatprep.subr.mxu0 0.0
  %1445 = vmatpush1.msra.mxu0 %v336
  %1446 = vmatprep.subr.mxu0 0.0
  %1447 = vmatpush1.msra.mxu0 %v335
  %1448 = vmatprep.subr.mxu0 0.0
  %1449 = vmatpush1.msra.mxu0 %v334
  %1450 = vmatprep.subr.mxu0 0.0
  %1451 = vmatpush2.msra.mxu0 0.0
  %1452 = vmatprep.subr.mxu0 0.0
  %1453 = vmatpush2.msra.mxu0 0.0
  %1454 = vmatprep.subr.mxu0 0.0
  %1455 = vmatpush2.msra.mxu0 0.0
  %1456 = vmatprep.subr.mxu0 0.0
  %1457 = vmatpush2.msra.mxu0 0.0
  %1458 = vmatprep.subr.mxu0 0.0
  %1459 = vmatpush2.msra.mxu0 0.0
  %1460 = vmatprep.subr.mxu0 0.0
  %1461 = vmatpush2.msra.mxu0 0.0
  %1462 = vmatprep.subr.mxu0 0.0
  %1463 = vmatpush2.msra.mxu0 0.0
  %1464 = vmatprep.subr.mxu0 0.0
  %1465 = vmatpush2.msra.mxu0 0.0
  %1466 = vmatprep.subr.mxu0 0.0
  %1467 = vmatpush2.msra.mxu0 0.0
  %1468 = vmatprep.subr.mxu0 0.0
  %1469 = vmatpush2.msra.mxu0 0.0
  %1470 = vmatprep.subr.mxu0 0.0
  %1471 = vmatpush2.msra.mxu0 0.0
  %1472 = vmatprep.subr.mxu0 0.0
  %1473 = vmatpush2.msra.mxu0 0.0
  %1474 = vmatprep.subr.mxu0 0.0
  %1475 = vmatpush2.msra.mxu0 0.0
  %1476 = vmatprep.subr.mxu0 0.0
  %1477 = vmatpush2.msra.mxu0 0.0
  %1478 = vmatprep.subr.mxu0 0.0
  %1479 = vmatpush2.msra.mxu0 0.0
  %1480 = vmatprep.subr.mxu0 0.0
  %1481 = vmatpush2.msra.mxu0 0.0
  %1482 = vmatprep.mubr.f32.mxu0 0.0
  %1483 = vmatmul.mubr.f32.gmra.mxu0 %v1416
  %v1484 = vpop.f32.mrf.mxu0
  %v1485 = vadd.f32 0.0, %v1484
  %v1486 = vpop.f32.mrf.mxu0
  %1487 = vdwg.mxu0
  %1489 = vrot.lane.b32.xlu0 %v1412, 64
  %v1490 = vpop.permute.xlu0 %1489
  %v1491 = vsel %vm231, %v1490, 0
  %1493 = vmatprep.subr.mxu0 0.0
  %1494 = vmatpush1.msra.mxu0 0.0
  %1495 = vmatprep.subr.mxu0 0.0
  %1496 = vmatpush1.msra.mxu0 0.0
  %1497 = vmatprep.subr.mxu0 0.0
  %1498 = vmatpush1.msra.mxu0 0.0
  %1499 = vmatprep.subr.mxu0 0.0
  %1500 = vmatpush1.msra.mxu0 0.0
  %1501 = vmatprep.subr.mxu0 0.0
  %1502 = vmatpush1.msra.mxu0 0.0
  %1503 = vmatprep.subr.mxu0 0.0
  %1504 = vmatpush1.msra.mxu0 0.0
  %1505 = vmatprep.subr.mxu0 0.0
  %1506 = vmatpush1.msra.mxu0 0.0
  %1507 = vmatprep.subr.mxu0 0.0
  %1508 = vmatpush1.msra.mxu0 0.0
  %1509 = vmatprep.subr.mxu0 0.0
  %1510 = vmatpush1.msra.mxu0 0.0
  %1511 = vmatprep.subr.mxu0 0.0
  %1512 = vmatpush1.msra.mxu0 0.0
  %1513 = vmatprep.subr.mxu0 0.0
  %1514 = vmatpush1.msra.mxu0 0.0
  %1515 = vmatprep.subr.mxu0 0.0
  %1516 = vmatpush1.msra.mxu0 0.0
  %1517 = vmatprep.subr.mxu0 0.0
  %1518 = vmatpush1.msra.mxu0 %v333
  %1519 = vmatprep.subr.mxu0 0.0
  %1520 = vmatpush1.msra.mxu0 %v332
  %1521 = vmatprep.subr.mxu0 0.0
  %1522 = vmatpush1.msra.mxu0 %v331
  %1523 = vmatprep.subr.mxu0 0.0
  %1524 = vmatpush1.msra.mxu0 %v330
  %1525 = vmatprep.subr.mxu0 0.0
  %1526 = vmatpush2.msra.mxu0 0.0
  %1527 = vmatprep.subr.mxu0 0.0
  %1528 = vmatpush2.msra.mxu0 0.0
  %1529 = vmatprep.subr.mxu0 0.0
  %1530 = vmatpush2.msra.mxu0 0.0
  %1531 = vmatprep.subr.mxu0 0.0
  %1532 = vmatpush2.msra.mxu0 0.0
  %1533 = vmatprep.subr.mxu0 0.0
  %1534 = vmatpush2.msra.mxu0 0.0
  %1535 = vmatprep.subr.mxu0 0.0
  %1536 = vmatpush2.msra.mxu0 0.0
  %1537 = vmatprep.subr.mxu0 0.0
  %1538 = vmatpush2.msra.mxu0 0.0
  %1539 = vmatprep.subr.mxu0 0.0
  %1540 = vmatpush2.msra.mxu0 0.0
  %1541 = vmatprep.subr.mxu0 0.0
  %1542 = vmatpush2.msra.mxu0 0.0
  %1543 = vmatprep.subr.mxu0 0.0
  %1544 = vmatpush2.msra.mxu0 0.0
  %1545 = vmatprep.subr.mxu0 0.0
  %1546 = vmatpush2.msra.mxu0 0.0
  %1547 = vmatprep.subr.mxu0 0.0
  %1548 = vmatpush2.msra.mxu0 0.0
  %1549 = vmatprep.subr.mxu0 0.0
  %1550 = vmatpush2.msra.mxu0 0.0
  %1551 = vmatprep.subr.mxu0 0.0
  %1552 = vmatpush2.msra.mxu0 0.0
  %1553 = vmatprep.subr.mxu0 0.0
  %1554 = vmatpush2.msra.mxu0 0.0
  %1555 = vmatprep.subr.mxu0 0.0
  %1556 = vmatpush2.msra.mxu0 0.0
  %1557 = vmatprep.mubr.f32.mxu0 0.0
  %1558 = vmatmul.mubr.f32.gmra.mxu0 %v1491
  %v1559 = vpop.f32.mrf.mxu0
  %v1560 = vadd.f32 %v1485, %v1559
  %v1561 = vpop.f32.mrf.mxu0
  %1562 = vdwg.mxu0
  %v1563 = vadd.f32 %v1560, %v58
  %v1564 = vxor.u32 %v1563, 2147483648
  %v1565 = vmul.f32 %v1564, 1.442695
  %v1566 = vpow.pop %v1565
  %v1567 = vadd.f32 %v1566, 1.0
  %v1568 = vrcp.pop %v1567
  %v1569 = vmul.f32 1.0, %v1568
  %v1570 = vtanh.pop %v1563
  %v1571 = vmul.f32 %v1569, %v1311
  %1573 = vrot.lane.b32.xlu0 %v1570, 32
  %v1574 = vpop.permute.xlu0 %1573
  %v1576 = vmul.f32 %v1569, %v1574
  %1578 = vrot.lane.b32.xlu0 %v1576, 32
  %v1579 = vpop.permute.xlu0 %1578
  %v1581 = vadd.f32 %v1571, %v1579
  %v1582 = vtanh.pop %v1581
  %1584 = vrot.lane.b32.xlu0 %v1582, 32
  %v1585 = vpop.permute.xlu0 %1584
  %v1587 = vmul.f32 %v1569, %v1585
  %1588 = vmatprep.subr.mxu0 0.0
  %1589 = vmatpush1.msra.mxu0 0.0
  %1590 = vmatprep.subr.mxu0 0.0
  %1591 = vmatpush1.msra.mxu0 0.0
  %1592 = vmatprep.subr.mxu0 0.0
  %1593 = vmatpush1.msra.mxu0 0.0
  %1594 = vmatprep.subr.mxu0 0.0
  %1595 = vmatpush1.msra.mxu0 0.0
  %1596 = vmatprep.subr.mxu0 0.0
  %1597 = vmatpush1.msra.mxu0 0.0
  %1598 = vmatprep.subr.mxu0 0.0
  %1599 = vmatpush1.msra.mxu0 0.0
  %1600 = vmatprep.subr.mxu0 0.0
  %1601 = vmatpush1.msra.mxu0 0.0
  %1602 = vmatprep.subr.mxu0 0.0
  %1603 = vmatpush1.msra.mxu0 0.0
  %1604 = vmatprep.subr.mxu0 0.0
  %1605 = vmatpush1.msra.mxu0 0.0
  %1606 = vmatprep.subr.mxu0 0.0
  %1607 = vmatpush1.msra.mxu0 0.0
  %1608 = vmatprep.subr.mxu0 0.0
  %1609 = vmatpush1.msra.mxu0 0.0
  %1610 = vmatprep.subr.mxu0 0.0
  %1611 = vmatpush1.msra.mxu0 0.0
  %1612 = vmatprep.subr.mxu0 0.0
  %1613 = vmatpush1.msra.mxu0 %v230
  %1614 = vmatprep.subr.mxu0 0.0
  %1615 = vmatpush1.msra.mxu0 %v229
  %1616 = vmatprep.subr.mxu0 0.0
  %1617 = vmatpush1.msra.mxu0 %v228
  %1618 = vmatprep.subr.mxu0 0.0
  %1619 = vmatpush1.msra.mxu0 %v227
  %1620 = vmatprep.subr.mxu0 0.0
  %1621 = vmatpush2.msra.mxu0 0.0
  %1622 = vmatprep.subr.mxu0 0.0
  %1623 = vmatpush2.msra.mxu0 0.0
  %1624 = vmatprep.subr.mxu0 0.0
  %1625 = vmatpush2.msra.mxu0 0.0
  %1626 = vmatprep.subr.mxu0 0.0
  %1627 = vmatpush2.msra.mxu0 0.0
  %1628 = vmatprep.subr.mxu0 0.0
  %1629 = vmatpush2.msra.mxu0 0.0
  %1630 = vmatprep.subr.mxu0 0.0
  %1631 = vmatpush2.msra.mxu0 0.0
  %1632 = vmatprep.subr.mxu0 0.0
  %1633 = vmatpush2.msra.mxu0 0.0
  %1634 = vmatprep.subr.mxu0 0.0
  %1635 = vmatpush2.msra.mxu0 0.0
  %1636 = vmatprep.subr.mxu0 0.0
  %1637 = vmatpush2.msra.mxu0 0.0
  %1638 = vmatprep.subr.mxu0 0.0
  %1639 = vmatpush2.msra.mxu0 0.0
  %1640 = vmatprep.subr.mxu0 0.0
  %1641 = vmatpush2.msra.mxu0 0.0
  %1642 = vmatprep.subr.mxu0 0.0
  %1643 = vmatpush2.msra.mxu0 0.0
  %1644 = vmatprep.subr.mxu0 0.0
  %1645 = vmatpush2.msra.mxu0 0.0
  %1646 = vmatprep.subr.mxu0 0.0
  %1647 = vmatpush2.msra.mxu0 0.0
  %1648 = vmatprep.subr.mxu0 0.0
  %1649 = vmatpush2.msra.mxu0 0.0
  %1650 = vmatprep.subr.mxu0 0.0
  %1651 = vmatpush2.msra.mxu0 0.0
  %1652 = vmatprep.mubr.f32.mxu0 0.0
  %1653 = vmatmul.mubr.f32.gmra.mxu0 %v1491
  %v1654 = vpop.f32.mrf.mxu0
  %v1655 = vadd.f32 0.0, %v1654
  %v1656 = vpop.f32.mrf.mxu0
  %1657 = vdwg.mxu0
  %v1658 = vadd.f32 %v214, %v1655
  %v1659 = vxor.u32 %v1658, 2147483648
  %v1660 = vmul.f32 %v1659, 1.442695
  %v1661 = vpow.pop %v1660
  %v1662 = vadd.f32 %v1661, 1.0
  %v1663 = vrcp.pop %v1662
  %v1664 = vmul.f32 1.0, %v1663
  %v1665 = vtanh.pop %v1658
  %v1666 = vmul.f32 %v1664, %v1406
  %1668 = vrot.lane.b32.xlu0 %v1665, 32
  %v1669 = vpop.permute.xlu0 %1668
  %v1671 = vmul.f32 %v1664, %v1669
  %1673 = vrot.lane.b32.xlu0 %v1671, 32
  %v1674 = vpop.permute.xlu0 %1673
  %v1676 = vadd.f32 %v1666, %v1674
  %v1677 = vtanh.pop %v1676
  %1679 = vrot.lane.b32.xlu0 %v1677, 32
  %v1680 = vpop.permute.xlu0 %1679
  %v1682 = vmul.f32 %v1664, %v1680
  %1684 = vrot.lane.b32.xlu0 %v1587, 64
  %v1685 = vpop.permute.xlu0 %1684
  %v1686 = vsel %vm231, %v1685, 0
  %1688 = vmatprep.subr.mxu0 0.0
  %1689 = vmatpush1.msra.mxu0 0.0
  %1690 = vmatprep.subr.mxu0 0.0
  %1691 = vmatpush1.msra.mxu0 0.0
  %1692 = vmatprep.subr.mxu0 0.0
  %1693 = vmatpush1.msra.mxu0 0.0
  %1694 = vmatprep.subr.mxu0 0.0
  %1695 = vmatpush1.msra.mxu0 0.0
  %1696 = vmatprep.subr.mxu0 0.0
  %1697 = vmatpush1.msra.mxu0 0.0
  %1698 = vmatprep.subr.mxu0 0.0
  %1699 = vmatpush1.msra.mxu0 0.0
  %1700 = vmatprep.subr.mxu0 0.0
  %1701 = vmatpush1.msra.mxu0 0.0
  %1702 = vmatprep.subr.mxu0 0.0
  %1703 = vmatpush1.msra.mxu0 0.0
  %1704 = vmatprep.subr.mxu0 0.0
  %1705 = vmatpush1.msra.mxu0 0.0
  %1706 = vmatprep.subr.mxu0 0.0
  %1707 = vmatpush1.msra.mxu0 0.0
  %1708 = vmatprep.subr.mxu0 0.0
  %1709 = vmatpush1.msra.mxu0 0.0
  %1710 = vmatprep.subr.mxu0 0.0
  %1711 = vmatpush1.msra.mxu0 0.0
  %1712 = vmatprep.subr.mxu0 0.0
  %1713 = vmatpush1.msra.mxu0 %v337
  %1714 = vmatprep.subr.mxu0 0.0
  %1715 = vmatpush1.msra.mxu0 %v336
  %1716 = vmatprep.subr.mxu0 0.0
  %1717 = vmatpush1.msra.mxu0 %v335
  %1718 = vmatprep.subr.mxu0 0.0
  %1719 = vmatpush1.msra.mxu0 %v334
  %1720 = vmatprep.subr.mxu0 0.0
  %1721 = vmatpush2.msra.mxu0 0.0
  %1722 = vmatprep.subr.mxu0 0.0
  %1723 = vmatpush2.msra.mxu0 0.0
  %1724 = vmatprep.subr.mxu0 0.0
  %1725 = vmatpush2.msra.mxu0 0.0
  %1726 = vmatprep.subr.mxu0 0.0
  %1727 = vmatpush2.msra.mxu0 0.0
  %1728 = vmatprep.subr.mxu0 0.0
  %1729 = vmatpush2.msra.mxu0 0.0
  %1730 = vmatprep.subr.mxu0 0.0
  %1731 = vmatpush2.msra.mxu0 0.0
  %1732 = vmatprep.subr.mxu0 0.0
  %1733 = vmatpush2.msra.mxu0 0.0
  %1734 = vmatprep.subr.mxu0 0.0
  %1735 = vmatpush2.msra.mxu0 0.0
  %1736 = vmatprep.subr.mxu0 0.0
  %1737 = vmatpush2.msra.mxu0 0.0
  %1738 = vmatprep.subr.mxu0 0.0
  %1739 = vmatpush2.msra.mxu0 0.0
  %1740 = vmatprep.subr.mxu0 0.0
  %1741 = vmatpush2.msra.mxu0 0.0
  %1742 = vmatprep.subr.mxu0 0.0
  %1743 = vmatpush2.msra.mxu0 0.0
  %1744 = vmatprep.subr.mxu0 0.0
  %1745 = vmatpush2.msra.mxu0 0.0
  %1746 = vmatprep.subr.mxu0 0.0
  %1747 = vmatpush2.msra.mxu0 0.0
  %1748 = vmatprep.subr.mxu0 0.0
  %1749 = vmatpush2.msra.mxu0 0.0
  %1750 = vmatprep.subr.mxu0 0.0
  %1751 = vmatpush2.msra.mxu0 0.0
  %1752 = vmatprep.mubr.f32.mxu0 0.0
  %1753 = vmatmul.mubr.f32.gmra.mxu0 %v1686
  %v1754 = vpop.f32.mrf.mxu0
  %v1755 = vadd.f32 0.0, %v1754
  %v1756 = vpop.f32.mrf.mxu0
  %1757 = vdwg.mxu0
  %1759 = vrot.lane.b32.xlu0 %v1682, 64
  %v1760 = vpop.permute.xlu0 %1759
  %v1761 = vsel %vm231, %v1760, 0
  %1763 = vmatprep.subr.mxu0 0.0
  %1764 = vmatpush1.msra.mxu0 0.0
  %1765 = vmatprep.subr.mxu0 0.0
  %1766 = vmatpush1.msra.mxu0 0.0
  %1767 = vmatprep.subr.mxu0 0.0
  %1768 = vmatpush1.msra.mxu0 0.0
  %1769 = vmatprep.subr.mxu0 0.0
  %1770 = vmatpush1.msra.mxu0 0.0
  %1771 = vmatprep.subr.mxu0 0.0
  %1772 = vmatpush1.msra.mxu0 0.0
  %1773 = vmatprep.subr.mxu0 0.0
  %1774 = vmatpush1.msra.mxu0 0.0
  %1775 = vmatprep.subr.mxu0 0.0
  %1776 = vmatpush1.msra.mxu0 0.0
  %1777 = vmatprep.subr.mxu0 0.0
  %1778 = vmatpush1.msra.mxu0 0.0
  %1779 = vmatprep.subr.mxu0 0.0
  %1780 = vmatpush1.msra.mxu0 0.0
  %1781 = vmatprep.subr.mxu0 0.0
  %1782 = vmatpush1.msra.mxu0 0.0
  %1783 = vmatprep.subr.mxu0 0.0
  %1784 = vmatpush1.msra.mxu0 0.0
  %1785 = vmatprep.subr.mxu0 0.0
  %1786 = vmatpush1.msra.mxu0 0.0
  %1787 = vmatprep.subr.mxu0 0.0
  %1788 = vmatpush1.msra.mxu0 %v333
  %1789 = vmatprep.subr.mxu0 0.0
  %1790 = vmatpush1.msra.mxu0 %v332
  %1791 = vmatprep.subr.mxu0 0.0
  %1792 = vmatpush1.msra.mxu0 %v331
  %1793 = vmatprep.subr.mxu0 0.0
  %1794 = vmatpush1.msra.mxu0 %v330
  %1795 = vmatprep.subr.mxu0 0.0
  %1796 = vmatpush2.msra.mxu0 0.0
  %1797 = vmatprep.subr.mxu0 0.0
  %1798 = vmatpush2.msra.mxu0 0.0
  %1799 = vmatprep.subr.mxu0 0.0
  %1800 = vmatpush2.msra.mxu0 0.0
  %1801 = vmatprep.subr.mxu0 0.0
  %1802 = vmatpush2.msra.mxu0 0.0
  %1803 = vmatprep.subr.mxu0 0.0
  %1804 = vmatpush2.msra.mxu0 0.0
  %1805 = vmatprep.subr.mxu0 0.0
  %1806 = vmatpush2.msra.mxu0 0.0
  %1807 = vmatprep.subr.mxu0 0.0
  %1808 = vmatpush2.msra.mxu0 0.0
  %1809 = vmatprep.subr.mxu0 0.0
  %1810 = vmatpush2.msra.mxu0 0.0
  %1811 = vmatprep.subr.mxu0 0.0
  %1812 = vmatpush2.msra.mxu0 0.0
  %1813 = vmatprep.subr.mxu0 0.0
  %1814 = vmatpush2.msra.mxu0 0.0
  %1815 = vmatprep.subr.mxu0 0.0
  %1816 = vmatpush2.msra.mxu0 0.0
  %1817 = vmatprep.subr.mxu0 0.0
  %1818 = vmatpush2.msra.mxu0 0.0
  %1819 = vmatprep.subr.mxu0 0.0
  %1820 = vmatpush2.msra.mxu0 0.0
  %1821 = vmatprep.subr.mxu0 0.0
  %1822 = vmatpush2.msra.mxu0 0.0
  %1823 = vmatprep.subr.mxu0 0.0
  %1824 = vmatpush2.msra.mxu0 0.0
  %1825 = vmatprep.subr.mxu0 0.0
  %1826 = vmatpush2.msra.mxu0 0.0
  %1827 = vmatprep.mubr.f32.mxu0 0.0
  %1828 = vmatmul.mubr.f32.gmra.mxu0 %v1761
  %v1829 = vpop.f32.mrf.mxu0
  %v1830 = vadd.f32 %v1755, %v1829
  %v1831 = vpop.f32.mrf.mxu0
  %1832 = vdwg.mxu0
  %v1833 = vadd.f32 %v1830, %v58
  %v1834 = vxor.u32 %v1833, 2147483648
  %v1835 = vmul.f32 %v1834, 1.442695
  %v1836 = vpow.pop %v1835
  %v1837 = vadd.f32 %v1836, 1.0
  %v1838 = vrcp.pop %v1837
  %v1839 = vmul.f32 1.0, %v1838
  %v1840 = vtanh.pop %v1833
  %v1841 = vmul.f32 %v1839, %v1581
  %1843 = vrot.lane.b32.xlu0 %v1840, 32
  %v1844 = vpop.permute.xlu0 %1843
  %v1846 = vmul.f32 %v1839, %v1844
  %1848 = vrot.lane.b32.xlu0 %v1846, 32
  %v1849 = vpop.permute.xlu0 %1848
  %v1851 = vadd.f32 %v1841, %v1849
  %v1852 = vtanh.pop %v1851
  %1854 = vrot.lane.b32.xlu0 %v1852, 32
  %v1855 = vpop.permute.xlu0 %1854
  %v1857 = vmul.f32 %v1839, %v1855
  %1858 = vmatprep.subr.mxu0 0.0
  %1859 = vmatpush1.msra.mxu0 0.0
  %1860 = vmatprep.subr.mxu0 0.0
  %1861 = vmatpush1.msra.mxu0 0.0
  %1862 = vmatprep.subr.mxu0 0.0
  %1863 = vmatpush1.msra.mxu0 0.0
  %1864 = vmatprep.subr.mxu0 0.0
  %1865 = vmatpush1.msra.mxu0 0.0
  %1866 = vmatprep.subr.mxu0 0.0
  %1867 = vmatpush1.msra.mxu0 0.0
  %1868 = vmatprep.subr.mxu0 0.0
  %1869 = vmatpush1.msra.mxu0 0.0
  %1870 = vmatprep.subr.mxu0 0.0
  %1871 = vmatpush1.msra.mxu0 0.0
  %1872 = vmatprep.subr.mxu0 0.0
  %1873 = vmatpush1.msra.mxu0 0.0
  %1874 = vmatprep.subr.mxu0 0.0
  %1875 = vmatpush1.msra.mxu0 0.0
  %1876 = vmatprep.subr.mxu0 0.0
  %1877 = vmatpush1.msra.mxu0 0.0
  %1878 = vmatprep.subr.mxu0 0.0
  %1879 = vmatpush1.msra.mxu0 0.0
  %1880 = vmatprep.subr.mxu0 0.0
  %1881 = vmatpush1.msra.mxu0 0.0
  %1882 = vmatprep.subr.mxu0 0.0
  %1883 = vmatpush1.msra.mxu0 %v230
  %1884 = vmatprep.subr.mxu0 0.0
  %1885 = vmatpush1.msra.mxu0 %v229
  %1886 = vmatprep.subr.mxu0 0.0
  %1887 = vmatpush1.msra.mxu0 %v228
  %1888 = vmatprep.subr.mxu0 0.0
  %1889 = vmatpush1.msra.mxu0 %v227
  %1890 = vmatprep.subr.mxu0 0.0
  %1891 = vmatpush2.msra.mxu0 0.0
  %1892 = vmatprep.subr.mxu0 0.0
  %1893 = vmatpush2.msra.mxu0 0.0
  %1894 = vmatprep.subr.mxu0 0.0
  %1895 = vmatpush2.msra.mxu0 0.0
  %1896 = vmatprep.subr.mxu0 0.0
  %1897 = vmatpush2.msra.mxu0 0.0
  %1898 = vmatprep.subr.mxu0 0.0
  %1899 = vmatpush2.msra.mxu0 0.0
  %1900 = vmatprep.subr.mxu0 0.0
  %1901 = vmatpush2.msra.mxu0 0.0
  %1902 = vmatprep.subr.mxu0 0.0
  %1903 = vmatpush2.msra.mxu0 0.0
  %1904 = vmatprep.subr.mxu0 0.0
  %1905 = vmatpush2.msra.mxu0 0.0
  %1906 = vmatprep.subr.mxu0 0.0
  %1907 = vmatpush2.msra.mxu0 0.0
  %1908 = vmatprep.subr.mxu0 0.0
  %1909 = vmatpush2.msra.mxu0 0.0
  %1910 = vmatprep.subr.mxu0 0.0
  %1911 = vmatpush2.msra.mxu0 0.0
  %1912 = vmatprep.subr.mxu0 0.0
  %1913 = vmatpush2.msra.mxu0 0.0
  %1914 = vmatprep.subr.mxu0 0.0
  %1915 = vmatpush2.msra.mxu0 0.0
  %1916 = vmatprep.subr.mxu0 0.0
  %1917 = vmatpush2.msra.mxu0 0.0
  %1918 = vmatprep.subr.mxu0 0.0
  %1919 = vmatpush2.msra.mxu0 0.0
  %1920 = vmatprep.subr.mxu0 0.0
  %1921 = vmatpush2.msra.mxu0 0.0
  %1922 = vmatprep.mubr.f32.mxu0 0.0
  %1923 = vmatmul.mubr.f32.gmra.mxu0 %v1761
  %v1924 = vpop.f32.mrf.mxu0
  %v1925 = vadd.f32 0.0, %v1924
  %v1926 = vpop.f32.mrf.mxu0
  %1927 = vdwg.mxu0
  %v1928 = vadd.f32 %v219, %v1925
  %v1929 = vxor.u32 %v1928, 2147483648
  %v1930 = vmul.f32 %v1929, 1.442695
  %v1931 = vpow.pop %v1930
  %v1932 = vadd.f32 %v1931, 1.0
  %v1933 = vrcp.pop %v1932
  %v1934 = vmul.f32 1.0, %v1933
  %v1935 = vtanh.pop %v1928
  %v1936 = vmul.f32 %v1934, %v1676
  %1938 = vrot.lane.b32.xlu0 %v1935, 32
  %v1939 = vpop.permute.xlu0 %1938
  %v1941 = vmul.f32 %v1934, %v1939
  %1943 = vrot.lane.b32.xlu0 %v1941, 32
  %v1944 = vpop.permute.xlu0 %1943
  %v1946 = vadd.f32 %v1936, %v1944
  %v1947 = vtanh.pop %v1946
  %1949 = vrot.lane.b32.xlu0 %v1947, 32
  %v1950 = vpop.permute.xlu0 %1949
  %v1952 = vmul.f32 %v1934, %v1950
  %1954 = vrot.lane.b32.xlu0 %v1857, 64
  %v1955 = vpop.permute.xlu0 %1954
  %v1956 = vsel %vm231, %v1955, 0
  %1958 = vmatprep.subr.mxu0 0.0
  %1959 = vmatpush1.msra.mxu0 0.0
  %1960 = vmatprep.subr.mxu0 0.0
  %1961 = vmatpush1.msra.mxu0 0.0
  %1962 = vmatprep.subr.mxu0 0.0
  %1963 = vmatpush1.msra.mxu0 0.0
  %1964 = vmatprep.subr.mxu0 0.0
  %1965 = vmatpush1.msra.mxu0 0.0
  %1966 = vmatprep.subr.mxu0 0.0
  %1967 = vmatpush1.msra.mxu0 0.0
  %1968 = vmatprep.subr.mxu0 0.0
  %1969 = vmatpush1.msra.mxu0 0.0
  %1970 = vmatprep.subr.mxu0 0.0
  %1971 = vmatpush1.msra.mxu0 0.0
  %1972 = vmatprep.subr.mxu0 0.0
  %1973 = vmatpush1.msra.mxu0 0.0
  %1974 = vmatprep.subr.mxu0 0.0
  %1975 = vmatpush1.msra.mxu0 0.0
  %1976 = vmatprep.subr.mxu0 0.0
  %1977 = vmatpush1.msra.mxu0 0.0
  %1978 = vmatprep.subr.mxu0 0.0
  %1979 = vmatpush1.msra.mxu0 0.0
  %1980 = vmatprep.subr.mxu0 0.0
  %1981 = vmatpush1.msra.mxu0 0.0
  %1982 = vmatprep.subr.mxu0 0.0
  %1983 = vmatpush1.msra.mxu0 %v337
  %1984 = vmatprep.subr.mxu0 0.0
  %1985 = vmatpush1.msra.mxu0 %v336
  %1986 = vmatprep.subr.mxu0 0.0
  %1987 = vmatpush1.msra.mxu0 %v335
  %1988 = vmatprep.subr.mxu0 0.0
  %1989 = vmatpush1.msra.mxu0 %v334
  %1990 = vmatprep.subr.mxu0 0.0
  %1991 = vmatpush2.msra.mxu0 0.0
  %1992 = vmatprep.subr.mxu0 0.0
  %1993 = vmatpush2.msra.mxu0 0.0
  %1994 = vmatprep.subr.mxu0 0.0
  %1995 = vmatpush2.msra.mxu0 0.0
  %1996 = vmatprep.subr.mxu0 0.0
  %1997 = vmatpush2.msra.mxu0 0.0
  %1998 = vmatprep.subr.mxu0 0.0
  %1999 = vmatpush2.msra.mxu0 0.0
  %2000 = vmatprep.subr.mxu0 0.0
  %2001 = vmatpush2.msra.mxu0 0.0
  %2002 = vmatprep.subr.mxu0 0.0
  %2003 = vmatpush2.msra.mxu0 0.0
  %2004 = vmatprep.subr.mxu0 0.0
  %2005 = vmatpush2.msra.mxu0 0.0
  %2006 = vmatprep.subr.mxu0 0.0
  %2007 = vmatpush2.msra.mxu0 0.0
  %2008 = vmatprep.subr.mxu0 0.0
  %2009 = vmatpush2.msra.mxu0 0.0
  %2010 = vmatprep.subr.mxu0 0.0
  %2011 = vmatpush2.msra.mxu0 0.0
  %2012 = vmatprep.subr.mxu0 0.0
  %2013 = vmatpush2.msra.mxu0 0.0
  %2014 = vmatprep.subr.mxu0 0.0
  %2015 = vmatpush2.msra.mxu0 0.0
  %2016 = vmatprep.subr.mxu0 0.0
  %2017 = vmatpush2.msra.mxu0 0.0
  %2018 = vmatprep.subr.mxu0 0.0
  %2019 = vmatpush2.msra.mxu0 0.0
  %2020 = vmatprep.subr.mxu0 0.0
  %2021 = vmatpush2.msra.mxu0 0.0
  %2022 = vmatprep.mubr.f32.mxu0 0.0
  %2023 = vmatmul.mubr.f32.gmra.mxu0 %v1956
  %v2024 = vpop.f32.mrf.mxu0
  %v2025 = vadd.f32 0.0, %v2024
  %v2026 = vpop.f32.mrf.mxu0
  %2027 = vdwg.mxu0
  %2029 = vrot.lane.b32.xlu0 %v1952, 64
  %v2030 = vpop.permute.xlu0 %2029
  %v2031 = vsel %vm231, %v2030, 0
  %2033 = vmatprep.subr.mxu0 0.0
  %2034 = vmatpush1.msra.mxu0 0.0
  %2035 = vmatprep.subr.mxu0 0.0
  %2036 = vmatpush1.msra.mxu0 0.0
  %2037 = vmatprep.subr.mxu0 0.0
  %2038 = vmatpush1.msra.mxu0 0.0
  %2039 = vmatprep.subr.mxu0 0.0
  %2040 = vmatpush1.msra.mxu0 0.0
  %2041 = vmatprep.subr.mxu0 0.0
  %2042 = vmatpush1.msra.mxu0 0.0
  %2043 = vmatprep.subr.mxu0 0.0
  %2044 = vmatpush1.msra.mxu0 0.0
  %2045 = vmatprep.subr.mxu0 0.0
  %2046 = vmatpush1.msra.mxu0 0.0
  %2047 = vmatprep.subr.mxu0 0.0
  %2048 = vmatpush1.msra.mxu0 0.0
  %2049 = vmatprep.subr.mxu0 0.0
  %2050 = vmatpush1.msra.mxu0 0.0
  %2051 = vmatprep.subr.mxu0 0.0
  %2052 = vmatpush1.msra.mxu0 0.0
  %2053 = vmatprep.subr.mxu0 0.0
  %2054 = vmatpush1.msra.mxu0 0.0
  %2055 = vmatprep.subr.mxu0 0.0
  %2056 = vmatpush1.msra.mxu0 0.0
  %2057 = vmatprep.subr.mxu0 0.0
  %2058 = vmatpush1.msra.mxu0 %v333
  %2059 = vmatprep.subr.mxu0 0.0
  %2060 = vmatpush1.msra.mxu0 %v332
  %2061 = vmatprep.subr.mxu0 0.0
  %2062 = vmatpush1.msra.mxu0 %v331
  %2063 = vmatprep.subr.mxu0 0.0
  %2064 = vmatpush1.msra.mxu0 %v330
  %2065 = vmatprep.subr.mxu0 0.0
  %2066 = vmatpush2.msra.mxu0 0.0
  %2067 = vmatprep.subr.mxu0 0.0
  %2068 = vmatpush2.msra.mxu0 0.0
  %2069 = vmatprep.subr.mxu0 0.0
  %2070 = vmatpush2.msra.mxu0 0.0
  %2071 = vmatprep.subr.mxu0 0.0
  %2072 = vmatpush2.msra.mxu0 0.0
  %2073 = vmatprep.subr.mxu0 0.0
  %2074 = vmatpush2.msra.mxu0 0.0
  %2075 = vmatprep.subr.mxu0 0.0
  %2076 = vmatpush2.msra.mxu0 0.0
  %2077 = vmatprep.subr.mxu0 0.0
  %2078 = vmatpush2.msra.mxu0 0.0
  %2079 = vmatprep.subr.mxu0 0.0
  %2080 = vmatpush2.msra.mxu0 0.0
  %2081 = vmatprep.subr.mxu0 0.0
  %2082 = vmatpush2.msra.mxu0 0.0
  %2083 = vmatprep.subr.mxu0 0.0
  %2084 = vmatpush2.msra.mxu0 0.0
  %2085 = vmatprep.subr.mxu0 0.0
  %2086 = vmatpush2.msra.mxu0 0.0
  %2087 = vmatprep.subr.mxu0 0.0
  %2088 = vmatpush2.msra.mxu0 0.0
  %2089 = vmatprep.subr.mxu0 0.0
  %2090 = vmatpush2.msra.mxu0 0.0
  %2091 = vmatprep.subr.mxu0 0.0
  %2092 = vmatpush2.msra.mxu0 0.0
  %2093 = vmatprep.subr.mxu0 0.0
  %2094 = vmatpush2.msra.mxu0 0.0
  %2095 = vmatprep.subr.mxu0 0.0
  %2096 = vmatpush2.msra.mxu0 0.0
  %2097 = vmatprep.mubr.f32.mxu0 0.0
  %2098 = vmatmul.mubr.f32.gmra.mxu0 %v2031
  %v2099 = vpop.f32.mrf.mxu0
  %v2100 = vadd.f32 %v2025, %v2099
  %v2101 = vpop.f32.mrf.mxu0
  %2102 = vdwg.mxu0
  %v2103 = vadd.f32 %v2100, %v58
  %v2104 = vxor.u32 %v2103, 2147483648
  %v2105 = vmul.f32 %v2104, 1.442695
  %v2106 = vpow.pop %v2105
  %v2107 = vadd.f32 %v2106, 1.0
  %v2108 = vrcp.pop %v2107
  %v2109 = vmul.f32 1.0, %v2108
  %v2110 = vtanh.pop %v2103
  %v2111 = vmul.f32 %v2109, %v1851
  %2113 = vrot.lane.b32.xlu0 %v2110, 32
  %v2114 = vpop.permute.xlu0 %2113
  %v2116 = vmul.f32 %v2109, %v2114
  %2118 = vrot.lane.b32.xlu0 %v2116, 32
  %v2119 = vpop.permute.xlu0 %2118
  %v2121 = vadd.f32 %v2111, %v2119
  %v2122 = vtanh.pop %v2121
  %2124 = vrot.lane.b32.xlu0 %v2122, 32
  %v2125 = vpop.permute.xlu0 %2124
  %v2127 = vmul.f32 %v2109, %v2125
  %2128 = vmatprep.subr.mxu0 0.0
  %2129 = vmatpush1.msra.mxu0 0.0
  %2130 = vmatprep.subr.mxu0 0.0
  %2131 = vmatpush1.msra.mxu0 0.0
  %2132 = vmatprep.subr.mxu0 0.0
  %2133 = vmatpush1.msra.mxu0 0.0
  %2134 = vmatprep.subr.mxu0 0.0
  %2135 = vmatpush1.msra.mxu0 0.0
  %2136 = vmatprep.subr.mxu0 0.0
  %2137 = vmatpush1.msra.mxu0 0.0
  %2138 = vmatprep.subr.mxu0 0.0
  %2139 = vmatpush1.msra.mxu0 0.0
  %2140 = vmatprep.subr.mxu0 0.0
  %2141 = vmatpush1.msra.mxu0 0.0
  %2142 = vmatprep.subr.mxu0 0.0
  %2143 = vmatpush1.msra.mxu0 0.0
  %2144 = vmatprep.subr.mxu0 0.0
  %2145 = vmatpush1.msra.mxu0 0.0
  %2146 = vmatprep.subr.mxu0 0.0
  %2147 = vmatpush1.msra.mxu0 0.0
  %2148 = vmatprep.subr.mxu0 0.0
  %2149 = vmatpush1.msra.mxu0 0.0
  %2150 = vmatprep.subr.mxu0 0.0
  %2151 = vmatpush1.msra.mxu0 0.0
  %2152 = vmatprep.subr.mxu0 0.0
  %2153 = vmatpush1.msra.mxu0 %v230
  %2154 = vmatprep.subr.mxu0 0.0
  %2155 = vmatpush1.msra.mxu0 %v229
  %2156 = vmatprep.subr.mxu0 0.0
  %2157 = vmatpush1.msra.mxu0 %v228
  %2158 = vmatprep.subr.mxu0 0.0
  %2159 = vmatpush1.msra.mxu0 %v227
  %2160 = vmatprep.subr.mxu0 0.0
  %2161 = vmatpush2.msra.mxu0 0.0
  %2162 = vmatprep.subr.mxu0 0.0
  %2163 = vmatpush2.msra.mxu0 0.0
  %2164 = vmatprep.subr.mxu0 0.0
  %2165 = vmatpush2.msra.mxu0 0.0
  %2166 = vmatprep.subr.mxu0 0.0
  %2167 = vmatpush2.msra.mxu0 0.0
  %2168 = vmatprep.subr.mxu0 0.0
  %2169 = vmatpush2.msra.mxu0 0.0
  %2170 = vmatprep.subr.mxu0 0.0
  %2171 = vmatpush2.msra.mxu0 0.0
  %2172 = vmatprep.subr.mxu0 0.0
  %2173 = vmatpush2.msra.mxu0 0.0
  %2174 = vmatprep.subr.mxu0 0.0
  %2175 = vmatpush2.msra.mxu0 0.0
  %2176 = vmatprep.subr.mxu0 0.0
  %2177 = vmatpush2.msra.mxu0 0.0
  %2178 = vmatprep.subr.mxu0 0.0
  %2179 = vmatpush2.msra.mxu0 0.0
  %2180 = vmatprep.subr.mxu0 0.0
  %2181 = vmatpush2.msra.mxu0 0.0
  %2182 = vmatprep.subr.mxu0 0.0
  %2183 = vmatpush2.msra.mxu0 0.0
  %2184 = vmatprep.subr.mxu0 0.0
  %2185 = vmatpush2.msra.mxu0 0.0
  %2186 = vmatprep.subr.mxu0 0.0
  %2187 = vmatpush2.msra.mxu0 0.0
  %2188 = vmatprep.subr.mxu0 0.0
  %2189 = vmatpush2.msra.mxu0 0.0
  %2190 = vmatprep.subr.mxu0 0.0
  %2191 = vmatpush2.msra.mxu0 0.0
  %2192 = vmatprep.mubr.f32.mxu0 0.0
  %2193 = vmatmul.mubr.f32.gmra.mxu0 %v2031
  %v2194 = vpop.f32.mrf.mxu0
  %v2195 = vadd.f32 0.0, %v2194
  %v2196 = vpop.f32.mrf.mxu0
  %2197 = vdwg.mxu0
  %v2198 = vadd.f32 %v224, %v2195
  %v2199 = vxor.u32 %v2198, 2147483648
  %v2200 = vmul.f32 %v2199, 1.442695
  %v2201 = vpow.pop %v2200
  %v2202 = vadd.f32 %v2201, 1.0
  %v2203 = vrcp.pop %v2202
  %v2204 = vmul.f32 1.0, %v2203
  %v2205 = vtanh.pop %v2198
  %v2206 = vmul.f32 %v2204, %v1946
  %2208 = vrot.lane.b32.xlu0 %v2205, 32
  %v2209 = vpop.permute.xlu0 %2208
  %v2211 = vmul.f32 %v2204, %v2209
  %2213 = vrot.lane.b32.xlu0 %v2211, 32
  %v2214 = vpop.permute.xlu0 %2213
  %v2216 = vadd.f32 %v2206, %v2214
  %v2217 = vtanh.pop %v2216
  %2219 = vrot.lane.b32.xlu0 %v2217, 32
  %v2220 = vpop.permute.xlu0 %2219
  %v2222 = vmul.f32 %v2204, %v2220
  %2224 = vrot.lane.b32.xlu0 %v2127, 64
  %v2225 = vpop.permute.xlu0 %2224
  %v2226 = vsel %vm231, %v2225, 0
  %2228 = vmatprep.subr.mxu0 0.0
  %2229 = vmatpush1.msra.mxu0 0.0
  %2230 = vmatprep.subr.mxu0 0.0
  %2231 = vmatpush1.msra.mxu0 0.0
  %2232 = vmatprep.subr.mxu0 0.0
  %2233 = vmatpush1.msra.mxu0 0.0
  %2234 = vmatprep.subr.mxu0 0.0
  %2235 = vmatpush1.msra.mxu0 0.0
  %2236 = vmatprep.subr.mxu0 0.0
  %2237 = vmatpush1.msra.mxu0 0.0
  %2238 = vmatprep.subr.mxu0 0.0
  %2239 = vmatpush1.msra.mxu0 0.0
  %2240 = vmatprep.subr.mxu0 0.0
  %2241 = vmatpush1.msra.mxu0 0.0
  %2242 = vmatprep.subr.mxu0 0.0
  %2243 = vmatpush1.msra.mxu0 0.0
  %2244 = vmatprep.subr.mxu0 0.0
  %2245 = vmatpush1.msra.mxu0 0.0
  %2246 = vmatprep.subr.mxu0 0.0
  %2247 = vmatpush1.msra.mxu0 0.0
  %2248 = vmatprep.subr.mxu0 0.0
  %2249 = vmatpush1.msra.mxu0 0.0
  %2250 = vmatprep.subr.mxu0 0.0
  %2251 = vmatpush1.msra.mxu0 0.0
  %2252 = vmatprep.subr.mxu0 0.0
  %2253 = vmatpush1.msra.mxu0 %v337
  %2254 = vmatprep.subr.mxu0 0.0
  %2255 = vmatpush1.msra.mxu0 %v336
  %2256 = vmatprep.subr.mxu0 0.0
  %2257 = vmatpush1.msra.mxu0 %v335
  %2258 = vmatprep.subr.mxu0 0.0
  %2259 = vmatpush1.msra.mxu0 %v334
  %2260 = vmatprep.subr.mxu0 0.0
  %2261 = vmatpush2.msra.mxu0 0.0
  %2262 = vmatprep.subr.mxu0 0.0
  %2263 = vmatpush2.msra.mxu0 0.0
  %2264 = vmatprep.subr.mxu0 0.0
  %2265 = vmatpush2.msra.mxu0 0.0
  %2266 = vmatprep.subr.mxu0 0.0
  %2267 = vmatpush2.msra.mxu0 0.0
  %2268 = vmatprep.subr.mxu0 0.0
  %2269 = vmatpush2.msra.mxu0 0.0
  %2270 = vmatprep.subr.mxu0 0.0
  %2271 = vmatpush2.msra.mxu0 0.0
  %2272 = vmatprep.subr.mxu0 0.0
  %2273 = vmatpush2.msra.mxu0 0.0
  %2274 = vmatprep.subr.mxu0 0.0
  %2275 = vmatpush2.msra.mxu0 0.0
  %2276 = vmatprep.subr.mxu0 0.0
  %2277 = vmatpush2.msra.mxu0 0.0
  %2278 = vmatprep.subr.mxu0 0.0
  %2279 = vmatpush2.msra.mxu0 0.0
  %2280 = vmatprep.subr.mxu0 0.0
  %2281 = vmatpush2.msra.mxu0 0.0
  %2282 = vmatprep.subr.mxu0 0.0
  %2283 = vmatpush2.msra.mxu0 0.0
  %2284 = vmatprep.subr.mxu0 0.0
  %2285 = vmatpush2.msra.mxu0 0.0
  %2286 = vmatprep.subr.mxu0 0.0
  %2287 = vmatpush2.msra.mxu0 0.0
  %2288 = vmatprep.subr.mxu0 0.0
  %2289 = vmatpush2.msra.mxu0 0.0
  %2290 = vmatprep.subr.mxu0 0.0
  %2291 = vmatpush2.msra.mxu0 0.0
  %2292 = vmatprep.mubr.f32.mxu0 0.0
  %2293 = vmatmul.mubr.f32.gmra.mxu0 %v2226
  %v2294 = vpop.f32.mrf.mxu0
  %v2295 = vadd.f32 0.0, %v2294
  %v2296 = vpop.f32.mrf.mxu0
  %2297 = vdwg.mxu0
  %2299 = vrot.lane.b32.xlu0 %v2222, 64
  %v2300 = vpop.permute.xlu0 %2299
  %v2301 = vsel %vm231, %v2300, 0
  %2303 = vmatprep.subr.mxu0 0.0
  %2304 = vmatpush1.msra.mxu0 0.0
  %2305 = vmatprep.subr.mxu0 0.0
  %2306 = vmatpush1.msra.mxu0 0.0
  %2307 = vmatprep.subr.mxu0 0.0
  %2308 = vmatpush1.msra.mxu0 0.0
  %2309 = vmatprep.subr.mxu0 0.0
  %2310 = vmatpush1.msra.mxu0 0.0
  %2311 = vmatprep.subr.mxu0 0.0
  %2312 = vmatpush1.msra.mxu0 0.0
  %2313 = vmatprep.subr.mxu0 0.0
  %2314 = vmatpush1.msra.mxu0 0.0
  %2315 = vmatprep.subr.mxu0 0.0
  %2316 = vmatpush1.msra.mxu0 0.0
  %2317 = vmatprep.subr.mxu0 0.0
  %2318 = vmatpush1.msra.mxu0 0.0
  %2319 = vmatprep.subr.mxu0 0.0
  %2320 = vmatpush1.msra.mxu0 0.0
  %2321 = vmatprep.subr.mxu0 0.0
  %2322 = vmatpush1.msra.mxu0 0.0
  %2323 = vmatprep.subr.mxu0 0.0
  %2324 = vmatpush1.msra.mxu0 0.0
  %2325 = vmatprep.subr.mxu0 0.0
  %2326 = vmatpush1.msra.mxu0 0.0
  %2327 = vmatprep.subr.mxu0 0.0
  %2328 = vmatpush1.msra.mxu0 %v333
  %2329 = vmatprep.subr.mxu0 0.0
  %2330 = vmatpush1.msra.mxu0 %v332
  %2331 = vmatprep.subr.mxu0 0.0
  %2332 = vmatpush1.msra.mxu0 %v331
  %2333 = vmatprep.subr.mxu0 0.0
  %2334 = vmatpush1.msra.mxu0 %v330
  %2335 = vmatprep.subr.mxu0 0.0
  %2336 = vmatpush2.msra.mxu0 0.0
  %2337 = vmatprep.subr.mxu0 0.0
  %2338 = vmatpush2.msra.mxu0 0.0
  %2339 = vmatprep.subr.mxu0 0.0
  %2340 = vmatpush2.msra.mxu0 0.0
  %2341 = vmatprep.subr.mxu0 0.0
  %2342 = vmatpush2.msra.mxu0 0.0
  %2343 = vmatprep.subr.mxu0 0.0
  %2344 = vmatpush2.msra.mxu0 0.0
  %2345 = vmatprep.subr.mxu0 0.0
  %2346 = vmatpush2.msra.mxu0 0.0
  %2347 = vmatprep.subr.mxu0 0.0
  %2348 = vmatpush2.msra.mxu0 0.0
  %2349 = vmatprep.subr.mxu0 0.0
  %2350 = vmatpush2.msra.mxu0 0.0
  %2351 = vmatprep.subr.mxu0 0.0
  %2352 = vmatpush2.msra.mxu0 0.0
  %2353 = vmatprep.subr.mxu0 0.0
  %2354 = vmatpush2.msra.mxu0 0.0
  %2355 = vmatprep.subr.mxu0 0.0
  %2356 = vmatpush2.msra.mxu0 0.0
  %2357 = vmatprep.subr.mxu0 0.0
  %2358 = vmatpush2.msra.mxu0 0.0
  %2359 = vmatprep.subr.mxu0 0.0
  %2360 = vmatpush2.msra.mxu0 0.0
  %2361 = vmatprep.subr.mxu0 0.0
  %2362 = vmatpush2.msra.mxu0 0.0
  %2363 = vmatprep.subr.mxu0 0.0
  %2364 = vmatpush2.msra.mxu0 0.0
  %2365 = vmatprep.subr.mxu0 0.0
  %2366 = vmatpush2.msra.mxu0 0.0
  %2367 = vmatprep.mubr.f32.mxu0 0.0
  %2368 = vmatmul.mubr.f32.gmra.mxu0 %v2301
  %v2369 = vpop.f32.mrf.mxu0
  %v2370 = vadd.f32 %v2295, %v2369
  %v2371 = vpop.f32.mrf.mxu0
  %2372 = vdwg.mxu0
  %v2373 = vadd.f32 %v2370, %v58
  %v2374 = vxor.u32 %v2373, 2147483648
  %v2375 = vmul.f32 %v2374, 1.442695
  %v2376 = vpow.pop %v2375
  %v2377 = vadd.f32 %v2376, 1.0
  %v2378 = vrcp.pop %v2377
  %v2379 = vmul.f32 1.0, %v2378
  %v2380 = vtanh.pop %v2373
  %v2381 = vmul.f32 %v2379, %v2121
  %2383 = vrot.lane.b32.xlu0 %v2380, 32
  %v2384 = vpop.permute.xlu0 %2383
  %v2386 = vmul.f32 %v2379, %v2384
  %2388 = vrot.lane.b32.xlu0 %v2386, 32
  %v2389 = vpop.permute.xlu0 %2388
  %v2391 = vadd.f32 %v2381, %v2389
  %v2392 = vtanh.pop %v2391
  %2394 = vrot.lane.b32.xlu0 %v2392, 32
  %v2395 = vpop.permute.xlu0 %2394
  %v2397 = vmul.f32 %v2379, %v2395
  %2398 = vst.msk [vmem:[%s16] sm:$0xff] %vm97, 0.0
  %v2399 = vld [vmem:[%s1] sm:$0xff]
  %v2400 = vld [vmem:[%s8] sm:$0xff]
  %v2401 = vld [vmem:[%s9] sm:$0xff]
  %v2402 = vld [vmem:[%s9 + $0x8] sm:$0xff]
  %v2403 = vld [vmem:[%s9 + $0x10] sm:$0xff]
  %v2404 = vld [vmem:[%s9 + $0x18] sm:$0xff]
  %2405 = vmatprep.subr.mxu0 0.0
  %2406 = vmatpush1.msra.mxu0 0.0
  %2407 = vmatprep.subr.mxu0 0.0
  %2408 = vmatpush1.msra.mxu0 0.0
  %2409 = vmatprep.subr.mxu0 0.0
  %2410 = vmatpush1.msra.mxu0 0.0
  %2411 = vmatprep.subr.mxu0 0.0
  %2412 = vmatpush1.msra.mxu0 0.0
  %2413 = vmatprep.subr.mxu0 0.0
  %2414 = vmatpush1.msra.mxu0 0.0
  %2415 = vmatprep.subr.mxu0 0.0
  %2416 = vmatpush1.msra.mxu0 0.0
  %2417 = vmatprep.subr.mxu0 0.0
  %2418 = vmatpush1.msra.mxu0 0.0
  %2419 = vmatprep.subr.mxu0 0.0
  %2420 = vmatpush1.msra.mxu0 0.0
  %2421 = vmatprep.subr.mxu0 0.0
  %2422 = vmatpush1.msra.mxu0 0.0
  %2423 = vmatprep.subr.mxu0 0.0
  %2424 = vmatpush1.msra.mxu0 0.0
  %2425 = vmatprep.subr.mxu0 0.0
  %2426 = vmatpush1.msra.mxu0 0.0
  %2427 = vmatprep.subr.mxu0 0.0
  %2428 = vmatpush1.msra.mxu0 0.0
  %2429 = vmatprep.subr.mxu0 0.0
  %2430 = vmatpush1.msra.mxu0 %v2404
  %2431 = vmatprep.subr.mxu0 0.0
  %2432 = vmatpush1.msra.mxu0 %v2403
  %2433 = vmatprep.subr.mxu0 0.0
  %2434 = vmatpush1.msra.mxu0 %v2402
  %2435 = vmatprep.subr.mxu0 0.0
  %2436 = vmatpush1.msra.mxu0 %v2401
  %2437 = vmatprep.subr.mxu0 0.0
  %2438 = vmatpush2.msra.mxu0 0.0
  %2439 = vmatprep.subr.mxu0 0.0
  %2440 = vmatpush2.msra.mxu0 0.0
  %2441 = vmatprep.subr.mxu0 0.0
  %2442 = vmatpush2.msra.mxu0 0.0
  %2443 = vmatprep.subr.mxu0 0.0
  %2444 = vmatpush2.msra.mxu0 0.0
  %2445 = vmatprep.subr.mxu0 0.0
  %2446 = vmatpush2.msra.mxu0 0.0
  %2447 = vmatprep.subr.mxu0 0.0
  %2448 = vmatpush2.msra.mxu0 0.0
  %2449 = vmatprep.subr.mxu0 0.0
  %2450 = vmatpush2.msra.mxu0 0.0
  %2451 = vmatprep.subr.mxu0 0.0
  %2452 = vmatpush2.msra.mxu0 0.0
  %2453 = vmatprep.subr.mxu0 0.0
  %2454 = vmatpush2.msra.mxu0 0.0
  %2455 = vmatprep.subr.mxu0 0.0
  %2456 = vmatpush2.msra.mxu0 0.0
  %2457 = vmatprep.subr.mxu0 0.0
  %2458 = vmatpush2.msra.mxu0 0.0
  %2459 = vmatprep.subr.mxu0 0.0
  %2460 = vmatpush2.msra.mxu0 0.0
  %2461 = vmatprep.subr.mxu0 0.0
  %2462 = vmatpush2.msra.mxu0 0.0
  %2463 = vmatprep.subr.mxu0 0.0
  %2464 = vmatpush2.msra.mxu0 0.0
  %2465 = vmatprep.subr.mxu0 0.0
  %2466 = vmatpush2.msra.mxu0 0.0
  %2467 = vmatprep.subr.mxu0 0.0
  %2468 = vmatpush2.msra.mxu0 0.0
  %2469 = vmatprep.mubr.f32.mxu0 0.0
  %2470 = vmatmul.mubr.f32.gmra.mxu0 %v2301
  %v2471 = vpop.f32.mrf.mxu0
  %v2472 = vadd.f32 0.0, %v2471
  %v2473 = vpop.f32.mrf.mxu0
  %2474 = vdwg.mxu0
  %v2476 = vsel %vm97, %v2399, 0
  %2478 = vmatprep.subr.mxu0 0.0
  %2479 = vmatpush1.msra.mxu0 0.0
  %2480 = vmatprep.subr.mxu0 0.0
  %2481 = vmatpush1.msra.mxu0 0.0
  %2482 = vmatprep.subr.mxu0 0.0
  %2483 = vmatpush1.msra.mxu0 0.0
  %2484 = vmatprep.subr.mxu0 0.0
  %2485 = vmatpush1.msra.mxu0 0.0
  %2486 = vmatprep.subr.mxu0 0.0
  %2487 = vmatpush1.msra.mxu0 0.0
  %2488 = vmatprep.subr.mxu0 0.0
  %2489 = vmatpush1.msra.mxu0 0.0
  %2490 = vmatprep.subr.mxu0 0.0
  %2491 = vmatpush1.msra.mxu0 0.0
  %2492 = vmatprep.subr.mxu0 0.0
  %2493 = vmatpush1.msra.mxu0 0.0
  %2494 = vmatprep.subr.mxu0 0.0
  %2495 = vmatpush1.msra.mxu0 0.0
  %2496 = vmatprep.subr.mxu0 0.0
  %2497 = vmatpush1.msra.mxu0 0.0
  %2498 = vmatprep.subr.mxu0 0.0
  %2499 = vmatpush1.msra.mxu0 0.0
  %2500 = vmatprep.subr.mxu0 0.0
  %2501 = vmatpush1.msra.mxu0 0.0
  %2502 = vmatprep.subr.mxu0 0.0
  %2503 = vmatpush1.msra.mxu0 0.0
  %2504 = vmatprep.subr.mxu0 0.0
  %2505 = vmatpush1.msra.mxu0 0.0
  %2506 = vmatprep.subr.mxu0 0.0
  %2507 = vmatpush1.msra.mxu0 0.0
  %2508 = vmatprep.subr.mxu0 0.0
  %2509 = vmatpush1.msra.mxu0 %v2400
  %2510 = vmatprep.subr.mxu0 0.0
  %2511 = vmatpush2.msra.mxu0 0.0
  %2512 = vmatprep.subr.mxu0 0.0
  %2513 = vmatpush2.msra.mxu0 0.0
  %2514 = vmatprep.subr.mxu0 0.0
  %2515 = vmatpush2.msra.mxu0 0.0
  %2516 = vmatprep.subr.mxu0 0.0
  %2517 = vmatpush2.msra.mxu0 0.0
  %2518 = vmatprep.subr.mxu0 0.0
  %2519 = vmatpush2.msra.mxu0 0.0
  %2520 = vmatprep.subr.mxu0 0.0
  %2521 = vmatpush2.msra.mxu0 0.0
  %2522 = vmatprep.subr.mxu0 0.0
  %2523 = vmatpush2.msra.mxu0 0.0
  %2524 = vmatprep.subr.mxu0 0.0
  %2525 = vmatpush2.msra.mxu0 0.0
  %2526 = vmatprep.subr.mxu0 0.0
  %2527 = vmatpush2.msra.mxu0 0.0
  %2528 = vmatprep.subr.mxu0 0.0
  %2529 = vmatpush2.msra.mxu0 0.0
  %2530 = vmatprep.subr.mxu0 0.0
  %2531 = vmatpush2.msra.mxu0 0.0
  %2532 = vmatprep.subr.mxu0 0.0
  %2533 = vmatpush2.msra.mxu0 0.0
  %2534 = vmatprep.subr.mxu0 0.0
  %2535 = vmatpush2.msra.mxu0 0.0
  %2536 = vmatprep.subr.mxu0 0.0
  %2537 = vmatpush2.msra.mxu0 0.0
  %2538 = vmatprep.subr.mxu0 0.0
  %2539 = vmatpush2.msra.mxu0 0.0
  %2540 = vmatprep.subr.mxu0 0.0
  %2541 = vmatpush2.msra.mxu0 0.0
  %2542 = vmatprep.mubr.f32.mxu0 0.0
  %2543 = vmatmul.mubr.f32.gmra.mxu0 %v2476
  %v2544 = vpop.f32.mrf.mxu0
  %v2545 = vadd.f32 %v2472, %v2544
  %v2546 = vpop.f32.mrf.mxu0
  %2547 = vdwg.mxu0
  %v2548 = vadd.f32 %v2545, %v65
  %v2549 = vxor.u32 %v2548, 2147483648
  %v2550 = vmul.f32 %v2549, 1.442695
  %v2551 = vpow.pop %v2550
  %v2552 = vadd.f32 %v2551, 1.0
  %v2553 = vrcp.pop %v2552
  %v2554 = vmul.f32 1.0, %v2553
  %v2555 = vtanh.pop %v2548
  %v2556 = vmul.f32 %v2554, %v2216
  %2558 = vrot.lane.b32.xlu0 %v2555, 32
  %v2559 = vpop.permute.xlu0 %2558
  %v2561 = vmul.f32 %v2554, %v2559
  %2563 = vrot.lane.b32.xlu0 %v2561, 32
  %v2564 = vpop.permute.xlu0 %2563
  %v2566 = vadd.f32 %v2556, %v2564
  %v2567 = vtanh.pop %v2566
  %2569 = vrot.lane.b32.xlu0 %v2567, 32
  %v2570 = vpop.permute.xlu0 %2569
  %v2572 = vmul.f32 %v2554, %v2570
  %v2573 = vld [vmem:[%s11] sm:$0xff]
  %v2574 = vld [vmem:[%s11 + $0x8] sm:$0xff]
  %v2575 = vld [vmem:[%s11 + $0x10] sm:$0xff]
  %v2576 = vld [vmem:[%s11 + $0x18] sm:$0xff]
  %v2577 = vld [vmem:[%s12] sm:$0xff]
  %v2578 = vld [vmem:[%s12 + $0x8] sm:$0xff]
  %v2579 = vld [vmem:[%s12 + $0x10] sm:$0xff]
  %v2580 = vld [vmem:[%s12 + $0x18] sm:$0xff]
  %2582 = vrot.lane.b32.xlu0 %v2397, 64
  %v2583 = vpop.permute.xlu0 %2582
  %v2584 = vsel %vm231, %v2583, 0
  %2586 = vmatprep.subr.mxu0 0.0
  %2587 = vmatpush1.msra.mxu0 0.0
  %2588 = vmatprep.subr.mxu0 0.0
  %2589 = vmatpush1.msra.mxu0 0.0
  %2590 = vmatprep.subr.mxu0 0.0
  %2591 = vmatpush1.msra.mxu0 0.0
  %2592 = vmatprep.subr.mxu0 0.0
  %2593 = vmatpush1.msra.mxu0 0.0
  %2594 = vmatprep.subr.mxu0 0.0
  %2595 = vmatpush1.msra.mxu0 0.0
  %2596 = vmatprep.subr.mxu0 0.0
  %2597 = vmatpush1.msra.mxu0 0.0
  %2598 = vmatprep.subr.mxu0 0.0
  %2599 = vmatpush1.msra.mxu0 0.0
  %2600 = vmatprep.subr.mxu0 0.0
  %2601 = vmatpush1.msra.mxu0 0.0
  %2602 = vmatprep.subr.mxu0 0.0
  %2603 = vmatpush1.msra.mxu0 0.0
  %2604 = vmatprep.subr.mxu0 0.0
  %2605 = vmatpush1.msra.mxu0 0.0
  %2606 = vmatprep.subr.mxu0 0.0
  %2607 = vmatpush1.msra.mxu0 0.0
  %2608 = vmatprep.subr.mxu0 0.0
  %2609 = vmatpush1.msra.mxu0 0.0
  %2610 = vmatprep.subr.mxu0 0.0
  %2611 = vmatpush1.msra.mxu0 %v2580
  %2612 = vmatprep.subr.mxu0 0.0
  %2613 = vmatpush1.msra.mxu0 %v2579
  %2614 = vmatprep.subr.mxu0 0.0
  %2615 = vmatpush1.msra.mxu0 %v2578
  %2616 = vmatprep.subr.mxu0 0.0
  %2617 = vmatpush1.msra.mxu0 %v2577
  %2618 = vmatprep.subr.mxu0 0.0
  %2619 = vmatpush2.msra.mxu0 0.0
  %2620 = vmatprep.subr.mxu0 0.0
  %2621 = vmatpush2.msra.mxu0 0.0
  %2622 = vmatprep.subr.mxu0 0.0
  %2623 = vmatpush2.msra.mxu0 0.0
  %2624 = vmatprep.subr.mxu0 0.0
  %2625 = vmatpush2.msra.mxu0 0.0
  %2626 = vmatprep.subr.mxu0 0.0
  %2627 = vmatpush2.msra.mxu0 0.0
  %2628 = vmatprep.subr.mxu0 0.0
  %2629 = vmatpush2.msra.mxu0 0.0
  %2630 = vmatprep.subr.mxu0 0.0
  %2631 = vmatpush2.msra.mxu0 0.0
  %2632 = vmatprep.subr.mxu0 0.0
  %2633 = vmatpush2.msra.mxu0 0.0
  %2634 = vmatprep.subr.mxu0 0.0
  %2635 = vmatpush2.msra.mxu0 0.0
  %2636 = vmatprep.subr.mxu0 0.0
  %2637 = vmatpush2.msra.mxu0 0.0
  %2638 = vmatprep.subr.mxu0 0.0
  %2639 = vmatpush2.msra.mxu0 0.0
  %2640 = vmatprep.subr.mxu0 0.0
  %2641 = vmatpush2.msra.mxu0 0.0
  %2642 = vmatprep.subr.mxu0 0.0
  %2643 = vmatpush2.msra.mxu0 0.0
  %2644 = vmatprep.subr.mxu0 0.0
  %2645 = vmatpush2.msra.mxu0 0.0
  %2646 = vmatprep.subr.mxu0 0.0
  %2647 = vmatpush2.msra.mxu0 0.0
  %2648 = vmatprep.subr.mxu0 0.0
  %2649 = vmatpush2.msra.mxu0 0.0
  %2650 = vmatprep.mubr.f32.mxu0 0.0
  %2651 = vmatmul.mubr.f32.gmra.mxu0 %v2584
  %v2652 = vpop.f32.mrf.mxu0
  %v2653 = vadd.f32 0.0, %v2652
  %v2654 = vpop.f32.mrf.mxu0
  %2655 = vdwg.mxu0
  %2657 = vrot.lane.b32.xlu0 %v2572, 64
  %v2658 = vpop.permute.xlu0 %2657
  %v2659 = vsel %vm231, %v2658, 0
  %2661 = vmatprep.subr.mxu0 0.0
  %2662 = vmatpush1.msra.mxu0 0.0
  %2663 = vmatprep.subr.mxu0 0.0
  %2664 = vmatpush1.msra.mxu0 0.0
  %2665 = vmatprep.subr.mxu0 0.0
  %2666 = vmatpush1.msra.mxu0 0.0
  %2667 = vmatprep.subr.mxu0 0.0
  %2668 = vmatpush1.msra.mxu0 0.0
  %2669 = vmatprep.subr.mxu0 0.0
  %2670 = vmatpush1.msra.mxu0 0.0
  %2671 = vmatprep.subr.mxu0 0.0
  %2672 = vmatpush1.msra.mxu0 0.0
  %2673 = vmatprep.subr.mxu0 0.0
  %2674 = vmatpush1.msra.mxu0 0.0
  %2675 = vmatprep.subr.mxu0 0.0
  %2676 = vmatpush1.msra.mxu0 0.0
  %2677 = vmatprep.subr.mxu0 0.0
  %2678 = vmatpush1.msra.mxu0 0.0
  %2679 = vmatprep.subr.mxu0 0.0
  %2680 = vmatpush1.msra.mxu0 0.0
  %2681 = vmatprep.subr.mxu0 0.0
  %2682 = vmatpush1.msra.mxu0 0.0
  %2683 = vmatprep.subr.mxu0 0.0
  %2684 = vmatpush1.msra.mxu0 0.0
  %2685 = vmatprep.subr.mxu0 0.0
  %2686 = vmatpush1.msra.mxu0 %v2576
  %2687 = vmatprep.subr.mxu0 0.0
  %2688 = vmatpush1.msra.mxu0 %v2575
  %2689 = vmatprep.subr.mxu0 0.0
  %2690 = vmatpush1.msra.mxu0 %v2574
  %2691 = vmatprep.subr.mxu0 0.0
  %2692 = vmatpush1.msra.mxu0 %v2573
  %2693 = vmatprep.subr.mxu0 0.0
  %2694 = vmatpush2.msra.mxu0 0.0
  %2695 = vmatprep.subr.mxu0 0.0
  %2696 = vmatpush2.msra.mxu0 0.0
  %2697 = vmatprep.subr.mxu0 0.0
  %2698 = vmatpush2.msra.mxu0 0.0
  %2699 = vmatprep.subr.mxu0 0.0
  %2700 = vmatpush2.msra.mxu0 0.0
  %2701 = vmatprep.subr.mxu0 0.0
  %2702 = vmatpush2.msra.mxu0 0.0
  %2703 = vmatprep.subr.mxu0 0.0
  %2704 = vmatpush2.msra.mxu0 0.0
  %2705 = vmatprep.subr.mxu0 0.0
  %2706 = vmatpush2.msra.mxu0 0.0
  %2707 = vmatprep.subr.mxu0 0.0
  %2708 = vmatpush2.msra.mxu0 0.0
  %2709 = vmatprep.subr.mxu0 0.0
  %2710 = vmatpush2.msra.mxu0 0.0
  %2711 = vmatprep.subr.mxu0 0.0
  %2712 = vmatpush2.msra.mxu0 0.0
  %2713 = vmatprep.subr.mxu0 0.0
  %2714 = vmatpush2.msra.mxu0 0.0
  %2715 = vmatprep.subr.mxu0 0.0
  %2716 = vmatpush2.msra.mxu0 0.0
  %2717 = vmatprep.subr.mxu0 0.0
  %2718 = vmatpush2.msra.mxu0 0.0
  %2719 = vmatprep.subr.mxu0 0.0
  %2720 = vmatpush2.msra.mxu0 0.0
  %2721 = vmatprep.subr.mxu0 0.0
  %2722 = vmatpush2.msra.mxu0 0.0
  %2723 = vmatprep.subr.mxu0 0.0
  %2724 = vmatpush2.msra.mxu0 0.0
  %2725 = vmatprep.mubr.f32.mxu0 0.0
  %2726 = vmatmul.mubr.f32.gmra.mxu0 %v2659
  %v2727 = vpop.f32.mrf.mxu0
  %v2728 = vadd.f32 %v2653, %v2727
  %v2729 = vpop.f32.mrf.mxu0
  %2730 = vdwg.mxu0
  %v2731 = vadd.f32 %v2728, %v72
  %v2732 = vxor.u32 %v2731, 2147483648
  %v2733 = vmul.f32 %v2732, 1.442695
  %v2734 = vpow.pop %v2733
  %v2735 = vadd.f32 %v2734, 1.0
  %v2736 = vrcp.pop %v2735
  %v2737 = vmul.f32 1.0, %v2736
  %v2738 = vtanh.pop %v2731
  %v2739 = vmul.f32 %v2737, %v2391
  %2741 = vrot.lane.b32.xlu0 %v2738, 32
  %v2742 = vpop.permute.xlu0 %2741
  %v2744 = vmul.f32 %v2737, %v2742
  %2746 = vrot.lane.b32.xlu0 %v2744, 32
  %v2747 = vpop.permute.xlu0 %2746
  %v2749 = vadd.f32 %v2739, %v2747
  %v2750 = vtanh.pop %v2749
  %2752 = vrot.lane.b32.xlu0 %v2750, 32
  %v2753 = vpop.permute.xlu0 %2752
  %v2755 = vmul.f32 %v2737, %v2753
  %v2756 = vld [vmem:[%s14] sm:$0xff]
  %v2757 = vld [vmem:[%s14 + $0x8] sm:$0xff]
  %v2758 = vld [vmem:[%s14 + $0x10] sm:$0xff]
  %v2759 = vld [vmem:[%s14 + $0x18] sm:$0xff]
  %2761 = vrot.lane.b32.xlu0 %v2755, 64
  %v2762 = vpop.permute.xlu0 %2761
  %v2763 = vsel %vm231, %v2762, 0
  %2765 = vmatprep.subr.mxu0 0.0
  %2766 = vmatpush1.msra.mxu0 0.0
  %2767 = vmatprep.subr.mxu0 0.0
  %2768 = vmatpush1.msra.mxu0 0.0
  %2769 = vmatprep.subr.mxu0 0.0
  %2770 = vmatpush1.msra.mxu0 0.0
  %2771 = vmatprep.subr.mxu0 0.0
  %2772 = vmatpush1.msra.mxu0 0.0
  %2773 = vmatprep.subr.mxu0 0.0
  %2774 = vmatpush1.msra.mxu0 0.0
  %2775 = vmatprep.subr.mxu0 0.0
  %2776 = vmatpush1.msra.mxu0 0.0
  %2777 = vmatprep.subr.mxu0 0.0
  %2778 = vmatpush1.msra.mxu0 0.0
  %2779 = vmatprep.subr.mxu0 0.0
  %2780 = vmatpush1.msra.mxu0 0.0
  %2781 = vmatprep.subr.mxu0 0.0
  %2782 = vmatpush1.msra.mxu0 0.0
  %2783 = vmatprep.subr.mxu0 0.0
  %2784 = vmatpush1.msra.mxu0 0.0
  %2785 = vmatprep.subr.mxu0 0.0
  %2786 = vmatpush1.msra.mxu0 0.0
  %2787 = vmatprep.subr.mxu0 0.0
  %2788 = vmatpush1.msra.mxu0 0.0
  %2789 = vmatprep.subr.mxu0 0.0
  %2790 = vmatpush1.msra.mxu0 %v2759
  %2791 = vmatprep.subr.mxu0 0.0
  %2792 = vmatpush1.msra.mxu0 %v2758
  %2793 = vmatprep.subr.mxu0 0.0
  %2794 = vmatpush1.msra.mxu0 %v2757
  %2795 = vmatprep.subr.mxu0 0.0
  %2796 = vmatpush1.msra.mxu0 %v2756
  %2797 = vmatprep.subr.mxu0 0.0
  %2798 = vmatpush2.msra.mxu0 0.0
  %2799 = vmatprep.subr.mxu0 0.0
  %2800 = vmatpush2.msra.mxu0 0.0
  %2801 = vmatprep.subr.mxu0 0.0
  %2802 = vmatpush2.msra.mxu0 0.0
  %2803 = vmatprep.subr.mxu0 0.0
  %2804 = vmatpush2.msra.mxu0 0.0
  %2805 = vmatprep.subr.mxu0 0.0
  %2806 = vmatpush2.msra.mxu0 0.0
  %2807 = vmatprep.subr.mxu0 0.0
  %2808 = vmatpush2.msra.mxu0 0.0
  %2809 = vmatprep.subr.mxu0 0.0
  %2810 = vmatpush2.msra.mxu0 0.0
  %2811 = vmatprep.subr.mxu0 0.0
  %2812 = vmatpush2.msra.mxu0 0.0
  %2813 = vmatprep.subr.mxu0 0.0
  %2814 = vmatpush2.msra.mxu0 0.0
  %2815 = vmatprep.subr.mxu0 0.0
  %2816 = vmatpush2.msra.mxu0 0.0
  %2817 = vmatprep.subr.mxu0 0.0
  %2818 = vmatpush2.msra.mxu0 0.0
  %2819 = vmatprep.subr.mxu0 0.0
  %2820 = vmatpush2.msra.mxu0 0.0
  %2821 = vmatprep.subr.mxu0 0.0
  %2822 = vmatpush2.msra.mxu0 0.0
  %2823 = vmatprep.subr.mxu0 0.0
  %2824 = vmatpush2.msra.mxu0 0.0
  %2825 = vmatprep.subr.mxu0 0.0
  %2826 = vmatpush2.msra.mxu0 0.0
  %2827 = vmatprep.subr.mxu0 0.0
  %2828 = vmatpush2.msra.mxu0 0.0
  %2829 = vmatprep.mubr.f32.mxu0 0.0
  %2830 = vmatmul.mubr.f32.gmra.mxu0 %v2763
  %v2831 = vpop.f32.mrf.mxu0
  %v2832 = vadd.f32 %v79, %v2831
  %v2833 = vpop.f32.mrf.mxu0
  %2834 = vdwg.mxu0
  %s2835 = scalar_lea.vmem %s16, 8
  %2836 = vst.msk [vmem:[%s2835] sm:$0xff] %vm97, %v2832
  %v2837 = vld [vmem:[%s8] sm:$0xff]
  %v2838 = vld [vmem:[%s9] sm:$0xff]
  %v2839 = vld [vmem:[%s9 + $0x8] sm:$0xff]
  %v2840 = vld [vmem:[%s9 + $0x10] sm:$0xff]
  %v2841 = vld [vmem:[%s9 + $0x18] sm:$0xff]
  %2842 = vmatprep.subr.mxu0 0.0
  %2843 = vmatpush1.msra.mxu0 0.0
  %2844 = vmatprep.subr.mxu0 0.0
  %2845 = vmatpush1.msra.mxu0 0.0
  %2846 = vmatprep.subr.mxu0 0.0
  %2847 = vmatpush1.msra.mxu0 0.0
  %2848 = vmatprep.subr.mxu0 0.0
  %2849 = vmatpush1.msra.mxu0 0.0
  %2850 = vmatprep.subr.mxu0 0.0
  %2851 = vmatpush1.msra.mxu0 0.0
  %2852 = vmatprep.subr.mxu0 0.0
  %2853 = vmatpush1.msra.mxu0 0.0
  %2854 = vmatprep.subr.mxu0 0.0
  %2855 = vmatpush1.msra.mxu0 0.0
  %2856 = vmatprep.subr.mxu0 0.0
  %2857 = vmatpush1.msra.mxu0 0.0
  %2858 = vmatprep.subr.mxu0 0.0
  %2859 = vmatpush1.msra.mxu0 0.0
  %2860 = vmatprep.subr.mxu0 0.0
  %2861 = vmatpush1.msra.mxu0 0.0
  %2862 = vmatprep.subr.mxu0 0.0
  %2863 = vmatpush1.msra.mxu0 0.0
  %2864 = vmatprep.subr.mxu0 0.0
  %2865 = vmatpush1.msra.mxu0 0.0
  %2866 = vmatprep.subr.mxu0 0.0
  %2867 = vmatpush1.msra.mxu0 %v2841
  %2868 = vmatprep.subr.mxu0 0.0
  %2869 = vmatpush1.msra.mxu0 %v2840
  %2870 = vmatprep.subr.mxu0 0.0
  %2871 = vmatpush1.msra.mxu0 %v2839
  %2872 = vmatprep.subr.mxu0 0.0
  %2873 = vmatpush1.msra.mxu0 %v2838
  %2874 = vmatprep.subr.mxu0 0.0
  %2875 = vmatpush2.msra.mxu0 0.0
  %2876 = vmatprep.subr.mxu0 0.0
  %2877 = vmatpush2.msra.mxu0 0.0
  %2878 = vmatprep.subr.mxu0 0.0
  %2879 = vmatpush2.msra.mxu0 0.0
  %2880 = vmatprep.subr.mxu0 0.0
  %2881 = vmatpush2.msra.mxu0 0.0
  %2882 = vmatprep.subr.mxu0 0.0
  %2883 = vmatpush2.msra.mxu0 0.0
  %2884 = vmatprep.subr.mxu0 0.0
  %2885 = vmatpush2.msra.mxu0 0.0
  %2886 = vmatprep.subr.mxu0 0.0
  %2887 = vmatpush2.msra.mxu0 0.0
  %2888 = vmatprep.subr.mxu0 0.0
  %2889 = vmatpush2.msra.mxu0 0.0
  %2890 = vmatprep.subr.mxu0 0.0
  %2891 = vmatpush2.msra.mxu0 0.0
  %2892 = vmatprep.subr.mxu0 0.0
  %2893 = vmatpush2.msra.mxu0 0.0
  %2894 = vmatprep.subr.mxu0 0.0
  %2895 = vmatpush2.msra.mxu0 0.0
  %2896 = vmatprep.subr.mxu0 0.0
  %2897 = vmatpush2.msra.mxu0 0.0
  %2898 = vmatprep.subr.mxu0 0.0
  %2899 = vmatpush2.msra.mxu0 0.0
  %2900 = vmatprep.subr.mxu0 0.0
  %2901 = vmatpush2.msra.mxu0 0.0
  %2902 = vmatprep.subr.mxu0 0.0
  %2903 = vmatpush2.msra.mxu0 0.0
  %2904 = vmatprep.subr.mxu0 0.0
  %2905 = vmatpush2.msra.mxu0 0.0
  %2906 = vmatprep.mubr.f32.mxu0 0.0
  %2907 = vmatmul.mubr.f32.gmra.mxu0 %v2659
  %v2908 = vpop.f32.mrf.mxu0
  %v2909 = vadd.f32 0.0, %v2908
  %v2910 = vpop.f32.mrf.mxu0
  %2911 = vdwg.mxu0
  %v2913 = vsel %vm97, %v2832, 0
  %2915 = vmatprep.subr.mxu0 0.0
  %2916 = vmatpush1.msra.mxu0 0.0
  %2917 = vmatprep.subr.mxu0 0.0
  %2918 = vmatpush1.msra.mxu0 0.0
  %2919 = vmatprep.subr.mxu0 0.0
  %2920 = vmatpush1.msra.mxu0 0.0
  %2921 = vmatprep.subr.mxu0 0.0
  %2922 = vmatpush1.msra.mxu0 0.0
  %2923 = vmatprep.subr.mxu0 0.0
  %2924 = vmatpush1.msra.mxu0 0.0
  %2925 = vmatprep.subr.mxu0 0.0
  %2926 = vmatpush1.msra.mxu0 0.0
  %2927 = vmatprep.subr.mxu0 0.0
  %2928 = vmatpush1.msra.mxu0 0.0
  %2929 = vmatprep.subr.mxu0 0.0
  %2930 = vmatpush1.msra.mxu0 0.0
  %2931 = vmatprep.subr.mxu0 0.0
  %2932 = vmatpush1.msra.mxu0 0.0
  %2933 = vmatprep.subr.mxu0 0.0
  %2934 = vmatpush1.msra.mxu0 0.0
  %2935 = vmatprep.subr.mxu0 0.0
  %2936 = vmatpush1.msra.mxu0 0.0
  %2937 = vmatprep.subr.mxu0 0.0
  %2938 = vmatpush1.msra.mxu0 0.0
  %2939 = vmatprep.subr.mxu0 0.0
  %2940 = vmatpush1.msra.mxu0 0.0
  %2941 = vmatprep.subr.mxu0 0.0
  %2942 = vmatpush1.msra.mxu0 0.0
  %2943 = vmatprep.subr.mxu0 0.0
  %2944 = vmatpush1.msra.mxu0 0.0
  %2945 = vmatprep.subr.mxu0 0.0
  %2946 = vmatpush1.msra.mxu0 %v2837
  %2947 = vmatprep.subr.mxu0 0.0
  %2948 = vmatpush2.msra.mxu0 0.0
  %2949 = vmatprep.subr.mxu0 0.0
  %2950 = vmatpush2.msra.mxu0 0.0
  %2951 = vmatprep.subr.mxu0 0.0
  %2952 = vmatpush2.msra.mxu0 0.0
  %2953 = vmatprep.subr.mxu0 0.0
  %2954 = vmatpush2.msra.mxu0 0.0
  %2955 = vmatprep.subr.mxu0 0.0
  %2956 = vmatpush2.msra.mxu0 0.0
  %2957 = vmatprep.subr.mxu0 0.0
  %2958 = vmatpush2.msra.mxu0 0.0
  %2959 = vmatprep.subr.mxu0 0.0
  %2960 = vmatpush2.msra.mxu0 0.0
  %2961 = vmatprep.subr.mxu0 0.0
  %2962 = vmatpush2.msra.mxu0 0.0
  %2963 = vmatprep.subr.mxu0 0.0
  %2964 = vmatpush2.msra.mxu0 0.0
  %2965 = vmatprep.subr.mxu0 0.0
  %2966 = vmatpush2.msra.mxu0 0.0
  %2967 = vmatprep.subr.mxu0 0.0
  %2968 = vmatpush2.msra.mxu0 0.0
  %2969 = vmatprep.subr.mxu0 0.0
  %2970 = vmatpush2.msra.mxu0 0.0
  %2971 = vmatprep.subr.mxu0 0.0
  %2972 = vmatpush2.msra.mxu0 0.0
  %2973 = vmatprep.subr.mxu0 0.0
  %2974 = vmatpush2.msra.mxu0 0.0
  %2975 = vmatprep.subr.mxu0 0.0
  %2976 = vmatpush2.msra.mxu0 0.0
  %2977 = vmatprep.subr.mxu0 0.0
  %2978 = vmatpush2.msra.mxu0 0.0
  %2979 = vmatprep.mubr.f32.mxu0 0.0
  %2980 = vmatmul.mubr.f32.gmra.mxu0 %v2913
  %v2981 = vpop.f32.mrf.mxu0
  %v2982 = vadd.f32 %v2909, %v2981
  %v2983 = vpop.f32.mrf.mxu0
  %2984 = vdwg.mxu0
  %v2985 = vadd.f32 %v2982, %v65
  %v2986 = vxor.u32 %v2985, 2147483648
  %v2987 = vmul.f32 %v2986, 1.442695
  %v2988 = vpow.pop %v2987
  %v2989 = vadd.f32 %v2988, 1.0
  %v2990 = vrcp.pop %v2989
  %v2991 = vmul.f32 1.0, %v2990
  %v2992 = vtanh.pop %v2985
  %v2993 = vmul.f32 %v2991, %v2566
  %2995 = vrot.lane.b32.xlu0 %v2992, 32
  %v2996 = vpop.permute.xlu0 %2995
  %v2998 = vmul.f32 %v2991, %v2996
  %3000 = vrot.lane.b32.xlu0 %v2998, 32
  %v3001 = vpop.permute.xlu0 %3000
  %v3003 = vadd.f32 %v2993, %v3001
  %v3004 = vtanh.pop %v3003
  %3006 = vrot.lane.b32.xlu0 %v3004, 32
  %v3007 = vpop.permute.xlu0 %3006
  %v3009 = vmul.f32 %v2991, %v3007
  %v3010 = vld [vmem:[%s11] sm:$0xff]
  %v3011 = vld [vmem:[%s11 + $0x8] sm:$0xff]
  %v3012 = vld [vmem:[%s11 + $0x10] sm:$0xff]
  %v3013 = vld [vmem:[%s11 + $0x18] sm:$0xff]
  %v3014 = vld [vmem:[%s12] sm:$0xff]
  %v3015 = vld [vmem:[%s12 + $0x8] sm:$0xff]
  %v3016 = vld [vmem:[%s12 + $0x10] sm:$0xff]
  %v3017 = vld [vmem:[%s12 + $0x18] sm:$0xff]
  %3018 = vmatprep.subr.mxu0 0.0
  %3019 = vmatpush1.msra.mxu0 0.0
  %3020 = vmatprep.subr.mxu0 0.0
  %3021 = vmatpush1.msra.mxu0 0.0
  %3022 = vmatprep.subr.mxu0 0.0
  %3023 = vmatpush1.msra.mxu0 0.0
  %3024 = vmatprep.subr.mxu0 0.0
  %3025 = vmatpush1.msra.mxu0 0.0
  %3026 = vmatprep.subr.mxu0 0.0
  %3027 = vmatpush1.msra.mxu0 0.0
  %3028 = vmatprep.subr.mxu0 0.0
  %3029 = vmatpush1.msra.mxu0 0.0
  %3030 = vmatprep.subr.mxu0 0.0
  %3031 = vmatpush1.msra.mxu0 0.0
  %3032 = vmatprep.subr.mxu0 0.0
  %3033 = vmatpush1.msra.mxu0 0.0
  %3034 = vmatprep.subr.mxu0 0.0
  %3035 = vmatpush1.msra.mxu0 0.0
  %3036 = vmatprep.subr.mxu0 0.0
  %3037 = vmatpush1.msra.mxu0 0.0
  %3038 = vmatprep.subr.mxu0 0.0
  %3039 = vmatpush1.msra.mxu0 0.0
  %3040 = vmatprep.subr.mxu0 0.0
  %3041 = vmatpush1.msra.mxu0 0.0
  %3042 = vmatprep.subr.mxu0 0.0
  %3043 = vmatpush1.msra.mxu0 %v3017
  %3044 = vmatprep.subr.mxu0 0.0
  %3045 = vmatpush1.msra.mxu0 %v3016
  %3046 = vmatprep.subr.mxu0 0.0
  %3047 = vmatpush1.msra.mxu0 %v3015
  %3048 = vmatprep.subr.mxu0 0.0
  %3049 = vmatpush1.msra.mxu0 %v3014
  %3050 = vmatprep.subr.mxu0 0.0
  %3051 = vmatpush2.msra.mxu0 0.0
  %3052 = vmatprep.subr.mxu0 0.0
  %3053 = vmatpush2.msra.mxu0 0.0
  %3054 = vmatprep.subr.mxu0 0.0
  %3055 = vmatpush2.msra.mxu0 0.0
  %3056 = vmatprep.subr.mxu0 0.0
  %3057 = vmatpush2.msra.mxu0 0.0
  %3058 = vmatprep.subr.mxu0 0.0
  %3059 = vmatpush2.msra.mxu0 0.0
  %3060 = vmatprep.subr.mxu0 0.0
  %3061 = vmatpush2.msra.mxu0 0.0
  %3062 = vmatprep.subr.mxu0 0.0
  %3063 = vmatpush2.msra.mxu0 0.0
  %3064 = vmatprep.subr.mxu0 0.0
  %3065 = vmatpush2.msra.mxu0 0.0
  %3066 = vmatprep.subr.mxu0 0.0
  %3067 = vmatpush2.msra.mxu0 0.0
  %3068 = vmatprep.subr.mxu0 0.0
  %3069 = vmatpush2.msra.mxu0 0.0
  %3070 = vmatprep.subr.mxu0 0.0
  %3071 = vmatpush2.msra.mxu0 0.0
  %3072 = vmatprep.subr.mxu0 0.0
  %3073 = vmatpush2.msra.mxu0 0.0
  %3074 = vmatprep.subr.mxu0 0.0
  %3075 = vmatpush2.msra.mxu0 0.0
  %3076 = vmatprep.subr.mxu0 0.0
  %3077 = vmatpush2.msra.mxu0 0.0
  %3078 = vmatprep.subr.mxu0 0.0
  %3079 = vmatpush2.msra.mxu0 0.0
  %3080 = vmatprep.subr.mxu0 0.0
  %3081 = vmatpush2.msra.mxu0 0.0
  %3082 = vmatprep.mubr.f32.mxu0 0.0
  %3083 = vmatmul.mubr.f32.gmra.mxu0 %v2763
  %v3084 = vpop.f32.mrf.mxu0
  %v3085 = vadd.f32 0.0, %v3084
  %v3086 = vpop.f32.mrf.mxu0
  %3087 = vdwg.mxu0
  %3089 = vrot.lane.b32.xlu0 %v3009, 64
  %v3090 = vpop.permute.xlu0 %3089
  %v3091 = vsel %vm231, %v3090, 0
  %3093 = vmatprep.subr.mxu0 0.0
  %3094 = vmatpush1.msra.mxu0 0.0
  %3095 = vmatprep.subr.mxu0 0.0
  %3096 = vmatpush1.msra.mxu0 0.0
  %3097 = vmatprep.subr.mxu0 0.0
  %3098 = vmatpush1.msra.mxu0 0.0
  %3099 = vmatprep.subr.mxu0 0.0
  %3100 = vmatpush1.msra.mxu0 0.0
  %3101 = vmatprep.subr.mxu0 0.0
  %3102 = vmatpush1.msra.mxu0 0.0
  %3103 = vmatprep.subr.mxu0 0.0
  %3104 = vmatpush1.msra.mxu0 0.0
  %3105 = vmatprep.subr.mxu0 0.0
  %3106 = vmatpush1.msra.mxu0 0.0
  %3107 = vmatprep.subr.mxu0 0.0
  %3108 = vmatpush1.msra.mxu0 0.0
  %3109 = vmatprep.subr.mxu0 0.0
  %3110 = vmatpush1.msra.mxu0 0.0
  %3111 = vmatprep.subr.mxu0 0.0
  %3112 = vmatpush1.msra.mxu0 0.0
  %3113 = vmatprep.subr.mxu0 0.0
  %3114 = vmatpush1.msra.mxu0 0.0
  %3115 = vmatprep.subr.mxu0 0.0
  %3116 = vmatpush1.msra.mxu0 0.0
  %3117 = vmatprep.subr.mxu0 0.0
  %3118 = vmatpush1.msra.mxu0 %v3013
  %3119 = vmatprep.subr.mxu0 0.0
  %3120 = vmatpush1.msra.mxu0 %v3012
  %3121 = vmatprep.subr.mxu0 0.0
  %3122 = vmatpush1.msra.mxu0 %v3011
  %3123 = vmatprep.subr.mxu0 0.0
  %3124 = vmatpush1.msra.mxu0 %v3010
  %3125 = vmatprep.subr.mxu0 0.0
  %3126 = vmatpush2.msra.mxu0 0.0
  %3127 = vmatprep.subr.mxu0 0.0
  %3128 = vmatpush2.msra.mxu0 0.0
  %3129 = vmatprep.subr.mxu0 0.0
  %3130 = vmatpush2.msra.mxu0 0.0
  %3131 = vmatprep.subr.mxu0 0.0
  %3132 = vmatpush2.msra.mxu0 0.0
  %3133 = vmatprep.subr.mxu0 0.0
  %3134 = vmatpush2.msra.mxu0 0.0
  %3135 = vmatprep.subr.mxu0 0.0
  %3136 = vmatpush2.msra.mxu0 0.0
  %3137 = vmatprep.subr.mxu0 0.0
  %3138 = vmatpush2.msra.mxu0 0.0
  %3139 = vmatprep.subr.mxu0 0.0
  %3140 = vmatpush2.msra.mxu0 0.0
  %3141 = vmatprep.subr.mxu0 0.0
  %3142 = vmatpush2.msra.mxu0 0.0
  %3143 = vmatprep.subr.mxu0 0.0
  %3144 = vmatpush2.msra.mxu0 0.0
  %3145 = vmatprep.subr.mxu0 0.0
  %3146 = vmatpush2.msra.mxu0 0.0
  %3147 = vmatprep.subr.mxu0 0.0
  %3148 = vmatpush2.msra.mxu0 0.0
  %3149 = vmatprep.subr.mxu0 0.0
  %3150 = vmatpush2.msra.mxu0 0.0
  %3151 = vmatprep.subr.mxu0 0.0
  %3152 = vmatpush2.msra.mxu0 0.0
  %3153 = vmatprep.subr.mxu0 0.0
  %3154 = vmatpush2.msra.mxu0 0.0
  %3155 = vmatprep.subr.mxu0 0.0
  %3156 = vmatpush2.msra.mxu0 0.0
  %3157 = vmatprep.mubr.f32.mxu0 0.0
  %3158 = vmatmul.mubr.f32.gmra.mxu0 %v3091
  %v3159 = vpop.f32.mrf.mxu0
  %v3160 = vadd.f32 %v3085, %v3159
  %v3161 = vpop.f32.mrf.mxu0
  %3162 = vdwg.mxu0
  %v3163 = vadd.f32 %v3160, %v72
  %v3164 = vxor.u32 %v3163, 2147483648
  %v3165 = vmul.f32 %v3164, 1.442695
  %v3166 = vpow.pop %v3165
  %v3167 = vadd.f32 %v3166, 1.0
  %v3168 = vrcp.pop %v3167
  %v3169 = vmul.f32 1.0, %v3168
  %v3170 = vtanh.pop %v3163
  %v3171 = vmul.f32 %v3169, %v2749
  %3173 = vrot.lane.b32.xlu0 %v3170, 32
  %v3174 = vpop.permute.xlu0 %3173
  %v3176 = vmul.f32 %v3169, %v3174
  %3178 = vrot.lane.b32.xlu0 %v3176, 32
  %v3179 = vpop.permute.xlu0 %3178
  %v3181 = vadd.f32 %v3171, %v3179
  %v3182 = vtanh.pop %v3181
  %3184 = vrot.lane.b32.xlu0 %v3182, 32
  %v3185 = vpop.permute.xlu0 %3184
  %v3187 = vmul.f32 %v3169, %v3185
  %v3188 = vld [vmem:[%s14] sm:$0xff]
  %v3189 = vld [vmem:[%s14 + $0x8] sm:$0xff]
  %v3190 = vld [vmem:[%s14 + $0x10] sm:$0xff]
  %v3191 = vld [vmem:[%s14 + $0x18] sm:$0xff]
  %3193 = vrot.lane.b32.xlu0 %v3187, 64
  %v3194 = vpop.permute.xlu0 %3193
  %v3195 = vsel %vm231, %v3194, 0
  %3197 = vmatprep.subr.mxu0 0.0
  %3198 = vmatpush1.msra.mxu0 0.0
  %3199 = vmatprep.subr.mxu0 0.0
  %3200 = vmatpush1.msra.mxu0 0.0
  %3201 = vmatprep.subr.mxu0 0.0
  %3202 = vmatpush1.msra.mxu0 0.0
  %3203 = vmatprep.subr.mxu0 0.0
  %3204 = vmatpush1.msra.mxu0 0.0
  %3205 = vmatprep.subr.mxu0 0.0
  %3206 = vmatpush1.msra.mxu0 0.0
  %3207 = vmatprep.subr.mxu0 0.0
  %3208 = vmatpush1.msra.mxu0 0.0
  %3209 = vmatprep.subr.mxu0 0.0
  %3210 = vmatpush1.msra.mxu0 0.0
  %3211 = vmatprep.subr.mxu0 0.0
  %3212 = vmatpush1.msra.mxu0 0.0
  %3213 = vmatprep.subr.mxu0 0.0
  %3214 = vmatpush1.msra.mxu0 0.0
  %3215 = vmatprep.subr.mxu0 0.0
  %3216 = vmatpush1.msra.mxu0 0.0
  %3217 = vmatprep.subr.mxu0 0.0
  %3218 = vmatpush1.msra.mxu0 0.0
  %3219 = vmatprep.subr.mxu0 0.0
  %3220 = vmatpush1.msra.mxu0 0.0
  %3221 = vmatprep.subr.mxu0 0.0
  %3222 = vmatpush1.msra.mxu0 %v3191
  %3223 = vmatprep.subr.mxu0 0.0
  %3224 = vmatpush1.msra.mxu0 %v3190
  %3225 = vmatprep.subr.mxu0 0.0
  %3226 = vmatpush1.msra.mxu0 %v3189
  %3227 = vmatprep.subr.mxu0 0.0
  %3228 = vmatpush1.msra.mxu0 %v3188
  %3229 = vmatprep.subr.mxu0 0.0
  %3230 = vmatpush2.msra.mxu0 0.0
  %3231 = vmatprep.subr.mxu0 0.0
  %3232 = vmatpush2.msra.mxu0 0.0
  %3233 = vmatprep.subr.mxu0 0.0
  %3234 = vmatpush2.msra.mxu0 0.0
  %3235 = vmatprep.subr.mxu0 0.0
  %3236 = vmatpush2.msra.mxu0 0.0
  %3237 = vmatprep.subr.mxu0 0.0
  %3238 = vmatpush2.msra.mxu0 0.0
  %3239 = vmatprep.subr.mxu0 0.0
  %3240 = vmatpush2.msra.mxu0 0.0
  %3241 = vmatprep.subr.mxu0 0.0
  %3242 = vmatpush2.msra.mxu0 0.0
  %3243 = vmatprep.subr.mxu0 0.0
  %3244 = vmatpush2.msra.mxu0 0.0
  %3245 = vmatprep.subr.mxu0 0.0
  %3246 = vmatpush2.msra.mxu0 0.0
  %3247 = vmatprep.subr.mxu0 0.0
  %3248 = vmatpush2.msra.mxu0 0.0
  %3249 = vmatprep.subr.mxu0 0.0
  %3250 = vmatpush2.msra.mxu0 0.0
  %3251 = vmatprep.subr.mxu0 0.0
  %3252 = vmatpush2.msra.mxu0 0.0
  %3253 = vmatprep.subr.mxu0 0.0
  %3254 = vmatpush2.msra.mxu0 0.0
  %3255 = vmatprep.subr.mxu0 0.0
  %3256 = vmatpush2.msra.mxu0 0.0
  %3257 = vmatprep.subr.mxu0 0.0
  %3258 = vmatpush2.msra.mxu0 0.0
  %3259 = vmatprep.subr.mxu0 0.0
  %3260 = vmatpush2.msra.mxu0 0.0
  %3261 = vmatprep.mubr.f32.mxu0 0.0
  %3262 = vmatmul.mubr.f32.gmra.mxu0 %v3195
  %v3263 = vpop.f32.mrf.mxu0
  %v3264 = vadd.f32 %v79, %v3263
  %v3265 = vpop.f32.mrf.mxu0
  %3266 = vdwg.mxu0
  %s3267 = scalar_lea.vmem %s16, 16
  %3268 = vst.msk [vmem:[%s3267] sm:$0xff] %vm97, %v3264
  %v3269 = vld [vmem:[%s8] sm:$0xff]
  %v3270 = vld [vmem:[%s9] sm:$0xff]
  %v3271 = vld [vmem:[%s9 + $0x8] sm:$0xff]
  %v3272 = vld [vmem:[%s9 + $0x10] sm:$0xff]
  %v3273 = vld [vmem:[%s9 + $0x18] sm:$0xff]
  %3274 = vmatprep.subr.mxu0 0.0
  %3275 = vmatpush1.msra.mxu0 0.0
  %3276 = vmatprep.subr.mxu0 0.0
  %3277 = vmatpush1.msra.mxu0 0.0
  %3278 = vmatprep.subr.mxu0 0.0
  %3279 = vmatpush1.msra.mxu0 0.0
  %3280 = vmatprep.subr.mxu0 0.0
  %3281 = vmatpush1.msra.mxu0 0.0
  %3282 = vmatprep.subr.mxu0 0.0
  %3283 = vmatpush1.msra.mxu0 0.0
  %3284 = vmatprep.subr.mxu0 0.0
  %3285 = vmatpush1.msra.mxu0 0.0
  %3286 = vmatprep.subr.mxu0 0.0
  %3287 = vmatpush1.msra.mxu0 0.0
  %3288 = vmatprep.subr.mxu0 0.0
  %3289 = vmatpush1.msra.mxu0 0.0
  %3290 = vmatprep.subr.mxu0 0.0
  %3291 = vmatpush1.msra.mxu0 0.0
  %3292 = vmatprep.subr.mxu0 0.0
  %3293 = vmatpush1.msra.mxu0 0.0
  %3294 = vmatprep.subr.mxu0 0.0
  %3295 = vmatpush1.msra.mxu0 0.0
  %3296 = vmatprep.subr.mxu0 0.0
  %3297 = vmatpush1.msra.mxu0 0.0
  %3298 = vmatprep.subr.mxu0 0.0
  %3299 = vmatpush1.msra.mxu0 %v3273
  %3300 = vmatprep.subr.mxu0 0.0
  %3301 = vmatpush1.msra.mxu0 %v3272
  %3302 = vmatprep.subr.mxu0 0.0
  %3303 = vmatpush1.msra.mxu0 %v3271
  %3304 = vmatprep.subr.mxu0 0.0
  %3305 = vmatpush1.msra.mxu0 %v3270
  %3306 = vmatprep.subr.mxu0 0.0
  %3307 = vmatpush2.msra.mxu0 0.0
  %3308 = vmatprep.subr.mxu0 0.0
  %3309 = vmatpush2.msra.mxu0 0.0
  %3310 = vmatprep.subr.mxu0 0.0
  %3311 = vmatpush2.msra.mxu0 0.0
  %3312 = vmatprep.subr.mxu0 0.0
  %3313 = vmatpush2.msra.mxu0 0.0
  %3314 = vmatprep.subr.mxu0 0.0
  %3315 = vmatpush2.msra.mxu0 0.0
  %3316 = vmatprep.subr.mxu0 0.0
  %3317 = vmatpush2.msra.mxu0 0.0
  %3318 = vmatprep.subr.mxu0 0.0
  %3319 = vmatpush2.msra.mxu0 0.0
  %3320 = vmatprep.subr.mxu0 0.0
  %3321 = vmatpush2.msra.mxu0 0.0
  %3322 = vmatprep.subr.mxu0 0.0
  %3323 = vmatpush2.msra.mxu0 0.0
  %3324 = vmatprep.subr.mxu0 0.0
  %3325 = vmatpush2.msra.mxu0 0.0
  %3326 = vmatprep.subr.mxu0 0.0
  %3327 = vmatpush2.msra.mxu0 0.0
  %3328 = vmatprep.subr.mxu0 0.0
  %3329 = vmatpush2.msra.mxu0 0.0
  %3330 = vmatprep.subr.mxu0 0.0
  %3331 = vmatpush2.msra.mxu0 0.0
  %3332 = vmatprep.subr.mxu0 0.0
  %3333 = vmatpush2.msra.mxu0 0.0
  %3334 = vmatprep.subr.mxu0 0.0
  %3335 = vmatpush2.msra.mxu0 0.0
  %3336 = vmatprep.subr.mxu0 0.0
  %3337 = vmatpush2.msra.mxu0 0.0
  %3338 = vmatprep.mubr.f32.mxu0 0.0
  %3339 = vmatmul.mubr.f32.gmra.mxu0 %v3091
  %v3340 = vpop.f32.mrf.mxu0
  %v3341 = vadd.f32 0.0, %v3340
  %v3342 = vpop.f32.mrf.mxu0
  %3343 = vdwg.mxu0
  %v3345 = vsel %vm97, %v3264, 0
  %3347 = vmatprep.subr.mxu0 0.0
  %3348 = vmatpush1.msra.mxu0 0.0
  %3349 = vmatprep.subr.mxu0 0.0
  %3350 = vmatpush1.msra.mxu0 0.0
  %3351 = vmatprep.subr.mxu0 0.0
  %3352 = vmatpush1.msra.mxu0 0.0
  %3353 = vmatprep.subr.mxu0 0.0
  %3354 = vmatpush1.msra.mxu0 0.0
  %3355 = vmatprep.subr.mxu0 0.0
  %3356 = vmatpush1.msra.mxu0 0.0
  %3357 = vmatprep.subr.mxu0 0.0
  %3358 = vmatpush1.msra.mxu0 0.0
  %3359 = vmatprep.subr.mxu0 0.0
  %3360 = vmatpush1.msra.mxu0 0.0
  %3361 = vmatprep.subr.mxu0 0.0
  %3362 = vmatpush1.msra.mxu0 0.0
  %3363 = vmatprep.subr.mxu0 0.0
  %3364 = vmatpush1.msra.mxu0 0.0
  %3365 = vmatprep.subr.mxu0 0.0
  %3366 = vmatpush1.msra.mxu0 0.0
  %3367 = vmatprep.subr.mxu0 0.0
  %3368 = vmatpush1.msra.mxu0 0.0
  %3369 = vmatprep.subr.mxu0 0.0
  %3370 = vmatpush1.msra.mxu0 0.0
  %3371 = vmatprep.subr.mxu0 0.0
  %3372 = vmatpush1.msra.mxu0 0.0
  %3373 = vmatprep.subr.mxu0 0.0
  %3374 = vmatpush1.msra.mxu0 0.0
  %3375 = vmatprep.subr.mxu0 0.0
  %3376 = vmatpush1.msra.mxu0 0.0
  %3377 = vmatprep.subr.mxu0 0.0
  %3378 = vmatpush1.msra.mxu0 %v3269
  %3379 = vmatprep.subr.mxu0 0.0
  %3380 = vmatpush2.msra.mxu0 0.0
  %3381 = vmatprep.subr.mxu0 0.0
  %3382 = vmatpush2.msra.mxu0 0.0
  %3383 = vmatprep.subr.mxu0 0.0
  %3384 = vmatpush2.msra.mxu0 0.0
  %3385 = vmatprep.subr.mxu0 0.0
  %3386 = vmatpush2.msra.mxu0 0.0
  %3387 = vmatprep.subr.mxu0 0.0
  %3388 = vmatpush2.msra.mxu0 0.0
  %3389 = vmatprep.subr.mxu0 0.0
  %3390 = vmatpush2.msra.mxu0 0.0
  %3391 = vmatprep.subr.mxu0 0.0
  %3392 = vmatpush2.msra.mxu0 0.0
  %3393 = vmatprep.subr.mxu0 0.0
  %3394 = vmatpush2.msra.mxu0 0.0
  %3395 = vmatprep.subr.mxu0 0.0
  %3396 = vmatpush2.msra.mxu0 0.0
  %3397 = vmatprep.subr.mxu0 0.0
  %3398 = vmatpush2.msra.mxu0 0.0
  %3399 = vmatprep.subr.mxu0 0.0
  %3400 = vmatpush2.msra.mxu0 0.0
  %3401 = vmatprep.subr.mxu0 0.0
  %3402 = vmatpush2.msra.mxu0 0.0
  %3403 = vmatprep.subr.mxu0 0.0
  %3404 = vmatpush2.msra.mxu0 0.0
  %3405 = vmatprep.subr.mxu0 0.0
  %3406 = vmatpush2.msra.mxu0 0.0
  %3407 = vmatprep.subr.mxu0 0.0
  %3408 = vmatpush2.msra.mxu0 0.0
  %3409 = vmatprep.subr.mxu0 0.0
  %3410 = vmatpush2.msra.mxu0 0.0
  %3411 = vmatprep.mubr.f32.mxu0 0.0
  %3412 = vmatmul.mubr.f32.gmra.mxu0 %v3345
  %v3413 = vpop.f32.mrf.mxu0
  %v3414 = vadd.f32 %v3341, %v3413
  %v3415 = vpop.f32.mrf.mxu0
  %3416 = vdwg.mxu0
  %v3417 = vadd.f32 %v3414, %v65
  %v3418 = vxor.u32 %v3417, 2147483648
  %v3419 = vmul.f32 %v3418, 1.442695
  %v3420 = vpow.pop %v3419
  %v3421 = vadd.f32 %v3420, 1.0
  %v3422 = vrcp.pop %v3421
  %v3423 = vmul.f32 1.0, %v3422
  %v3424 = vtanh.pop %v3417
  %v3425 = vmul.f32 %v3423, %v3003
  %3427 = vrot.lane.b32.xlu0 %v3424, 32
  %v3428 = vpop.permute.xlu0 %3427
  %v3430 = vmul.f32 %v3423, %v3428
  %3432 = vrot.lane.b32.xlu0 %v3430, 32
  %v3433 = vpop.permute.xlu0 %3432
  %v3435 = vadd.f32 %v3425, %v3433
  %v3436 = vtanh.pop %v3435
  %3438 = vrot.lane.b32.xlu0 %v3436, 32
  %v3439 = vpop.permute.xlu0 %3438
  %v3441 = vmul.f32 %v3423, %v3439
  %v3442 = vld [vmem:[%s11] sm:$0xff]
  %v3443 = vld [vmem:[%s11 + $0x8] sm:$0xff]
  %v3444 = vld [vmem:[%s11 + $0x10] sm:$0xff]
  %v3445 = vld [vmem:[%s11 + $0x18] sm:$0xff]
  %v3446 = vld [vmem:[%s12] sm:$0xff]
  %v3447 = vld [vmem:[%s12 + $0x8] sm:$0xff]
  %v3448 = vld [vmem:[%s12 + $0x10] sm:$0xff]
  %v3449 = vld [vmem:[%s12 + $0x18] sm:$0xff]
  %3450 = vmatprep.subr.mxu0 0.0
  %3451 = vmatpush1.msra.mxu0 0.0
  %3452 = vmatprep.subr.mxu0 0.0
  %3453 = vmatpush1.msra.mxu0 0.0
  %3454 = vmatprep.subr.mxu0 0.0
  %3455 = vmatpush1.msra.mxu0 0.0
  %3456 = vmatprep.subr.mxu0 0.0
  %3457 = vmatpush1.msra.mxu0 0.0
  %3458 = vmatprep.subr.mxu0 0.0
  %3459 = vmatpush1.msra.mxu0 0.0
  %3460 = vmatprep.subr.mxu0 0.0
  %3461 = vmatpush1.msra.mxu0 0.0
  %3462 = vmatprep.subr.mxu0 0.0
  %3463 = vmatpush1.msra.mxu0 0.0
  %3464 = vmatprep.subr.mxu0 0.0
  %3465 = vmatpush1.msra.mxu0 0.0
  %3466 = vmatprep.subr.mxu0 0.0
  %3467 = vmatpush1.msra.mxu0 0.0
  %3468 = vmatprep.subr.mxu0 0.0
  %3469 = vmatpush1.msra.mxu0 0.0
  %3470 = vmatprep.subr.mxu0 0.0
  %3471 = vmatpush1.msra.mxu0 0.0
  %3472 = vmatprep.subr.mxu0 0.0
  %3473 = vmatpush1.msra.mxu0 0.0
  %3474 = vmatprep.subr.mxu0 0.0
  %3475 = vmatpush1.msra.mxu0 %v3449
  %3476 = vmatprep.subr.mxu0 0.0
  %3477 = vmatpush1.msra.mxu0 %v3448
  %3478 = vmatprep.subr.mxu0 0.0
  %3479 = vmatpush1.msra.mxu0 %v3447
  %3480 = vmatprep.subr.mxu0 0.0
  %3481 = vmatpush1.msra.mxu0 %v3446
  %3482 = vmatprep.subr.mxu0 0.0
  %3483 = vmatpush2.msra.mxu0 0.0
  %3484 = vmatprep.subr.mxu0 0.0
  %3485 = vmatpush2.msra.mxu0 0.0
  %3486 = vmatprep.subr.mxu0 0.0
  %3487 = vmatpush2.msra.mxu0 0.0
  %3488 = vmatprep.subr.mxu0 0.0
  %3489 = vmatpush2.msra.mxu0 0.0
  %3490 = vmatprep.subr.mxu0 0.0
  %3491 = vmatpush2.msra.mxu0 0.0
  %3492 = vmatprep.subr.mxu0 0.0
  %3493 = vmatpush2.msra.mxu0 0.0
  %3494 = vmatprep.subr.mxu0 0.0
  %3495 = vmatpush2.msra.mxu0 0.0
  %3496 = vmatprep.subr.mxu0 0.0
  %3497 = vmatpush2.msra.mxu0 0.0
  %3498 = vmatprep.subr.mxu0 0.0
  %3499 = vmatpush2.msra.mxu0 0.0
  %3500 = vmatprep.subr.mxu0 0.0
  %3501 = vmatpush2.msra.mxu0 0.0
  %3502 = vmatprep.subr.mxu0 0.0
  %3503 = vmatpush2.msra.mxu0 0.0
  %3504 = vmatprep.subr.mxu0 0.0
  %3505 = vmatpush2.msra.mxu0 0.0
  %3506 = vmatprep.subr.mxu0 0.0
  %3507 = vmatpush2.msra.mxu0 0.0
  %3508 = vmatprep.subr.mxu0 0.0
  %3509 = vmatpush2.msra.mxu0 0.0
  %3510 = vmatprep.subr.mxu0 0.0
  %3511 = vmatpush2.msra.mxu0 0.0
  %3512 = vmatprep.subr.mxu0 0.0
  %3513 = vmatpush2.msra.mxu0 0.0
  %3514 = vmatprep.mubr.f32.mxu0 0.0
  %3515 = vmatmul.mubr.f32.gmra.mxu0 %v3195
  %v3516 = vpop.f32.mrf.mxu0
  %v3517 = vadd.f32 0.0, %v3516
  %v3518 = vpop.f32.mrf.mxu0
  %3519 = vdwg.mxu0
  %3521 = vrot.lane.b32.xlu0 %v3441, 64
  %v3522 = vpop.permute.xlu0 %3521
  %v3523 = vsel %vm231, %v3522, 0
  %3525 = vmatprep.subr.mxu0 0.0
  %3526 = vmatpush1.msra.mxu0 0.0
  %3527 = vmatprep.subr.mxu0 0.0
  %3528 = vmatpush1.msra.mxu0 0.0
  %3529 = vmatprep.subr.mxu0 0.0
  %3530 = vmatpush1.msra.mxu0 0.0
  %3531 = vmatprep.subr.mxu0 0.0
  %3532 = vmatpush1.msra.mxu0 0.0
  %3533 = vmatprep.subr.mxu0 0.0
  %3534 = vmatpush1.msra.mxu0 0.0
  %3535 = vmatprep.subr.mxu0 0.0
  %3536 = vmatpush1.msra.mxu0 0.0
  %3537 = vmatprep.subr.mxu0 0.0
  %3538 = vmatpush1.msra.mxu0 0.0
  %3539 = vmatprep.subr.mxu0 0.0
  %3540 = vmatpush1.msra.mxu0 0.0
  %3541 = vmatprep.subr.mxu0 0.0
  %3542 = vmatpush1.msra.mxu0 0.0
  %3543 = vmatprep.subr.mxu0 0.0
  %3544 = vmatpush1.msra.mxu0 0.0
  %3545 = vmatprep.subr.mxu0 0.0
  %3546 = vmatpush1.msra.mxu0 0.0
  %3547 = vmatprep.subr.mxu0 0.0
  %3548 = vmatpush1.msra.mxu0 0.0
  %3549 = vmatprep.subr.mxu0 0.0
  %3550 = vmatpush1.msra.mxu0 %v3445
  %3551 = vmatprep.subr.mxu0 0.0
  %3552 = vmatpush1.msra.mxu0 %v3444
  %3553 = vmatprep.subr.mxu0 0.0
  %3554 = vmatpush1.msra.mxu0 %v3443
  %3555 = vmatprep.subr.mxu0 0.0
  %3556 = vmatpush1.msra.mxu0 %v3442
  %3557 = vmatprep.subr.mxu0 0.0
  %3558 = vmatpush2.msra.mxu0 0.0
  %3559 = vmatprep.subr.mxu0 0.0
  %3560 = vmatpush2.msra.mxu0 0.0
  %3561 = vmatprep.subr.mxu0 0.0
  %3562 = vmatpush2.msra.mxu0 0.0
  %3563 = vmatprep.subr.mxu0 0.0
  %3564 = vmatpush2.msra.mxu0 0.0
  %3565 = vmatprep.subr.mxu0 0.0
  %3566 = vmatpush2.msra.mxu0 0.0
  %3567 = vmatprep.subr.mxu0 0.0
  %3568 = vmatpush2.msra.mxu0 0.0
  %3569 = vmatprep.subr.mxu0 0.0
  %3570 = vmatpush2.msra.mxu0 0.0
  %3571 = vmatprep.subr.mxu0 0.0
  %3572 = vmatpush2.msra.mxu0 0.0
  %3573 = vmatprep.subr.mxu0 0.0
  %3574 = vmatpush2.msra.mxu0 0.0
  %3575 = vmatprep.subr.mxu0 0.0
  %3576 = vmatpush2.msra.mxu0 0.0
  %3577 = vmatprep.subr.mxu0 0.0
  %3578 = vmatpush2.msra.mxu0 0.0
  %3579 = vmatprep.subr.mxu0 0.0
  %3580 = vmatpush2.msra.mxu0 0.0
  %3581 = vmatprep.subr.mxu0 0.0
  %3582 = vmatpush2.msra.mxu0 0.0
  %3583 = vmatprep.subr.mxu0 0.0
  %3584 = vmatpush2.msra.mxu0 0.0
  %3585 = vmatprep.subr.mxu0 0.0
  %3586 = vmatpush2.msra.mxu0 0.0
  %3587 = vmatprep.subr.mxu0 0.0
  %3588 = vmatpush2.msra.mxu0 0.0
  %3589 = vmatprep.mubr.f32.mxu0 0.0
  %3590 = vmatmul.mubr.f32.gmra.mxu0 %v3523
  %v3591 = vpop.f32.mrf.mxu0
  %v3592 = vadd.f32 %v3517, %v3591
  %v3593 = vpop.f32.mrf.mxu0
  %3594 = vdwg.mxu0
  %v3595 = vadd.f32 %v3592, %v72
  %v3596 = vxor.u32 %v3595, 2147483648
  %v3597 = vmul.f32 %v3596, 1.442695
  %v3598 = vpow.pop %v3597
  %v3599 = vadd.f32 %v3598, 1.0
  %v3600 = vrcp.pop %v3599
  %v3601 = vmul.f32 1.0, %v3600
  %v3602 = vtanh.pop %v3595
  %v3603 = vmul.f32 %v3601, %v3181
  %3605 = vrot.lane.b32.xlu0 %v3602, 32
  %v3606 = vpop.permute.xlu0 %3605
  %v3608 = vmul.f32 %v3601, %v3606
  %3610 = vrot.lane.b32.xlu0 %v3608, 32
  %v3611 = vpop.permute.xlu0 %3610
  %v3613 = vadd.f32 %v3603, %v3611
  %v3614 = vtanh.pop %v3613
  %3616 = vrot.lane.b32.xlu0 %v3614, 32
  %v3617 = vpop.permute.xlu0 %3616
  %v3619 = vmul.f32 %v3601, %v3617
  %v3620 = vld [vmem:[%s14] sm:$0xff]
  %v3621 = vld [vmem:[%s14 + $0x8] sm:$0xff]
  %v3622 = vld [vmem:[%s14 + $0x10] sm:$0xff]
  %v3623 = vld [vmem:[%s14 + $0x18] sm:$0xff]
  %3625 = vrot.lane.b32.xlu0 %v3619, 64
  %v3626 = vpop.permute.xlu0 %3625
  %v3627 = vsel %vm231, %v3626, 0
  %3629 = vmatprep.subr.mxu0 0.0
  %3630 = vmatpush1.msra.mxu0 0.0
  %3631 = vmatprep.subr.mxu0 0.0
  %3632 = vmatpush1.msra.mxu0 0.0
  %3633 = vmatprep.subr.mxu0 0.0
  %3634 = vmatpush1.msra.mxu0 0.0
  %3635 = vmatprep.subr.mxu0 0.0
  %3636 = vmatpush1.msra.mxu0 0.0
  %3637 = vmatprep.subr.mxu0 0.0
  %3638 = vmatpush1.msra.mxu0 0.0
  %3639 = vmatprep.subr.mxu0 0.0
  %3640 = vmatpush1.msra.mxu0 0.0
  %3641 = vmatprep.subr.mxu0 0.0
  %3642 = vmatpush1.msra.mxu0 0.0
  %3643 = vmatprep.subr.mxu0 0.0
  %3644 = vmatpush1.msra.mxu0 0.0
  %3645 = vmatprep.subr.mxu0 0.0
  %3646 = vmatpush1.msra.mxu0 0.0
  %3647 = vmatprep.subr.mxu0 0.0
  %3648 = vmatpush1.msra.mxu0 0.0
  %3649 = vmatprep.subr.mxu0 0.0
  %3650 = vmatpush1.msra.mxu0 0.0
  %3651 = vmatprep.subr.mxu0 0.0
  %3652 = vmatpush1.msra.mxu0 0.0
  %3653 = vmatprep.subr.mxu0 0.0
  %3654 = vmatpush1.msra.mxu0 %v3623
  %3655 = vmatprep.subr.mxu0 0.0
  %3656 = vmatpush1.msra.mxu0 %v3622
  %3657 = vmatprep.subr.mxu0 0.0
  %3658 = vmatpush1.msra.mxu0 %v3621
  %3659 = vmatprep.subr.mxu0 0.0
  %3660 = vmatpush1.msra.mxu0 %v3620
  %3661 = vmatprep.subr.mxu0 0.0
  %3662 = vmatpush2.msra.mxu0 0.0
  %3663 = vmatprep.subr.mxu0 0.0
  %3664 = vmatpush2.msra.mxu0 0.0
  %3665 = vmatprep.subr.mxu0 0.0
  %3666 = vmatpush2.msra.mxu0 0.0
  %3667 = vmatprep.subr.mxu0 0.0
  %3668 = vmatpush2.msra.mxu0 0.0
  %3669 = vmatprep.subr.mxu0 0.0
  %3670 = vmatpush2.msra.mxu0 0.0
  %3671 = vmatprep.subr.mxu0 0.0
  %3672 = vmatpush2.msra.mxu0 0.0
  %3673 = vmatprep.subr.mxu0 0.0
  %3674 = vmatpush2.msra.mxu0 0.0
  %3675 = vmatprep.subr.mxu0 0.0
  %3676 = vmatpush2.msra.mxu0 0.0
  %3677 = vmatprep.subr.mxu0 0.0
  %3678 = vmatpush2.msra.mxu0 0.0
  %3679 = vmatprep.subr.mxu0 0.0
  %3680 = vmatpush2.msra.mxu0 0.0
  %3681 = vmatprep.subr.mxu0 0.0
  %3682 = vmatpush2.msra.mxu0 0.0
  %3683 = vmatprep.subr.mxu0 0.0
  %3684 = vmatpush2.msra.mxu0 0.0
  %3685 = vmatprep.subr.mxu0 0.0
  %3686 = vmatpush2.msra.mxu0 0.0
  %3687 = vmatprep.subr.mxu0 0.0
  %3688 = vmatpush2.msra.mxu0 0.0
  %3689 = vmatprep.subr.mxu0 0.0
  %3690 = vmatpush2.msra.mxu0 0.0
  %3691 = vmatprep.subr.mxu0 0.0
  %3692 = vmatpush2.msra.mxu0 0.0
  %3693 = vmatprep.mubr.f32.mxu0 0.0
  %3694 = vmatmul.mubr.f32.gmra.mxu0 %v3627
  %v3695 = vpop.f32.mrf.mxu0
  %v3696 = vadd.f32 %v79, %v3695
  %v3697 = vpop.f32.mrf.mxu0
  %3698 = vdwg.mxu0
  %s3699 = scalar_lea.vmem %s16, 24
  %3700 = vst.msk [vmem:[%s3699] sm:$0xff] %vm97, %v3696
  %v3701 = vld [vmem:[%s8] sm:$0xff]
  %v3702 = vld [vmem:[%s9] sm:$0xff]
  %v3703 = vld [vmem:[%s9 + $0x8] sm:$0xff]
  %v3704 = vld [vmem:[%s9 + $0x10] sm:$0xff]
  %v3705 = vld [vmem:[%s9 + $0x18] sm:$0xff]
  %3706 = vmatprep.subr.mxu0 0.0
  %3707 = vmatpush1.msra.mxu0 0.0
  %3708 = vmatprep.subr.mxu0 0.0
  %3709 = vmatpush1.msra.mxu0 0.0
  %3710 = vmatprep.subr.mxu0 0.0
  %3711 = vmatpush1.msra.mxu0 0.0
  %3712 = vmatprep.subr.mxu0 0.0
  %3713 = vmatpush1.msra.mxu0 0.0
  %3714 = vmatprep.subr.mxu0 0.0
  %3715 = vmatpush1.msra.mxu0 0.0
  %3716 = vmatprep.subr.mxu0 0.0
  %3717 = vmatpush1.msra.mxu0 0.0
  %3718 = vmatprep.subr.mxu0 0.0
  %3719 = vmatpush1.msra.mxu0 0.0
  %3720 = vmatprep.subr.mxu0 0.0
  %3721 = vmatpush1.msra.mxu0 0.0
  %3722 = vmatprep.subr.mxu0 0.0
  %3723 = vmatpush1.msra.mxu0 0.0
  %3724 = vmatprep.subr.mxu0 0.0
  %3725 = vmatpush1.msra.mxu0 0.0
  %3726 = vmatprep.subr.mxu0 0.0
  %3727 = vmatpush1.msra.mxu0 0.0
  %3728 = vmatprep.subr.mxu0 0.0
  %3729 = vmatpush1.msra.mxu0 0.0
  %3730 = vmatprep.subr.mxu0 0.0
  %3731 = vmatpush1.msra.mxu0 %v3705
  %3732 = vmatprep.subr.mxu0 0.0
  %3733 = vmatpush1.msra.mxu0 %v3704
  %3734 = vmatprep.subr.mxu0 0.0
  %3735 = vmatpush1.msra.mxu0 %v3703
  %3736 = vmatprep.subr.mxu0 0.0
  %3737 = vmatpush1.msra.mxu0 %v3702
  %3738 = vmatprep.subr.mxu0 0.0
  %3739 = vmatpush2.msra.mxu0 0.0
  %3740 = vmatprep.subr.mxu0 0.0
  %3741 = vmatpush2.msra.mxu0 0.0
  %3742 = vmatprep.subr.mxu0 0.0
  %3743 = vmatpush2.msra.mxu0 0.0
  %3744 = vmatprep.subr.mxu0 0.0
  %3745 = vmatpush2.msra.mxu0 0.0
  %3746 = vmatprep.subr.mxu0 0.0
  %3747 = vmatpush2.msra.mxu0 0.0
  %3748 = vmatprep.subr.mxu0 0.0
  %3749 = vmatpush2.msra.mxu0 0.0
  %3750 = vmatprep.subr.mxu0 0.0
  %3751 = vmatpush2.msra.mxu0 0.0
  %3752 = vmatprep.subr.mxu0 0.0
  %3753 = vmatpush2.msra.mxu0 0.0
  %3754 = vmatprep.subr.mxu0 0.0
  %3755 = vmatpush2.msra.mxu0 0.0
  %3756 = vmatprep.subr.mxu0 0.0
  %3757 = vmatpush2.msra.mxu0 0.0
  %3758 = vmatprep.subr.mxu0 0.0
  %3759 = vmatpush2.msra.mxu0 0.0
  %3760 = vmatprep.subr.mxu0 0.0
  %3761 = vmatpush2.msra.mxu0 0.0
  %3762 = vmatprep.subr.mxu0 0.0
  %3763 = vmatpush2.msra.mxu0 0.0
  %3764 = vmatprep.subr.mxu0 0.0
  %3765 = vmatpush2.msra.mxu0 0.0
  %3766 = vmatprep.subr.mxu0 0.0
  %3767 = vmatpush2.msra.mxu0 0.0
  %3768 = vmatprep.subr.mxu0 0.0
  %3769 = vmatpush2.msra.mxu0 0.0
  %3770 = vmatprep.mubr.f32.mxu0 0.0
  %3771 = vmatmul.mubr.f32.gmra.mxu0 %v3523
  %v3772 = vpop.f32.mrf.mxu0
  %v3773 = vadd.f32 0.0, %v3772
  %v3774 = vpop.f32.mrf.mxu0
  %3775 = vdwg.mxu0
  %v3777 = vsel %vm97, %v3696, 0
  %3779 = vmatprep.subr.mxu0 0.0
  %3780 = vmatpush1.msra.mxu0 0.0
  %3781 = vmatprep.subr.mxu0 0.0
  %3782 = vmatpush1.msra.mxu0 0.0
  %3783 = vmatprep.subr.mxu0 0.0
  %3784 = vmatpush1.msra.mxu0 0.0
  %3785 = vmatprep.subr.mxu0 0.0
  %3786 = vmatpush1.msra.mxu0 0.0
  %3787 = vmatprep.subr.mxu0 0.0
  %3788 = vmatpush1.msra.mxu0 0.0
  %3789 = vmatprep.subr.mxu0 0.0
  %3790 = vmatpush1.msra.mxu0 0.0
  %3791 = vmatprep.subr.mxu0 0.0
  %3792 = vmatpush1.msra.mxu0 0.0
  %3793 = vmatprep.subr.mxu0 0.0
  %3794 = vmatpush1.msra.mxu0 0.0
  %3795 = vmatprep.subr.mxu0 0.0
  %3796 = vmatpush1.msra.mxu0 0.0
  %3797 = vmatprep.subr.mxu0 0.0
  %3798 = vmatpush1.msra.mxu0 0.0
  %3799 = vmatprep.subr.mxu0 0.0
  %3800 = vmatpush1.msra.mxu0 0.0
  %3801 = vmatprep.subr.mxu0 0.0
  %3802 = vmatpush1.msra.mxu0 0.0
  %3803 = vmatprep.subr.mxu0 0.0
  %3804 = vmatpush1.msra.mxu0 0.0
  %3805 = vmatprep.subr.mxu0 0.0
  %3806 = vmatpush1.msra.mxu0 0.0
  %3807 = vmatprep.subr.mxu0 0.0
  %3808 = vmatpush1.msra.mxu0 0.0
  %3809 = vmatprep.subr.mxu0 0.0
  %3810 = vmatpush1.msra.mxu0 %v3701
  %3811 = vmatprep.subr.mxu0 0.0
  %3812 = vmatpush2.msra.mxu0 0.0
  %3813 = vmatprep.subr.mxu0 0.0
  %3814 = vmatpush2.msra.mxu0 0.0
  %3815 = vmatprep.subr.mxu0 0.0
  %3816 = vmatpush2.msra.mxu0 0.0
  %3817 = vmatprep.subr.mxu0 0.0
  %3818 = vmatpush2.msra.mxu0 0.0
  %3819 = vmatprep.subr.mxu0 0.0
  %3820 = vmatpush2.msra.mxu0 0.0
  %3821 = vmatprep.subr.mxu0 0.0
  %3822 = vmatpush2.msra.mxu0 0.0
  %3823 = vmatprep.subr.mxu0 0.0
  %3824 = vmatpush2.msra.mxu0 0.0
  %3825 = vmatprep.subr.mxu0 0.0
  %3826 = vmatpush2.msra.mxu0 0.0
  %3827 = vmatprep.subr.mxu0 0.0
  %3828 = vmatpush2.msra.mxu0 0.0
  %3829 = vmatprep.subr.mxu0 0.0
  %3830 = vmatpush2.msra.mxu0 0.0
  %3831 = vmatprep.subr.mxu0 0.0
  %3832 = vmatpush2.msra.mxu0 0.0
  %3833 = vmatprep.subr.mxu0 0.0
  %3834 = vmatpush2.msra.mxu0 0.0
  %3835 = vmatprep.subr.mxu0 0.0
  %3836 = vmatpush2.msra.mxu0 0.0
  %3837 = vmatprep.subr.mxu0 0.0
  %3838 = vmatpush2.msra.mxu0 0.0
  %3839 = vmatprep.subr.mxu0 0.0
  %3840 = vmatpush2.msra.mxu0 0.0
  %3841 = vmatprep.subr.mxu0 0.0
  %3842 = vmatpush2.msra.mxu0 0.0
  %3843 = vmatprep.mubr.f32.mxu0 0.0
  %3844 = vmatmul.mubr.f32.gmra.mxu0 %v3777
  %v3845 = vpop.f32.mrf.mxu0
  %v3846 = vadd.f32 %v3773, %v3845
  %v3847 = vpop.f32.mrf.mxu0
  %3848 = vdwg.mxu0
  %v3849 = vadd.f32 %v3846, %v65
  %v3850 = vxor.u32 %v3849, 2147483648
  %v3851 = vmul.f32 %v3850, 1.442695
  %v3852 = vpow.pop %v3851
  %v3853 = vadd.f32 %v3852, 1.0
  %v3854 = vrcp.pop %v3853
  %v3855 = vmul.f32 1.0, %v3854
  %v3856 = vtanh.pop %v3849
  %v3857 = vmul.f32 %v3855, %v3435
  %3859 = vrot.lane.b32.xlu0 %v3856, 32
  %v3860 = vpop.permute.xlu0 %3859
  %v3862 = vmul.f32 %v3855, %v3860
  %3864 = vrot.lane.b32.xlu0 %v3862, 32
  %v3865 = vpop.permute.xlu0 %3864
  %v3867 = vadd.f32 %v3857, %v3865
  %v3868 = vtanh.pop %v3867
  %3870 = vrot.lane.b32.xlu0 %v3868, 32
  %v3871 = vpop.permute.xlu0 %3870
  %v3873 = vmul.f32 %v3855, %v3871
  %v3874 = vld [vmem:[%s11] sm:$0xff]
  %v3875 = vld [vmem:[%s11 + $0x8] sm:$0xff]
  %v3876 = vld [vmem:[%s11 + $0x10] sm:$0xff]
  %v3877 = vld [vmem:[%s11 + $0x18] sm:$0xff]
  %v3878 = vld [vmem:[%s12] sm:$0xff]
  %v3879 = vld [vmem:[%s12 + $0x8] sm:$0xff]
  %v3880 = vld [vmem:[%s12 + $0x10] sm:$0xff]
  %v3881 = vld [vmem:[%s12 + $0x18] sm:$0xff]
  %3882 = vmatprep.subr.mxu0 0.0
  %3883 = vmatpush1.msra.mxu0 0.0
  %3884 = vmatprep.subr.mxu0 0.0
  %3885 = vmatpush1.msra.mxu0 0.0
  %3886 = vmatprep.subr.mxu0 0.0
  %3887 = vmatpush1.msra.mxu0 0.0
  %3888 = vmatprep.subr.mxu0 0.0
  %3889 = vmatpush1.msra.mxu0 0.0
  %3890 = vmatprep.subr.mxu0 0.0
  %3891 = vmatpush1.msra.mxu0 0.0
  %3892 = vmatprep.subr.mxu0 0.0
  %3893 = vmatpush1.msra.mxu0 0.0
  %3894 = vmatprep.subr.mxu0 0.0
  %3895 = vmatpush1.msra.mxu0 0.0
  %3896 = vmatprep.subr.mxu0 0.0
  %3897 = vmatpush1.msra.mxu0 0.0
  %3898 = vmatprep.subr.mxu0 0.0
  %3899 = vmatpush1.msra.mxu0 0.0
  %3900 = vmatprep.subr.mxu0 0.0
  %3901 = vmatpush1.msra.mxu0 0.0
  %3902 = vmatprep.subr.mxu0 0.0
  %3903 = vmatpush1.msra.mxu0 0.0
  %3904 = vmatprep.subr.mxu0 0.0
  %3905 = vmatpush1.msra.mxu0 0.0
  %3906 = vmatprep.subr.mxu0 0.0
  %3907 = vmatpush1.msra.mxu0 %v3881
  %3908 = vmatprep.subr.mxu0 0.0
  %3909 = vmatpush1.msra.mxu0 %v3880
  %3910 = vmatprep.subr.mxu0 0.0
  %3911 = vmatpush1.msra.mxu0 %v3879
  %3912 = vmatprep.subr.mxu0 0.0
  %3913 = vmatpush1.msra.mxu0 %v3878
  %3914 = vmatprep.subr.mxu0 0.0
  %3915 = vmatpush2.msra.mxu0 0.0
  %3916 = vmatprep.subr.mxu0 0.0
  %3917 = vmatpush2.msra.mxu0 0.0
  %3918 = vmatprep.subr.mxu0 0.0
  %3919 = vmatpush2.msra.mxu0 0.0
  %3920 = vmatprep.subr.mxu0 0.0
  %3921 = vmatpush2.msra.mxu0 0.0
  %3922 = vmatprep.subr.mxu0 0.0
  %3923 = vmatpush2.msra.mxu0 0.0
  %3924 = vmatprep.subr.mxu0 0.0
  %3925 = vmatpush2.msra.mxu0 0.0
  %3926 = vmatprep.subr.mxu0 0.0
  %3927 = vmatpush2.msra.mxu0 0.0
  %3928 = vmatprep.subr.mxu0 0.0
  %3929 = vmatpush2.msra.mxu0 0.0
  %3930 = vmatprep.subr.mxu0 0.0
  %3931 = vmatpush2.msra.mxu0 0.0
  %3932 = vmatprep.subr.mxu0 0.0
  %3933 = vmatpush2.msra.mxu0 0.0
  %3934 = vmatprep.subr.mxu0 0.0
  %3935 = vmatpush2.msra.mxu0 0.0
  %3936 = vmatprep.subr.mxu0 0.0
  %3937 = vmatpush2.msra.mxu0 0.0
  %3938 = vmatprep.subr.mxu0 0.0
  %3939 = vmatpush2.msra.mxu0 0.0
  %3940 = vmatprep.subr.mxu0 0.0
  %3941 = vmatpush2.msra.mxu0 0.0
  %3942 = vmatprep.subr.mxu0 0.0
  %3943 = vmatpush2.msra.mxu0 0.0
  %3944 = vmatprep.subr.mxu0 0.0
  %3945 = vmatpush2.msra.mxu0 0.0
  %3946 = vmatprep.mubr.f32.mxu0 0.0
  %3947 = vmatmul.mubr.f32.gmra.mxu0 %v3627
  %v3948 = vpop.f32.mrf.mxu0
  %v3949 = vadd.f32 0.0, %v3948
  %v3950 = vpop.f32.mrf.mxu0
  %3951 = vdwg.mxu0
  %3953 = vrot.lane.b32.xlu0 %v3873, 64
  %v3954 = vpop.permute.xlu0 %3953
  %v3955 = vsel %vm231, %v3954, 0
  %3957 = vmatprep.subr.mxu0 0.0
  %3958 = vmatpush1.msra.mxu0 0.0
  %3959 = vmatprep.subr.mxu0 0.0
  %3960 = vmatpush1.msra.mxu0 0.0
  %3961 = vmatprep.subr.mxu0 0.0
  %3962 = vmatpush1.msra.mxu0 0.0
  %3963 = vmatprep.subr.mxu0 0.0
  %3964 = vmatpush1.msra.mxu0 0.0
  %3965 = vmatprep.subr.mxu0 0.0
  %3966 = vmatpush1.msra.mxu0 0.0
  %3967 = vmatprep.subr.mxu0 0.0
  %3968 = vmatpush1.msra.mxu0 0.0
  %3969 = vmatprep.subr.mxu0 0.0
  %3970 = vmatpush1.msra.mxu0 0.0
  %3971 = vmatprep.subr.mxu0 0.0
  %3972 = vmatpush1.msra.mxu0 0.0
  %3973 = vmatprep.subr.mxu0 0.0
  %3974 = vmatpush1.msra.mxu0 0.0
  %3975 = vmatprep.subr.mxu0 0.0
  %3976 = vmatpush1.msra.mxu0 0.0
  %3977 = vmatprep.subr.mxu0 0.0
  %3978 = vmatpush1.msra.mxu0 0.0
  %3979 = vmatprep.subr.mxu0 0.0
  %3980 = vmatpush1.msra.mxu0 0.0
  %3981 = vmatprep.subr.mxu0 0.0
  %3982 = vmatpush1.msra.mxu0 %v3877
  %3983 = vmatprep.subr.mxu0 0.0
  %3984 = vmatpush1.msra.mxu0 %v3876
  %3985 = vmatprep.subr.mxu0 0.0
  %3986 = vmatpush1.msra.mxu0 %v3875
  %3987 = vmatprep.subr.mxu0 0.0
  %3988 = vmatpush1.msra.mxu0 %v3874
  %3989 = vmatprep.subr.mxu0 0.0
  %3990 = vmatpush2.msra.mxu0 0.0
  %3991 = vmatprep.subr.mxu0 0.0
  %3992 = vmatpush2.msra.mxu0 0.0
  %3993 = vmatprep.subr.mxu0 0.0
  %3994 = vmatpush2.msra.mxu0 0.0
  %3995 = vmatprep.subr.mxu0 0.0
  %3996 = vmatpush2.msra.mxu0 0.0
  %3997 = vmatprep.subr.mxu0 0.0
  %3998 = vmatpush2.msra.mxu0 0.0
  %3999 = vmatprep.subr.mxu0 0.0
  %4000 = vmatpush2.msra.mxu0 0.0
  %4001 = vmatprep.subr.mxu0 0.0
  %4002 = vmatpush2.msra.mxu0 0.0
  %4003 = vmatprep.subr.mxu0 0.0
  %4004 = vmatpush2.msra.mxu0 0.0
  %4005 = vmatprep.subr.mxu0 0.0
  %4006 = vmatpush2.msra.mxu0 0.0
  %4007 = vmatprep.subr.mxu0 0.0
  %4008 = vmatpush2.msra.mxu0 0.0
  %4009 = vmatprep.subr.mxu0 0.0
  %4010 = vmatpush2.msra.mxu0 0.0
  %4011 = vmatprep.subr.mxu0 0.0
  %4012 = vmatpush2.msra.mxu0 0.0
  %4013 = vmatprep.subr.mxu0 0.0
  %4014 = vmatpush2.msra.mxu0 0.0
  %4015 = vmatprep.subr.mxu0 0.0
  %4016 = vmatpush2.msra.mxu0 0.0
  %4017 = vmatprep.subr.mxu0 0.0
  %4018 = vmatpush2.msra.mxu0 0.0
  %4019 = vmatprep.subr.mxu0 0.0
  %4020 = vmatpush2.msra.mxu0 0.0
  %4021 = vmatprep.mubr.f32.mxu0 0.0
  %4022 = vmatmul.mubr.f32.gmra.mxu0 %v3955
  %v4023 = vpop.f32.mrf.mxu0
  %v4024 = vadd.f32 %v3949, %v4023
  %v4025 = vpop.f32.mrf.mxu0
  %4026 = vdwg.mxu0
  %v4027 = vadd.f32 %v4024, %v72
  %v4028 = vxor.u32 %v4027, 2147483648
  %v4029 = vmul.f32 %v4028, 1.442695
  %v4030 = vpow.pop %v4029
  %v4031 = vadd.f32 %v4030, 1.0
  %v4032 = vrcp.pop %v4031
  %v4033 = vmul.f32 1.0, %v4032
  %v4034 = vtanh.pop %v4027
  %v4035 = vmul.f32 %v4033, %v3613
  %4037 = vrot.lane.b32.xlu0 %v4034, 32
  %v4038 = vpop.permute.xlu0 %4037
  %v4040 = vmul.f32 %v4033, %v4038
  %4042 = vrot.lane.b32.xlu0 %v4040, 32
  %v4043 = vpop.permute.xlu0 %4042
  %v4045 = vadd.f32 %v4035, %v4043
  %v4046 = vtanh.pop %v4045
  %4048 = vrot.lane.b32.xlu0 %v4046, 32
  %v4049 = vpop.permute.xlu0 %4048
  %v4051 = vmul.f32 %v4033, %v4049
  %v4052 = vld [vmem:[%s14] sm:$0xff]
  %v4053 = vld [vmem:[%s14 + $0x8] sm:$0xff]
  %v4054 = vld [vmem:[%s14 + $0x10] sm:$0xff]
  %v4055 = vld [vmem:[%s14 + $0x18] sm:$0xff]
  %4057 = vrot.lane.b32.xlu0 %v4051, 64
  %v4058 = vpop.permute.xlu0 %4057
  %v4059 = vsel %vm231, %v4058, 0
  %4061 = vmatprep.subr.mxu0 0.0
  %4062 = vmatpush1.msra.mxu0 0.0
  %4063 = vmatprep.subr.mxu0 0.0
  %4064 = vmatpush1.msra.mxu0 0.0
  %4065 = vmatprep.subr.mxu0 0.0
  %4066 = vmatpush1.msra.mxu0 0.0
  %4067 = vmatprep.subr.mxu0 0.0
  %4068 = vmatpush1.msra.mxu0 0.0
  %4069 = vmatprep.subr.mxu0 0.0
  %4070 = vmatpush1.msra.mxu0 0.0
  %4071 = vmatprep.subr.mxu0 0.0
  %4072 = vmatpush1.msra.mxu0 0.0
  %4073 = vmatprep.subr.mxu0 0.0
  %4074 = vmatpush1.msra.mxu0 0.0
  %4075 = vmatprep.subr.mxu0 0.0
  %4076 = vmatpush1.msra.mxu0 0.0
  %4077 = vmatprep.subr.mxu0 0.0
  %4078 = vmatpush1.msra.mxu0 0.0
  %4079 = vmatprep.subr.mxu0 0.0
  %4080 = vmatpush1.msra.mxu0 0.0
  %4081 = vmatprep.subr.mxu0 0.0
  %4082 = vmatpush1.msra.mxu0 0.0
  %4083 = vmatprep.subr.mxu0 0.0
  %4084 = vmatpush1.msra.mxu0 0.0
  %4085 = vmatprep.subr.mxu0 0.0
  %4086 = vmatpush1.msra.mxu0 %v4055
  %4087 = vmatprep.subr.mxu0 0.0
  %4088 = vmatpush1.msra.mxu0 %v4054
  %4089 = vmatprep.subr.mxu0 0.0
  %4090 = vmatpush1.msra.mxu0 %v4053
  %4091 = vmatprep.subr.mxu0 0.0
  %4092 = vmatpush1.msra.mxu0 %v4052
  %4093 = vmatprep.subr.mxu0 0.0
  %4094 = vmatpush2.msra.mxu0 0.0
  %4095 = vmatprep.subr.mxu0 0.0
  %4096 = vmatpush2.msra.mxu0 0.0
  %4097 = vmatprep.subr.mxu0 0.0
  %4098 = vmatpush2.msra.mxu0 0.0
  %4099 = vmatprep.subr.mxu0 0.0
  %4100 = vmatpush2.msra.mxu0 0.0
  %4101 = vmatprep.subr.mxu0 0.0
  %4102 = vmatpush2.msra.mxu0 0.0
  %4103 = vmatprep.subr.mxu0 0.0
  %4104 = vmatpush2.msra.mxu0 0.0
  %4105 = vmatprep.subr.mxu0 0.0
  %4106 = vmatpush2.msra.mxu0 0.0
  %4107 = vmatprep.subr.mxu0 0.0
  %4108 = vmatpush2.msra.mxu0 0.0
  %4109 = vmatprep.subr.mxu0 0.0
  %4110 = vmatpush2.msra.mxu0 0.0
  %4111 = vmatprep.subr.mxu0 0.0
  %4112 = vmatpush2.msra.mxu0 0.0
  %4113 = vmatprep.subr.mxu0 0.0
  %4114 = vmatpush2.msra.mxu0 0.0
  %4115 = vmatprep.subr.mxu0 0.0
  %4116 = vmatpush2.msra.mxu0 0.0
  %4117 = vmatprep.subr.mxu0 0.0
  %4118 = vmatpush2.msra.mxu0 0.0
  %4119 = vmatprep.subr.mxu0 0.0
  %4120 = vmatpush2.msra.mxu0 0.0
  %4121 = vmatprep.subr.mxu0 0.0
  %4122 = vmatpush2.msra.mxu0 0.0
  %4123 = vmatprep.subr.mxu0 0.0
  %4124 = vmatpush2.msra.mxu0 0.0
  %4125 = vmatprep.mubr.f32.mxu0 0.0
  %4126 = vmatmul.mubr.f32.gmra.mxu0 %v4059
  %v4127 = vpop.f32.mrf.mxu0
  %v4128 = vadd.f32 %v79, %v4127
  %v4129 = vpop.f32.mrf.mxu0
  %4130 = vdwg.mxu0
  %s4131 = scalar_lea.vmem %s16, 32
  %4132 = vst.msk [vmem:[%s4131] sm:$0xff] %vm97, %v4128
  %v4133 = vld [vmem:[%s8] sm:$0xff]
  %v4134 = vld [vmem:[%s9] sm:$0xff]
  %v4135 = vld [vmem:[%s9 + $0x8] sm:$0xff]
  %v4136 = vld [vmem:[%s9 + $0x10] sm:$0xff]
  %v4137 = vld [vmem:[%s9 + $0x18] sm:$0xff]
  %4138 = vmatprep.subr.mxu0 0.0
  %4139 = vmatpush1.msra.mxu0 0.0
  %4140 = vmatprep.subr.mxu0 0.0
  %4141 = vmatpush1.msra.mxu0 0.0
  %4142 = vmatprep.subr.mxu0 0.0
  %4143 = vmatpush1.msra.mxu0 0.0
  %4144 = vmatprep.subr.mxu0 0.0
  %4145 = vmatpush1.msra.mxu0 0.0
  %4146 = vmatprep.subr.mxu0 0.0
  %4147 = vmatpush1.msra.mxu0 0.0
  %4148 = vmatprep.subr.mxu0 0.0
  %4149 = vmatpush1.msra.mxu0 0.0
  %4150 = vmatprep.subr.mxu0 0.0
  %4151 = vmatpush1.msra.mxu0 0.0
  %4152 = vmatprep.subr.mxu0 0.0
  %4153 = vmatpush1.msra.mxu0 0.0
  %4154 = vmatprep.subr.mxu0 0.0
  %4155 = vmatpush1.msra.mxu0 0.0
  %4156 = vmatprep.subr.mxu0 0.0
  %4157 = vmatpush1.msra.mxu0 0.0
  %4158 = vmatprep.subr.mxu0 0.0
  %4159 = vmatpush1.msra.mxu0 0.0
  %4160 = vmatprep.subr.mxu0 0.0
  %4161 = vmatpush1.msra.mxu0 0.0
  %4162 = vmatprep.subr.mxu0 0.0
  %4163 = vmatpush1.msra.mxu0 %v4137
  %4164 = vmatprep.subr.mxu0 0.0
  %4165 = vmatpush1.msra.mxu0 %v4136
  %4166 = vmatprep.subr.mxu0 0.0
  %4167 = vmatpush1.msra.mxu0 %v4135
  %4168 = vmatprep.subr.mxu0 0.0
  %4169 = vmatpush1.msra.mxu0 %v4134
  %4170 = vmatprep.subr.mxu0 0.0
  %4171 = vmatpush2.msra.mxu0 0.0
  %4172 = vmatprep.subr.mxu0 0.0
  %4173 = vmatpush2.msra.mxu0 0.0
  %4174 = vmatprep.subr.mxu0 0.0
  %4175 = vmatpush2.msra.mxu0 0.0
  %4176 = vmatprep.subr.mxu0 0.0
  %4177 = vmatpush2.msra.mxu0 0.0
  %4178 = vmatprep.subr.mxu0 0.0
  %4179 = vmatpush2.msra.mxu0 0.0
  %4180 = vmatprep.subr.mxu0 0.0
  %4181 = vmatpush2.msra.mxu0 0.0
  %4182 = vmatprep.subr.mxu0 0.0
  %4183 = vmatpush2.msra.mxu0 0.0
  %4184 = vmatprep.subr.mxu0 0.0
  %4185 = vmatpush2.msra.mxu0 0.0
  %4186 = vmatprep.subr.mxu0 0.0
  %4187 = vmatpush2.msra.mxu0 0.0
  %4188 = vmatprep.subr.mxu0 0.0
  %4189 = vmatpush2.msra.mxu0 0.0
  %4190 = vmatprep.subr.mxu0 0.0
  %4191 = vmatpush2.msra.mxu0 0.0
  %4192 = vmatprep.subr.mxu0 0.0
  %4193 = vmatpush2.msra.mxu0 0.0
  %4194 = vmatprep.subr.mxu0 0.0
  %4195 = vmatpush2.msra.mxu0 0.0
  %4196 = vmatprep.subr.mxu0 0.0
  %4197 = vmatpush2.msra.mxu0 0.0
  %4198 = vmatprep.subr.mxu0 0.0
  %4199 = vmatpush2.msra.mxu0 0.0
  %4200 = vmatprep.subr.mxu0 0.0
  %4201 = vmatpush2.msra.mxu0 0.0
  %4202 = vmatprep.mubr.f32.mxu0 0.0
  %4203 = vmatmul.mubr.f32.gmra.mxu0 %v3955
  %v4204 = vpop.f32.mrf.mxu0
  %v4205 = vadd.f32 0.0, %v4204
  %v4206 = vpop.f32.mrf.mxu0
  %4207 = vdwg.mxu0
  %v4209 = vsel %vm97, %v4128, 0
  %4211 = vmatprep.subr.mxu0 0.0
  %4212 = vmatpush1.msra.mxu0 0.0
  %4213 = vmatprep.subr.mxu0 0.0
  %4214 = vmatpush1.msra.mxu0 0.0
  %4215 = vmatprep.subr.mxu0 0.0
  %4216 = vmatpush1.msra.mxu0 0.0
  %4217 = vmatprep.subr.mxu0 0.0
  %4218 = vmatpush1.msra.mxu0 0.0
  %4219 = vmatprep.subr.mxu0 0.0
  %4220 = vmatpush1.msra.mxu0 0.0
  %4221 = vmatprep.subr.mxu0 0.0
  %4222 = vmatpush1.msra.mxu0 0.0
  %4223 = vmatprep.subr.mxu0 0.0
  %4224 = vmatpush1.msra.mxu0 0.0
  %4225 = vmatprep.subr.mxu0 0.0
  %4226 = vmatpush1.msra.mxu0 0.0
  %4227 = vmatprep.subr.mxu0 0.0
  %4228 = vmatpush1.msra.mxu0 0.0
  %4229 = vmatprep.subr.mxu0 0.0
  %4230 = vmatpush1.msra.mxu0 0.0
  %4231 = vmatprep.subr.mxu0 0.0
  %4232 = vmatpush1.msra.mxu0 0.0
  %4233 = vmatprep.subr.mxu0 0.0
  %4234 = vmatpush1.msra.mxu0 0.0
  %4235 = vmatprep.subr.mxu0 0.0
  %4236 = vmatpush1.msra.mxu0 0.0
  %4237 = vmatprep.subr.mxu0 0.0
  %4238 = vmatpush1.msra.mxu0 0.0
  %4239 = vmatprep.subr.mxu0 0.0
  %4240 = vmatpush1.msra.mxu0 0.0
  %4241 = vmatprep.subr.mxu0 0.0
  %4242 = vmatpush1.msra.mxu0 %v4133
  %4243 = vmatprep.subr.mxu0 0.0
  %4244 = vmatpush2.msra.mxu0 0.0
  %4245 = vmatprep.subr.mxu0 0.0
  %4246 = vmatpush2.msra.mxu0 0.0
  %4247 = vmatprep.subr.mxu0 0.0
  %4248 = vmatpush2.msra.mxu0 0.0
  %4249 = vmatprep.subr.mxu0 0.0
  %4250 = vmatpush2.msra.mxu0 0.0
  %4251 = vmatprep.subr.mxu0 0.0
  %4252 = vmatpush2.msra.mxu0 0.0
  %4253 = vmatprep.subr.mxu0 0.0
  %4254 = vmatpush2.msra.mxu0 0.0
  %4255 = vmatprep.subr.mxu0 0.0
  %4256 = vmatpush2.msra.mxu0 0.0
  %4257 = vmatprep.subr.mxu0 0.0
  %4258 = vmatpush2.msra.mxu0 0.0
  %4259 = vmatprep.subr.mxu0 0.0
  %4260 = vmatpush2.msra.mxu0 0.0
  %4261 = vmatprep.subr.mxu0 0.0
  %4262 = vmatpush2.msra.mxu0 0.0
  %4263 = vmatprep.subr.mxu0 0.0
  %4264 = vmatpush2.msra.mxu0 0.0
  %4265 = vmatprep.subr.mxu0 0.0
  %4266 = vmatpush2.msra.mxu0 0.0
  %4267 = vmatprep.subr.mxu0 0.0
  %4268 = vmatpush2.msra.mxu0 0.0
  %4269 = vmatprep.subr.mxu0 0.0
  %4270 = vmatpush2.msra.mxu0 0.0
  %4271 = vmatprep.subr.mxu0 0.0
  %4272 = vmatpush2.msra.mxu0 0.0
  %4273 = vmatprep.subr.mxu0 0.0
  %4274 = vmatpush2.msra.mxu0 0.0
  %4275 = vmatprep.mubr.f32.mxu0 0.0
  %4276 = vmatmul.mubr.f32.gmra.mxu0 %v4209
  %v4277 = vpop.f32.mrf.mxu0
  %v4278 = vadd.f32 %v4205, %v4277
  %v4279 = vpop.f32.mrf.mxu0
  %4280 = vdwg.mxu0
  %v4281 = vadd.f32 %v4278, %v65
  %v4282 = vxor.u32 %v4281, 2147483648
  %v4283 = vmul.f32 %v4282, 1.442695
  %v4284 = vpow.pop %v4283
  %v4285 = vadd.f32 %v4284, 1.0
  %v4286 = vrcp.pop %v4285
  %v4287 = vmul.f32 1.0, %v4286
  %v4288 = vtanh.pop %v4281
  %v4289 = vmul.f32 %v4287, %v3867
  %4291 = vrot.lane.b32.xlu0 %v4288, 32
  %v4292 = vpop.permute.xlu0 %4291
  %v4294 = vmul.f32 %v4287, %v4292
  %4296 = vrot.lane.b32.xlu0 %v4294, 32
  %v4297 = vpop.permute.xlu0 %4296
  %v4299 = vadd.f32 %v4289, %v4297
  %v4300 = vtanh.pop %v4299
  %4302 = vrot.lane.b32.xlu0 %v4300, 32
  %v4303 = vpop.permute.xlu0 %4302
  %v4305 = vmul.f32 %v4287, %v4303
  %v4306 = vld [vmem:[%s11] sm:$0xff]
  %v4307 = vld [vmem:[%s11 + $0x8] sm:$0xff]
  %v4308 = vld [vmem:[%s11 + $0x10] sm:$0xff]
  %v4309 = vld [vmem:[%s11 + $0x18] sm:$0xff]
  %v4310 = vld [vmem:[%s12] sm:$0xff]
  %v4311 = vld [vmem:[%s12 + $0x8] sm:$0xff]
  %v4312 = vld [vmem:[%s12 + $0x10] sm:$0xff]
  %v4313 = vld [vmem:[%s12 + $0x18] sm:$0xff]
  %4314 = vmatprep.subr.mxu0 0.0
  %4315 = vmatpush1.msra.mxu0 0.0
  %4316 = vmatprep.subr.mxu0 0.0
  %4317 = vmatpush1.msra.mxu0 0.0
  %4318 = vmatprep.subr.mxu0 0.0
  %4319 = vmatpush1.msra.mxu0 0.0
  %4320 = vmatprep.subr.mxu0 0.0
  %4321 = vmatpush1.msra.mxu0 0.0
  %4322 = vmatprep.subr.mxu0 0.0
  %4323 = vmatpush1.msra.mxu0 0.0
  %4324 = vmatprep.subr.mxu0 0.0
  %4325 = vmatpush1.msra.mxu0 0.0
  %4326 = vmatprep.subr.mxu0 0.0
  %4327 = vmatpush1.msra.mxu0 0.0
  %4328 = vmatprep.subr.mxu0 0.0
  %4329 = vmatpush1.msra.mxu0 0.0
  %4330 = vmatprep.subr.mxu0 0.0
  %4331 = vmatpush1.msra.mxu0 0.0
  %4332 = vmatprep.subr.mxu0 0.0
  %4333 = vmatpush1.msra.mxu0 0.0
  %4334 = vmatprep.subr.mxu0 0.0
  %4335 = vmatpush1.msra.mxu0 0.0
  %4336 = vmatprep.subr.mxu0 0.0
  %4337 = vmatpush1.msra.mxu0 0.0
  %4338 = vmatprep.subr.mxu0 0.0
  %4339 = vmatpush1.msra.mxu0 %v4313
  %4340 = vmatprep.subr.mxu0 0.0
  %4341 = vmatpush1.msra.mxu0 %v4312
  %4342 = vmatprep.subr.mxu0 0.0
  %4343 = vmatpush1.msra.mxu0 %v4311
  %4344 = vmatprep.subr.mxu0 0.0
  %4345 = vmatpush1.msra.mxu0 %v4310
  %4346 = vmatprep.subr.mxu0 0.0
  %4347 = vmatpush2.msra.mxu0 0.0
  %4348 = vmatprep.subr.mxu0 0.0
  %4349 = vmatpush2.msra.mxu0 0.0
  %4350 = vmatprep.subr.mxu0 0.0
  %4351 = vmatpush2.msra.mxu0 0.0
  %4352 = vmatprep.subr.mxu0 0.0
  %4353 = vmatpush2.msra.mxu0 0.0
  %4354 = vmatprep.subr.mxu0 0.0
  %4355 = vmatpush2.msra.mxu0 0.0
  %4356 = vmatprep.subr.mxu0 0.0
  %4357 = vmatpush2.msra.mxu0 0.0
  %4358 = vmatprep.subr.mxu0 0.0
  %4359 = vmatpush2.msra.mxu0 0.0
  %4360 = vmatprep.subr.mxu0 0.0
  %4361 = vmatpush2.msra.mxu0 0.0
  %4362 = vmatprep.subr.mxu0 0.0
  %4363 = vmatpush2.msra.mxu0 0.0
  %4364 = vmatprep.subr.mxu0 0.0
  %4365 = vmatpush2.msra.mxu0 0.0
  %4366 = vmatprep.subr.mxu0 0.0
  %4367 = vmatpush2.msra.mxu0 0.0
  %4368 = vmatprep.subr.mxu0 0.0
  %4369 = vmatpush2.msra.mxu0 0.0
  %4370 = vmatprep.subr.mxu0 0.0
  %4371 = vmatpush2.msra.mxu0 0.0
  %4372 = vmatprep.subr.mxu0 0.0
  %4373 = vmatpush2.msra.mxu0 0.0
  %4374 = vmatprep.subr.mxu0 0.0
  %4375 = vmatpush2.msra.mxu0 0.0
  %4376 = vmatprep.subr.mxu0 0.0
  %4377 = vmatpush2.msra.mxu0 0.0
  %4378 = vmatprep.mubr.f32.mxu0 0.0
  %4379 = vmatmul.mubr.f32.gmra.mxu0 %v4059
  %v4380 = vpop.f32.mrf.mxu0
  %v4381 = vadd.f32 0.0, %v4380
  %v4382 = vpop.f32.mrf.mxu0
  %4383 = vdwg.mxu0
  %4385 = vrot.lane.b32.xlu0 %v4305, 64
  %v4386 = vpop.permute.xlu0 %4385
  %v4387 = vsel %vm231, %v4386, 0
  %4389 = vmatprep.subr.mxu0 0.0
  %4390 = vmatpush1.msra.mxu0 0.0
  %4391 = vmatprep.subr.mxu0 0.0
  %4392 = vmatpush1.msra.mxu0 0.0
  %4393 = vmatprep.subr.mxu0 0.0
  %4394 = vmatpush1.msra.mxu0 0.0
  %4395 = vmatprep.subr.mxu0 0.0
  %4396 = vmatpush1.msra.mxu0 0.0
  %4397 = vmatprep.subr.mxu0 0.0
  %4398 = vmatpush1.msra.mxu0 0.0
  %4399 = vmatprep.subr.mxu0 0.0
  %4400 = vmatpush1.msra.mxu0 0.0
  %4401 = vmatprep.subr.mxu0 0.0
  %4402 = vmatpush1.msra.mxu0 0.0
  %4403 = vmatprep.subr.mxu0 0.0
  %4404 = vmatpush1.msra.mxu0 0.0
  %4405 = vmatprep.subr.mxu0 0.0
  %4406 = vmatpush1.msra.mxu0 0.0
  %4407 = vmatprep.subr.mxu0 0.0
  %4408 = vmatpush1.msra.mxu0 0.0
  %4409 = vmatprep.subr.mxu0 0.0
  %4410 = vmatpush1.msra.mxu0 0.0
  %4411 = vmatprep.subr.mxu0 0.0
  %4412 = vmatpush1.msra.mxu0 0.0
  %4413 = vmatprep.subr.mxu0 0.0
  %4414 = vmatpush1.msra.mxu0 %v4309
  %4415 = vmatprep.subr.mxu0 0.0
  %4416 = vmatpush1.msra.mxu0 %v4308
  %4417 = vmatprep.subr.mxu0 0.0
  %4418 = vmatpush1.msra.mxu0 %v4307
  %4419 = vmatprep.subr.mxu0 0.0
  %4420 = vmatpush1.msra.mxu0 %v4306
  %4421 = vmatprep.subr.mxu0 0.0
  %4422 = vmatpush2.msra.mxu0 0.0
  %4423 = vmatprep.subr.mxu0 0.0
  %4424 = vmatpush2.msra.mxu0 0.0
  %4425 = vmatprep.subr.mxu0 0.0
  %4426 = vmatpush2.msra.mxu0 0.0
  %4427 = vmatprep.subr.mxu0 0.0
  %4428 = vmatpush2.msra.mxu0 0.0
  %4429 = vmatprep.subr.mxu0 0.0
  %4430 = vmatpush2.msra.mxu0 0.0
  %4431 = vmatprep.subr.mxu0 0.0
  %4432 = vmatpush2.msra.mxu0 0.0
  %4433 = vmatprep.subr.mxu0 0.0
  %4434 = vmatpush2.msra.mxu0 0.0
  %4435 = vmatprep.subr.mxu0 0.0
  %4436 = vmatpush2.msra.mxu0 0.0
  %4437 = vmatprep.subr.mxu0 0.0
  %4438 = vmatpush2.msra.mxu0 0.0
  %4439 = vmatprep.subr.mxu0 0.0
  %4440 = vmatpush2.msra.mxu0 0.0
  %4441 = vmatprep.subr.mxu0 0.0
  %4442 = vmatpush2.msra.mxu0 0.0
  %4443 = vmatprep.subr.mxu0 0.0
  %4444 = vmatpush2.msra.mxu0 0.0
  %4445 = vmatprep.subr.mxu0 0.0
  %4446 = vmatpush2.msra.mxu0 0.0
  %4447 = vmatprep.subr.mxu0 0.0
  %4448 = vmatpush2.msra.mxu0 0.0
  %4449 = vmatprep.subr.mxu0 0.0
  %4450 = vmatpush2.msra.mxu0 0.0
  %4451 = vmatprep.subr.mxu0 0.0
  %4452 = vmatpush2.msra.mxu0 0.0
  %4453 = vmatprep.mubr.f32.mxu0 0.0
  %4454 = vmatmul.mubr.f32.gmra.mxu0 %v4387
  %v4455 = vpop.f32.mrf.mxu0
  %v4456 = vadd.f32 %v4381, %v4455
  %v4457 = vpop.f32.mrf.mxu0
  %4458 = vdwg.mxu0
  %v4459 = vadd.f32 %v4456, %v72
  %v4460 = vxor.u32 %v4459, 2147483648
  %v4461 = vmul.f32 %v4460, 1.442695
  %v4462 = vpow.pop %v4461
  %v4463 = vadd.f32 %v4462, 1.0
  %v4464 = vrcp.pop %v4463
  %v4465 = vmul.f32 1.0, %v4464
  %v4466 = vtanh.pop %v4459
  %v4467 = vmul.f32 %v4465, %v4045
  %4469 = vrot.lane.b32.xlu0 %v4466, 32
  %v4470 = vpop.permute.xlu0 %4469
  %v4472 = vmul.f32 %v4465, %v4470
  %4474 = vrot.lane.b32.xlu0 %v4472, 32
  %v4475 = vpop.permute.xlu0 %4474
  %v4477 = vadd.f32 %v4467, %v4475
  %v4478 = vtanh.pop %v4477
  %4480 = vrot.lane.b32.xlu0 %v4478, 32
  %v4481 = vpop.permute.xlu0 %4480
  %v4483 = vmul.f32 %v4465, %v4481
  %v4484 = vld [vmem:[%s14] sm:$0xff]
  %v4485 = vld [vmem:[%s14 + $0x8] sm:$0xff]
  %v4486 = vld [vmem:[%s14 + $0x10] sm:$0xff]
  %v4487 = vld [vmem:[%s14 + $0x18] sm:$0xff]
  %4489 = vrot.lane.b32.xlu0 %v4483, 64
  %v4490 = vpop.permute.xlu0 %4489
  %v4491 = vsel %vm231, %v4490, 0
  %4493 = vmatprep.subr.mxu0 0.0
  %4494 = vmatpush1.msra.mxu0 0.0
  %4495 = vmatprep.subr.mxu0 0.0
  %4496 = vmatpush1.msra.mxu0 0.0
  %4497 = vmatprep.subr.mxu0 0.0
  %4498 = vmatpush1.msra.mxu0 0.0
  %4499 = vmatprep.subr.mxu0 0.0
  %4500 = vmatpush1.msra.mxu0 0.0
  %4501 = vmatprep.subr.mxu0 0.0
  %4502 = vmatpush1.msra.mxu0 0.0
  %4503 = vmatprep.subr.mxu0 0.0
  %4504 = vmatpush1.msra.mxu0 0.0
  %4505 = vmatprep.subr.mxu0 0.0
  %4506 = vmatpush1.msra.mxu0 0.0
  %4507 = vmatprep.subr.mxu0 0.0
  %4508 = vmatpush1.msra.mxu0 0.0
  %4509 = vmatprep.subr.mxu0 0.0
  %4510 = vmatpush1.msra.mxu0 0.0
  %4511 = vmatprep.subr.mxu0 0.0
  %4512 = vmatpush1.msra.mxu0 0.0
  %4513 = vmatprep.subr.mxu0 0.0
  %4514 = vmatpush1.msra.mxu0 0.0
  %4515 = vmatprep.subr.mxu0 0.0
  %4516 = vmatpush1.msra.mxu0 0.0
  %4517 = vmatprep.subr.mxu0 0.0
  %4518 = vmatpush1.msra.mxu0 %v4487
  %4519 = vmatprep.subr.mxu0 0.0
  %4520 = vmatpush1.msra.mxu0 %v4486
  %4521 = vmatprep.subr.mxu0 0.0
  %4522 = vmatpush1.msra.mxu0 %v4485
  %4523 = vmatprep.subr.mxu0 0.0
  %4524 = vmatpush1.msra.mxu0 %v4484
  %4525 = vmatprep.subr.mxu0 0.0
  %4526 = vmatpush2.msra.mxu0 0.0
  %4527 = vmatprep.subr.mxu0 0.0
  %4528 = vmatpush2.msra.mxu0 0.0
  %4529 = vmatprep.subr.mxu0 0.0
  %4530 = vmatpush2.msra.mxu0 0.0
  %4531 = vmatprep.subr.mxu0 0.0
  %4532 = vmatpush2.msra.mxu0 0.0
  %4533 = vmatprep.subr.mxu0 0.0
  %4534 = vmatpush2.msra.mxu0 0.0
  %4535 = vmatprep.subr.mxu0 0.0
  %4536 = vmatpush2.msra.mxu0 0.0
  %4537 = vmatprep.subr.mxu0 0.0
  %4538 = vmatpush2.msra.mxu0 0.0
  %4539 = vmatprep.subr.mxu0 0.0
  %4540 = vmatpush2.msra.mxu0 0.0
  %4541 = vmatprep.subr.mxu0 0.0
  %4542 = vmatpush2.msra.mxu0 0.0
  %4543 = vmatprep.subr.mxu0 0.0
  %4544 = vmatpush2.msra.mxu0 0.0
  %4545 = vmatprep.subr.mxu0 0.0
  %4546 = vmatpush2.msra.mxu0 0.0
  %4547 = vmatprep.subr.mxu0 0.0
  %4548 = vmatpush2.msra.mxu0 0.0
  %4549 = vmatprep.subr.mxu0 0.0
  %4550 = vmatpush2.msra.mxu0 0.0
  %4551 = vmatprep.subr.mxu0 0.0
  %4552 = vmatpush2.msra.mxu0 0.0
  %4553 = vmatprep.subr.mxu0 0.0
  %4554 = vmatpush2.msra.mxu0 0.0
  %4555 = vmatprep.subr.mxu0 0.0
  %4556 = vmatpush2.msra.mxu0 0.0
  %4557 = vmatprep.mubr.f32.mxu0 0.0
  %4558 = vmatmul.mubr.f32.gmra.mxu0 %v4491
  %v4559 = vpop.f32.mrf.mxu0
  %v4560 = vadd.f32 %v79, %v4559
  %v4561 = vpop.f32.mrf.mxu0
  %4562 = vdwg.mxu0
  %s4563 = scalar_lea.vmem %s16, 40
  %4564 = vst.msk [vmem:[%s4563] sm:$0xff] %vm97, %v4560
  // Predicated region
  $region66: #{seq2seq_forward.1} parent=0 // pred_check
    _
  $region67: #{seq2seq_forward.1} parent=0 // pred_check_branch
    %4566 = sbr.rel (0) target = $region69
  $region68: #{seq2seq_forward.1} parent=0 // pred_region
    _
  $region69: #{seq2seq_forward.1} parent=0 // pred_fallthru
    _
  // Predicated region
  $region70: #{seq2seq_forward.1} parent=0 // pred_check
    _
  $region71: #{seq2seq_forward.1} parent=0 // pred_check_branch
    %4568 = sbr.rel (0) target = $region73
  $region72: #{seq2seq_forward.1} parent=0 // pred_region
    _
  $region73: #{seq2seq_forward.1} parent=0 // pred_fallthru
    _

</llo_original>
